<compile_context>
chip_gen: v7x
topology: tpu7x:2x2x1
jax: 0.10.0
libtpu: 0.0.40
codegen_flags: <defaults>
</compile_context>

<pallas_src>
import functools

import jax
import jax.numpy as jnp
from jax.experimental import pallas as pl
from jax.experimental.pallas import tpu as pltpu

_BN_EPS = 1e-5


def _vmem_limit_bytes():
    # Generation-aware scoped-VMEM budget: ~75% of physical VMEM, capped at
    # 100 MiB (=> ~96-100 MiB on v5e/v6e's 128 MiB, ~48 MiB on v7x's 64 MiB).
    try:
        info = pltpu.get_tpu_info()
        cap = int(getattr(info, "vmem_capacity_bytes", 64 * 1024 * 1024))
    except Exception:
        cap = 64 * 1024 * 1024
    return int(min(cap * 3 // 4, 100 * 1024 * 1024))


_VMEM_LIMIT = _vmem_limit_bytes()


# ---------------------------------------------------------------------------
# Shared in-kernel 3x3 "same" conv: 9 accumulated matmuls from a flat,
# H-padded VMEM activation.  pad_ref: ((H2+4)*W2, Cin) f32, activation stored
# at flat row offset 2*W2; acc_ref: (M, Cout) f32; w_ref: (9, Cin, Cout) bf16.
# ---------------------------------------------------------------------------
def _conv3x3_acc(pad_ref, w_ref, acc_ref, W2, M):
    # Column index of each output pixel (for masking the W wrap of the taps).
    xcoord = jax.lax.broadcasted_iota(jnp.int32, (M, 1), 0) % W2
    not_left = xcoord > 0            # reading x-1 is valid
    not_right = xcoord < (W2 - 1)    # reading x+1 is valid

    for k in range(9):
        kh, kw = divmod(k, 3)
        dh, dw = kh - 1, kw - 1
        off = (dh + 2) * W2 + dw                     # static flat window offset
        win = pad_ref[off:off + M, :]                # (M, Cin) f32
        if dw == -1:
            win = jnp.where(not_left, win, jnp.zeros_like(win))
        elif dw == 1:
            win = jnp.where(not_right, win, jnp.zeros_like(win))
        contrib = jnp.dot(win.astype(jnp.bfloat16), w_ref[k],
                          preferred_element_type=jnp.float32)
        if k == 0:
            acc_ref[...] = contrib
        else:
            acc_ref[...] += contrib


def _zero_halo_rows(pad_ref, W2, M):
    # Only the 2*W2 halo rows at each end need to be zero; the interior
    # [2*W2, 2*W2+M) is fully rewritten every grid step.  (Per-step, but tiny:
    # 4*W2*C elements instead of the whole buffer.)
    zeros = jnp.zeros((2 * W2, pad_ref.shape[1]), pad_ref.dtype)
    pad_ref[0:2 * W2, :] = zeros
    pad_ref[2 * W2 + M:, :] = zeros


# ---------------------------------------------------------------------------
# Kernel bodies
# ---------------------------------------------------------------------------
def _pool_conv_stats_kernel(W2, M, x_ref, w_ref,
                            z_ref, ssum_ref, ssq_ref,
                            pad_ref, acc_ref):
    # x_ref: (1, H2, 2, W2, 2*Cin)  -- H pre-split, (2, Cin) merged into lanes.
    cin = w_ref.shape[1]
    _zero_halo_rows(pad_ref, W2, M)

    x = x_ref[0]                                        # (H2, 2, W2, 2*Cin)
    m = jnp.maximum(x[:, 0], x[:, 1])                   # row-pair max
    pooled = jnp.maximum(m[..., :cin], m[..., cin:])    # col-pair max -> (H2,W2,Cin)
    pad_ref[2 * W2:2 * W2 + M, :] = pooled.reshape(M, cin)

    _conv3x3_acc(pad_ref, w_ref, acc_ref, W2, M)

    acc = acc_ref[...]
    # Conv bias intentionally omitted: training-mode BN subtracts the channel
    # mean, which cancels any constant bias exactly.
    z_ref[0] = acc.astype(z_ref.dtype)
    ssum_ref[0] = jnp.sum(acc, axis=0, keepdims=True)
    ssq_ref[0] = jnp.sum(acc * acc, axis=0, keepdims=True)


def _bnrelu_conv_stats_kernel(W2, M, z1_ref, scale_ref, shift_ref, w_ref,
                              z_ref, ssum_ref, ssq_ref,
                              pad_ref, acc_ref):
    _zero_halo_rows(pad_ref, W2, M)

    # Fused BN1 + ReLU prologue (f32 math on the bf16 intermediate).
    a = jnp.maximum(z1_ref[0].astype(jnp.float32) * scale_ref[...]
                    + shift_ref[...], 0.0)              # (M, Cmid)
    pad_ref[2 * W2:2 * W2 + M, :] = a

    _conv3x3_acc(pad_ref, w_ref, acc_ref, W2, M)

    acc = acc_ref[...]
    z_ref[0] = acc.astype(z_ref.dtype)
    ssum_ref[0] = jnp.sum(acc, axis=0, keepdims=True)
    ssq_ref[0] = jnp.sum(acc * acc, axis=0, keepdims=True)


def _bnrelu_kernel(z_ref, scale_ref, shift_ref, o_ref):
    o_ref[0] = jnp.maximum(
        z_ref[0].astype(jnp.float32) * scale_ref[...] + shift_ref[...], 0.0
    ).astype(o_ref.dtype)


# ---------------------------------------------------------------------------
# pallas_call wrappers
# ---------------------------------------------------------------------------
def _compiler_params():
    return pltpu.CompilerParams(
        dimension_semantics=("parallel",),
        vmem_limit_bytes=_VMEM_LIMIT,
    )


def _conv1_call(x_split, w1, H2, W2):
    N = x_split.shape[0]
    cin2 = x_split.shape[-1]            # 2 * Cin
    _, Cin, Cmid = w1.shape
    M = H2 * W2
    kernel = functools.partial(_pool_conv_stats_kernel, W2, M)
    return pl.pallas_call(
        kernel,
        grid=(N,),
        in_specs=[
            pl.BlockSpec((1, H2, 2, W2, cin2), lambda n: (n, 0, 0, 0, 0)),
            pl.BlockSpec((9, Cin, Cmid), lambda n: (0, 0, 0)),   # resident weights
        ],
        out_specs=(
            pl.BlockSpec((1, M, Cmid), lambda n: (n, 0, 0)),
            pl.BlockSpec((1, 1, Cmid), lambda n: (n, 0, 0)),
            pl.BlockSpec((1, 1, Cmid), lambda n: (n, 0, 0)),
        ),
        out_shape=(
            jax.ShapeDtypeStruct((N, M, Cmid), jnp.bfloat16),
            jax.ShapeDtypeStruct((N, 1, Cmid), jnp.float32),
            jax.ShapeDtypeStruct((N, 1, Cmid), jnp.float32),
        ),
        scratch_shapes=[
            pltpu.VMEM(((H2 + 4) * W2, Cin), jnp.float32),   # flat H-padded act.
            pltpu.VMEM((M, Cmid), jnp.float32),              # f32 accumulator
        ],
        compiler_params=_compiler_params(),
    )(x_split, w1)


def _conv2_call(z1, scale1, shift1, w2, H2, W2):
    N, M, Cmid = z1.shape
    Cout = w2.shape[-1]
    kernel = functools.partial(_bnrelu_conv_stats_kernel, W2, M)
    return pl.pallas_call(
        kernel,
        grid=(N,),
        in_specs=[
            pl.BlockSpec((1, M, Cmid), lambda n: (n, 0, 0)),
            pl.BlockSpec((1, Cmid), lambda n: (0, 0)),
            pl.BlockSpec((1, Cmid), lambda n: (0, 0)),
            pl.BlockSpec((9, Cmid, Cout), lambda n: (0, 0, 0)),  # resident weights
        ],
        out_specs=(
            pl.BlockSpec((1, M, Cout), lambda n: (n, 0, 0)),
            pl.BlockSpec((1, 1, Cout), lambda n: (n, 0, 0)),
            pl.BlockSpec((1, 1, Cout), lambda n: (n, 0, 0)),
        ),
        out_shape=(
            jax.ShapeDtypeStruct((N, M, Cout), jnp.bfloat16),
            jax.ShapeDtypeStruct((N, 1, Cout), jnp.float32),
            jax.ShapeDtypeStruct((N, 1, Cout), jnp.float32),
        ),
        scratch_shapes=[
            pltpu.VMEM(((H2 + 4) * W2, Cmid), jnp.float32),
            pltpu.VMEM((M, Cout), jnp.float32),
        ],
        compiler_params=_compiler_params(),
    )(z1, scale1, shift1, w2)


def _bnrelu_apply_call(z, scale, shift):
    N, M, C = z.shape
    return pl.pallas_call(
        _bnrelu_kernel,
        grid=(N,),
        in_specs=[
            pl.BlockSpec((1, M, C), lambda n: (n, 0, 0)),
            pl.BlockSpec((1, C), lambda n: (0, 0)),
            pl.BlockSpec((1, C), lambda n: (0, 0)),
        ],
        out_specs=pl.BlockSpec((1, M, C), lambda n: (n, 0, 0)),
        out_shape=jax.ShapeDtypeStruct((N, M, C), jnp.float32),
        compiler_params=_compiler_params(),
    )(z, scale, shift)


# ---------------------------------------------------------------------------
# BatchNorm finalize (tiny per-channel math between kernels)
# ---------------------------------------------------------------------------
def _bn_scale_shift(ssum, ssq, count, gamma, beta):
    C = gamma.shape[0]
    s = jnp.sum(ssum, axis=0)                 # (1, C)
    q = jnp.sum(ssq, axis=0)                  # (1, C)
    mean = s / count
    var = q / count - mean * mean             # biased (training-mode) variance
    inv = jax.lax.rsqrt(var + _BN_EPS)
    scale = gamma.reshape(1, C) * inv
    shift = beta.reshape(1, C) - mean * scale
    return scale, shift


# ---------------------------------------------------------------------------
# Public forward
# ---------------------------------------------------------------------------
@jax.jit
def down_forward(x_nchw, params):
    """Down(in_channels, out_channels).forward for NCHW float32 input."""
    x = jnp.transpose(x_nchw, (0, 2, 3, 1))   # NCHW -> NHWC
    N, H, W, Cin = x.shape
    assert H % 2 == 0 and W % 2 == 0, "MaxPool2d(2) requires even H and W"
    H2, W2 = H // 2, W // 2
    M = H2 * W2
    Cmid = params["w1"].shape[0]
    Cout = params["w2"].shape[0]

    # Free contiguous reshape: (N, H2, 2, W2, 2*Cin) -- pooling pairs exposed
    # as a major axis (rows) and as the two lane-halves (columns).
    x_split = x.reshape(N, H2, 2, W2, 2 * Cin)

    # (cout, cin, kh, kw) -> (kh, kw, cin, cout) -> (9, cin, cout), bf16 for MXU.
    w1 = jnp.transpose(params["w1"], (2, 3, 1, 0)).reshape(9, Cin, Cmid)
    w2 = jnp.transpose(params["w2"], (2, 3, 1, 0)).reshape(9, Cmid, Cout)
    w1 = w1.astype(jnp.bfloat16)
    w2 = w2.astype(jnp.bfloat16)

    count = N * M
    z1, s1, q1 = _conv1_call(x_split, w1, H2, W2)
    scale1, shift1 = _bn_scale_shift(s1, q1, count, params["g1"], params["bb1"])
    z2, s2, q2 = _conv2_call(z1, scale1, shift1, w2, H2, W2)
    scale2, shift2 = _bn_scale_shift(s2, q2, count, params["g2"], params["bb2"])
    y = _bnrelu_apply_call(z2, scale2, shift2)         # (N, M, Cout) f32
    y = y.reshape(N, H2, W2, Cout)
    return jnp.transpose(y, (0, 3, 1, 2))              # NHWC -> NCHW


# ---------------------------------------------------------------------------
# Deterministic parameter init (shapes from Down(in_channels, out_channels))
# ---------------------------------------------------------------------------
def init_down_params(key, in_channels, out_channels):
    mid = out_channels
    k = jax.random.split(key, 4)
    scale1 = 1.0 / jnp.sqrt(9.0 * in_channels)
    scale2 = 1.0 / jnp.sqrt(9.0 * mid)
    return {
        "w1": jax.random.normal(k[0], (mid, in_channels, 3, 3), jnp.float32) * scale1,
        "b1": jax.random.normal(k[1], (mid,), jnp.float32) * scale1,
        "g1": jnp.ones((mid,), jnp.float32),
        "bb1": jnp.zeros((mid,), jnp.float32),
        "w2": jax.random.normal(k[2], (out_channels, mid, 3, 3), jnp.float32) * scale2,
        "b2": jax.random.normal(k[3], (out_channels,), jnp.float32) * scale2,
        "g2": jnp.ones((out_channels,), jnp.float32),
        "bb2": jnp.zeros((out_channels,), jnp.float32),
    }


# ---------------------------------------------------------------------------
# Pure-JAX f32 reference (faithful to the PyTorch module, incl. conv bias)
# ---------------------------------------------------------------------------
def _ref_conv_bn_relu(x_nhwc, w_oihw, b, gamma, beta):
    y = jax.lax.conv_general_dilated(
        x_nhwc,
        jnp.transpose(w_oihw, (2, 3, 1, 0)),
        window_strides=(1, 1),
        padding="SAME",
        dimension_numbers=("NHWC", "HWIO", "NHWC"),
    )
    y = y + b
    mean = y.mean(axis=(0, 1, 2))
    var = ((y - mean) ** 2).mean(axis=(0, 1, 2))
    y = (y - mean) / jnp.sqrt(var + _BN_EPS) * gamma + beta
    return jnp.maximum(y, 0.0)


def _ref_down(x_nchw, params):
    x = jnp.transpose(x_nchw, (0, 2, 3, 1))
    N, H, W, C = x.shape
    x = x.reshape(N, H // 2, 2, W // 2, 2, C).max(axis=(2, 4))
    x = _ref_conv_bn_relu(x, params["w1"], params["b1"], params["g1"], params["bb1"])
    x = _ref_conv_bn_relu(x, params["w2"], params["b2"], params["g2"], params["bb2"])
    return jnp.transpose(x, (0, 3, 1, 2))


# ---------------------------------------------------------------------------
if __name__ == "__main__":
    key = jax.random.PRNGKey(0)
    kx, kp = jax.random.split(key)

    in_channels, out_channels = 4, 8
    x = jax.random.normal(kx, (2, in_channels, 16, 16), jnp.float32)  # NCHW
    params = init_down_params(kp, in_channels, out_channels)

    out = jax.block_until_ready(down_forward(x, params))
    assert out.shape == (2, out_channels, 8, 8), out.shape

    ref = jax.block_until_ready(_ref_down(x, params))
    err = jnp.abs(out - ref)
    max_err = float(err.max())
    mean_err = float(err.mean())
    # bf16 MXU operands + bf16 inter-conv intermediates (per perf review) widen
    # the tolerance vs. the pure-f32 reference; typical error is a few 1e-3.
    assert mean_err < 1e-2, (mean_err, max_err)
    assert jnp.allclose(out, ref, atol=5e-2, rtol=5e-2), (max_err, mean_err)

    print("KERNEL_OK")
</pallas_src>

<mosaic_0001>
module attributes {stable_mosaic.version = 11 : i64} {
  func.func @_pool_conv_stats_kernel(%arg0: i32, %arg1: memref<1x8x2x8x8xf32, #tpu.memory_space<vmem>>, %arg2: memref<9x4x8xbf16, #tpu.memory_space<vmem>>, %arg3: memref<1x64x8xbf16, #tpu.memory_space<vmem>>, %arg4: memref<1x1x8xf32, #tpu.memory_space<vmem>>, %arg5: memref<1x1x8xf32, #tpu.memory_space<vmem>>, %arg6: memref<96x4xf32, #tpu.memory_space<vmem>>, %arg7: memref<64x8xf32, #tpu.memory_space<vmem>>) attributes {dimension_semantics = [#tpu.dimension_semantics<parallel>], iteration_bounds = array<i64: 2>, scalar_prefetch = 0 : i64, scratch_operands = 2 : i64, tpu.core_type = #tpu.core_type<tc>, window_params = [{transform_indices = @transform_0, window_bounds = array<i64: 1, 8, 2, 8, 8>}, {pipeline_mode = #tpu.pipeline_mode<synchronous>, transform_indices = @transform_1, window_bounds = array<i64: 9, 4, 8>}, {transform_indices = @transform_2, window_bounds = array<i64: 1, 64, 8>}, {transform_indices = @transform_3, window_bounds = array<i64: 1, 1, 8>}, {transform_indices = @transform_4, window_bounds = array<i64: 1, 1, 8>}]} {
    %cst = arith.constant 0.000000e+00 : f32
    %0 = vector.broadcast %cst : f32 to vector<16x4xf32>
    %c0 = arith.constant 0 : index
    %c0_0 = arith.constant 0 : index
    %1 = vector.load %arg6[%c0, %c0_0] : memref<96x4xf32, #tpu.memory_space<vmem>>, vector<16x4xf32>
    tpu.vector_store %arg6[%c0, %c0_0], %0 {strides = array<i32>} : memref<96x4xf32, #tpu.memory_space<vmem>>, vector<16x4xf32>,
    %c80 = arith.constant 80 : index
    %c0_1 = arith.constant 0 : index
    %2 = vector.load %arg6[%c80, %c0_1] : memref<96x4xf32, #tpu.memory_space<vmem>>, vector<16x4xf32>
    tpu.vector_store %arg6[%c80, %c0_1], %0 {strides = array<i32>} : memref<96x4xf32, #tpu.memory_space<vmem>>, vector<16x4xf32>,
    %c0_2 = arith.constant 0 : index
    %c0_3 = arith.constant 0 : index
    %c0_4 = arith.constant 0 : index
    %c0_5 = arith.constant 0 : index
    %c0_6 = arith.constant 0 : index
    %3 = vector.load %arg1[%c0_2, %c0_3, %c0_4, %c0_5, %c0_6] : memref<1x8x2x8x8xf32, #tpu.memory_space<vmem>>, vector<1x8x2x8x8xf32>
    %4 = vector.shape_cast %3 : vector<1x8x2x8x8xf32> to vector<8x2x8x8xf32>
    %5 = vector.extract_strided_slice %4 {offsets = [0, 0, 0, 0], sizes = [8, 1, 8, 8], strides = [1, 1, 1, 1]} : vector<8x2x8x8xf32> to vector<8x1x8x8xf32>
    %6 = vector.shape_cast %5 : vector<8x1x8x8xf32> to vector<8x8x8xf32>
    %7 = vector.extract_strided_slice %4 {offsets = [0, 1, 0, 0], sizes = [8, 1, 8, 8], strides = [1, 1, 1, 1]} : vector<8x2x8x8xf32> to vector<8x1x8x8xf32>
    %8 = vector.shape_cast %7 : vector<8x1x8x8xf32> to vector<8x8x8xf32>
    %9 = arith.maximumf %6, %8 : vector<8x8x8xf32>
    %10 = vector.extract_strided_slice %9 {offsets = [0, 0, 0], sizes = [8, 8, 4], strides = [1, 1, 1]} : vector<8x8x8xf32> to vector<8x8x4xf32>
    %11 = vector.extract_strided_slice %9 {offsets = [0, 0, 4], sizes = [8, 8, 4], strides = [1, 1, 1]} : vector<8x8x8xf32> to vector<8x8x4xf32>
    %12 = arith.maximumf %10, %11 : vector<8x8x4xf32>
    %13 = vector.shape_cast %12 : vector<8x8x4xf32> to vector<64x4xf32>
    %c16 = arith.constant 16 : index
    %c0_7 = arith.constant 0 : index
    %14 = vector.load %arg6[%c16, %c0_7] : memref<96x4xf32, #tpu.memory_space<vmem>>, vector<64x4xf32>
    tpu.vector_store %arg6[%c16, %c0_7], %13 {strides = array<i32>} : memref<96x4xf32, #tpu.memory_space<vmem>>, vector<64x4xf32>,
    %15 = tpu.iota {dimensions = array<i32: 0>} : vector<64x1xi32>
    %c8_i32 = arith.constant 8 : i32
    %c0_i32 = arith.constant 0 : i32
    %16 = arith.cmpi eq, %c8_i32, %c0_i32 : i32
    %c1_i32 = arith.constant 1 : i32
    %17 = arith.select %16, %c1_i32, %c8_i32 : i32
    %18 = vector.broadcast %17 : i32 to vector<64x1xi32>
    %19 = arith.remsi %15, %18 : vector<64x1xi32>
    %c0_i32_8 = arith.constant 0 : i32
    %20 = vector.broadcast %c0_i32_8 : i32 to vector<64x1xi32>
    %21 = arith.cmpi ne, %19, %20 : vector<64x1xi32>
    %c0_i32_9 = arith.constant 0 : i32
    %22 = vector.broadcast %c0_i32_9 : i32 to vector<64x1xi32>
    %23 = arith.cmpi slt, %19, %22 : vector<64x1xi32>
    %c0_i32_10 = arith.constant 0 : i32
    %24 = arith.cmpi slt, %17, %c0_i32_10 : i32
    %25 = vector.broadcast %24 : i1 to vector<64x1xi1>
    %26 = vector.broadcast %25 : vector<64x1xi1> to vector<64x1xi1>
    %27 = arith.xori %23, %26 : vector<64x1xi1>
    %28 = arith.andi %27, %21 : vector<64x1xi1>
    %29 = vector.broadcast %17 : i32 to vector<64x1xi32>
    %30 = arith.addi %19, %29 : vector<64x1xi32>
    %31 = arith.select %28, %30, %19 : vector<64x1xi1>, vector<64x1xi32>
    %c0_i32_11 = arith.constant 0 : i32
    %32 = vector.broadcast %c0_i32_11 : i32 to vector<64x1xi32>
    %33 = arith.cmpi sgt, %31, %32 : vector<64x1xi32>
    %c7_i32 = arith.constant 7 : i32
    %34 = vector.broadcast %c7_i32 : i32 to vector<64x1xi32>
    %35 = arith.cmpi slt, %31, %34 : vector<64x1xi32>
    %c7 = arith.constant 7 : index
    %c0_12 = arith.constant 0 : index
    %36 = vector.load %arg6[%c7, %c0_12] : memref<96x4xf32, #tpu.memory_space<vmem>>, vector<64x4xf32>
    %cst_13 = arith.constant 0.000000e+00 : f32
    %37 = vector.broadcast %cst_13 : f32 to vector<64x4xf32>
    %38 = vector.shape_cast %33 : vector<64x1xi1> to vector<64x1xi1>
    %39 = vector.broadcast %38 : vector<64x1xi1> to vector<64x4xi1>
    %40 = arith.select %39, %36, %37 : vector<64x4xi1>, vector<64x4xf32>
    %41 = arith.truncf %40 : vector<64x4xf32> to vector<64x4xbf16>
    %c0_14 = arith.constant 0 : index
    %c0_15 = arith.constant 0 : index
    %c0_16 = arith.constant 0 : index
    %42 = vector.load %arg2[%c0_14, %c0_15, %c0_16] : memref<9x4x8xbf16, #tpu.memory_space<vmem>>, vector<1x4x8xbf16>
    %43 = vector.shape_cast %42 : vector<1x4x8xbf16> to vector<4x8xbf16>
    %cst_17 = arith.constant dense<0.000000e+00> : vector<64x8xf32>
    %44 = tpu.matmul %41, %43, %cst_17 {dimension_numbers = #tpu.dot_dimension_numbers<[1], [0], [0], [1], [0, 0, 1, 1], [], []>} : vector<64x4xbf16>, vector<4x8xbf16>, vector<64x8xf32> -> vector<64x8xf32>
    %c0_18 = arith.constant 0 : index
    %c0_19 = arith.constant 0 : index
    %45 = vector.load %arg7[%c0_18, %c0_19] : memref<64x8xf32, #tpu.memory_space<vmem>>, vector<64x8xf32>
    tpu.vector_store %arg7[%c0_18, %c0_19], %44 {strides = array<i32>} : memref<64x8xf32, #tpu.memory_space<vmem>>, vector<64x8xf32>,
    %c8 = arith.constant 8 : index
    %c0_20 = arith.constant 0 : index
    %46 = vector.load %arg6[%c8, %c0_20] : memref<96x4xf32, #tpu.memory_space<vmem>>, vector<64x4xf32>
    %47 = arith.truncf %46 : vector<64x4xf32> to vector<64x4xbf16>
    %c1 = arith.constant 1 : index
    %c0_21 = arith.constant 0 : index
    %c0_22 = arith.constant 0 : index
    %48 = vector.load %arg2[%c1, %c0_21, %c0_22] : memref<9x4x8xbf16, #tpu.memory_space<vmem>>, vector<1x4x8xbf16>
    %49 = vector.shape_cast %48 : vector<1x4x8xbf16> to vector<4x8xbf16>
    %cst_23 = arith.constant dense<0.000000e+00> : vector<64x8xf32>
    %50 = tpu.matmul %47, %49, %cst_23 {dimension_numbers = #tpu.dot_dimension_numbers<[1], [0], [0], [1], [0, 0, 1, 1], [], []>} : vector<64x4xbf16>, vector<4x8xbf16>, vector<64x8xf32> -> vector<64x8xf32>
    %c0_24 = arith.constant 0 : index
    %c0_25 = arith.constant 0 : index
    %51 = vector.load %arg7[%c0_24, %c0_25] : memref<64x8xf32, #tpu.memory_space<vmem>>, vector<64x8xf32>
    %52 = arith.addf %51, %50 : vector<64x8xf32>
    %c0_26 = arith.constant 0 : index
    %c0_27 = arith.constant 0 : index
    %53 = vector.load %arg7[%c0_26, %c0_27] : memref<64x8xf32, #tpu.memory_space<vmem>>, vector<64x8xf32>
    tpu.vector_store %arg7[%c0_26, %c0_27], %52 {strides = array<i32>} : memref<64x8xf32, #tpu.memory_space<vmem>>, vector<64x8xf32>,
    %c9 = arith.constant 9 : index
    %c0_28 = arith.constant 0 : index
    %54 = vector.load %arg6[%c9, %c0_28] : memref<96x4xf32, #tpu.memory_space<vmem>>, vector<64x4xf32>
    %cst_29 = arith.constant 0.000000e+00 : f32
    %55 = vector.broadcast %cst_29 : f32 to vector<64x4xf32>
    %56 = vector.shape_cast %35 : vector<64x1xi1> to vector<64x1xi1>
    %57 = vector.broadcast %56 : vector<64x1xi1> to vector<64x4xi1>
    %58 = arith.select %57, %54, %55 : vector<64x4xi1>, vector<64x4xf32>
    %59 = arith.truncf %58 : vector<64x4xf32> to vector<64x4xbf16>
    %c2 = arith.constant 2 : index
    %c0_30 = arith.constant 0 : index
    %c0_31 = arith.constant 0 : index
    %60 = vector.load %arg2[%c2, %c0_30, %c0_31] : memref<9x4x8xbf16, #tpu.memory_space<vmem>>, vector<1x4x8xbf16>
    %61 = vector.shape_cast %60 : vector<1x4x8xbf16> to vector<4x8xbf16>
    %cst_32 = arith.constant dense<0.000000e+00> : vector<64x8xf32>
    %62 = tpu.matmul %59, %61, %cst_32 {dimension_numbers = #tpu.dot_dimension_numbers<[1], [0], [0], [1], [0, 0, 1, 1], [], []>} : vector<64x4xbf16>, vector<4x8xbf16>, vector<64x8xf32> -> vector<64x8xf32>
    %c0_33 = arith.constant 0 : index
    %c0_34 = arith.constant 0 : index
    %63 = vector.load %arg7[%c0_33, %c0_34] : memref<64x8xf32, #tpu.memory_space<vmem>>, vector<64x8xf32>
    %64 = arith.addf %63, %62 : vector<64x8xf32>
    %c0_35 = arith.constant 0 : index
    %c0_36 = arith.constant 0 : index
    %65 = vector.load %arg7[%c0_35, %c0_36] : memref<64x8xf32, #tpu.memory_space<vmem>>, vector<64x8xf32>
    tpu.vector_store %arg7[%c0_35, %c0_36], %64 {strides = array<i32>} : memref<64x8xf32, #tpu.memory_space<vmem>>, vector<64x8xf32>,
    %c15 = arith.constant 15 : index
    %c0_37 = arith.constant 0 : index
    %66 = vector.load %arg6[%c15, %c0_37] : memref<96x4xf32, #tpu.memory_space<vmem>>, vector<64x4xf32>
    %cst_38 = arith.constant 0.000000e+00 : f32
    %67 = vector.broadcast %cst_38 : f32 to vector<64x4xf32>
    %68 = vector.shape_cast %33 : vector<64x1xi1> to vector<64x1xi1>
    %69 = vector.broadcast %68 : vector<64x1xi1> to vector<64x4xi1>
    %70 = arith.select %69, %66, %67 : vector<64x4xi1>, vector<64x4xf32>
    %71 = arith.truncf %70 : vector<64x4xf32> to vector<64x4xbf16>
    %c3 = arith.constant 3 : index
    %c0_39 = arith.constant 0 : index
    %c0_40 = arith.constant 0 : index
    %72 = vector.load %arg2[%c3, %c0_39, %c0_40] : memref<9x4x8xbf16, #tpu.memory_space<vmem>>, vector<1x4x8xbf16>
    %73 = vector.shape_cast %72 : vector<1x4x8xbf16> to vector<4x8xbf16>
    %cst_41 = arith.constant dense<0.000000e+00> : vector<64x8xf32>
    %74 = tpu.matmul %71, %73, %cst_41 {dimension_numbers = #tpu.dot_dimension_numbers<[1], [0], [0], [1], [0, 0, 1, 1], [], []>} : vector<64x4xbf16>, vector<4x8xbf16>, vector<64x8xf32> -> vector<64x8xf32>
    %c0_42 = arith.constant 0 : index
    %c0_43 = arith.constant 0 : index
    %75 = vector.load %arg7[%c0_42, %c0_43] : memref<64x8xf32, #tpu.memory_space<vmem>>, vector<64x8xf32>
    %76 = arith.addf %75, %74 : vector<64x8xf32>
    %c0_44 = arith.constant 0 : index
    %c0_45 = arith.constant 0 : index
    %77 = vector.load %arg7[%c0_44, %c0_45] : memref<64x8xf32, #tpu.memory_space<vmem>>, vector<64x8xf32>
    tpu.vector_store %arg7[%c0_44, %c0_45], %76 {strides = array<i32>} : memref<64x8xf32, #tpu.memory_space<vmem>>, vector<64x8xf32>,
    %c16_46 = arith.constant 16 : index
    %c0_47 = arith.constant 0 : index
    %78 = vector.load %arg6[%c16_46, %c0_47] : memref<96x4xf32, #tpu.memory_space<vmem>>, vector<64x4xf32>
    %79 = arith.truncf %78 : vector<64x4xf32> to vector<64x4xbf16>
    %c4 = arith.constant 4 : index
    %c0_48 = arith.constant 0 : index
    %c0_49 = arith.constant 0 : index
    %80 = vector.load %arg2[%c4, %c0_48, %c0_49] : memref<9x4x8xbf16, #tpu.memory_space<vmem>>, vector<1x4x8xbf16>
    %81 = vector.shape_cast %80 : vector<1x4x8xbf16> to vector<4x8xbf16>
    %cst_50 = arith.constant dense<0.000000e+00> : vector<64x8xf32>
    %82 = tpu.matmul %79, %81, %cst_50 {dimension_numbers = #tpu.dot_dimension_numbers<[1], [0], [0], [1], [0, 0, 1, 1], [], []>} : vector<64x4xbf16>, vector<4x8xbf16>, vector<64x8xf32> -> vector<64x8xf32>
    %c0_51 = arith.constant 0 : index
    %c0_52 = arith.constant 0 : index
    %83 = vector.load %arg7[%c0_51, %c0_52] : memref<64x8xf32, #tpu.memory_space<vmem>>, vector<64x8xf32>
    %84 = arith.addf %83, %82 : vector<64x8xf32>
    %c0_53 = arith.constant 0 : index
    %c0_54 = arith.constant 0 : index
    %85 = vector.load %arg7[%c0_53, %c0_54] : memref<64x8xf32, #tpu.memory_space<vmem>>, vector<64x8xf32>
    tpu.vector_store %arg7[%c0_53, %c0_54], %84 {strides = array<i32>} : memref<64x8xf32, #tpu.memory_space<vmem>>, vector<64x8xf32>,
    %c17 = arith.constant 17 : index
    %c0_55 = arith.constant 0 : index
    %86 = vector.load %arg6[%c17, %c0_55] : memref<96x4xf32, #tpu.memory_space<vmem>>, vector<64x4xf32>
    %cst_56 = arith.constant 0.000000e+00 : f32
    %87 = vector.broadcast %cst_56 : f32 to vector<64x4xf32>
    %88 = vector.shape_cast %35 : vector<64x1xi1> to vector<64x1xi1>
    %89 = vector.broadcast %88 : vector<64x1xi1> to vector<64x4xi1>
    %90 = arith.select %89, %86, %87 : vector<64x4xi1>, vector<64x4xf32>
    %91 = arith.truncf %90 : vector<64x4xf32> to vector<64x4xbf16>
    %c5 = arith.constant 5 : index
    %c0_57 = arith.constant 0 : index
    %c0_58 = arith.constant 0 : index
    %92 = vector.load %arg2[%c5, %c0_57, %c0_58] : memref<9x4x8xbf16, #tpu.memory_space<vmem>>, vector<1x4x8xbf16>
    %93 = vector.shape_cast %92 : vector<1x4x8xbf16> to vector<4x8xbf16>
    %cst_59 = arith.constant dense<0.000000e+00> : vector<64x8xf32>
    %94 = tpu.matmul %91, %93, %cst_59 {dimension_numbers = #tpu.dot_dimension_numbers<[1], [0], [0], [1], [0, 0, 1, 1], [], []>} : vector<64x4xbf16>, vector<4x8xbf16>, vector<64x8xf32> -> vector<64x8xf32>
    %c0_60 = arith.constant 0 : index
    %c0_61 = arith.constant 0 : index
    %95 = vector.load %arg7[%c0_60, %c0_61] : memref<64x8xf32, #tpu.memory_space<vmem>>, vector<64x8xf32>
    %96 = arith.addf %95, %94 : vector<64x8xf32>
    %c0_62 = arith.constant 0 : index
    %c0_63 = arith.constant 0 : index
    %97 = vector.load %arg7[%c0_62, %c0_63] : memref<64x8xf32, #tpu.memory_space<vmem>>, vector<64x8xf32>
    tpu.vector_store %arg7[%c0_62, %c0_63], %96 {strides = array<i32>} : memref<64x8xf32, #tpu.memory_space<vmem>>, vector<64x8xf32>,
    %c23 = arith.constant 23 : index
    %c0_64 = arith.constant 0 : index
    %98 = vector.load %arg6[%c23, %c0_64] : memref<96x4xf32, #tpu.memory_space<vmem>>, vector<64x4xf32>
    %cst_65 = arith.constant 0.000000e+00 : f32
    %99 = vector.broadcast %cst_65 : f32 to vector<64x4xf32>
    %100 = vector.shape_cast %33 : vector<64x1xi1> to vector<64x1xi1>
    %101 = vector.broadcast %100 : vector<64x1xi1> to vector<64x4xi1>
    %102 = arith.select %101, %98, %99 : vector<64x4xi1>, vector<64x4xf32>
    %103 = arith.truncf %102 : vector<64x4xf32> to vector<64x4xbf16>
    %c6 = arith.constant 6 : index
    %c0_66 = arith.constant 0 : index
    %c0_67 = arith.constant 0 : index
    %104 = vector.load %arg2[%c6, %c0_66, %c0_67] : memref<9x4x8xbf16, #tpu.memory_space<vmem>>, vector<1x4x8xbf16>
    %105 = vector.shape_cast %104 : vector<1x4x8xbf16> to vector<4x8xbf16>
    %cst_68 = arith.constant dense<0.000000e+00> : vector<64x8xf32>
    %106 = tpu.matmul %103, %105, %cst_68 {dimension_numbers = #tpu.dot_dimension_numbers<[1], [0], [0], [1], [0, 0, 1, 1], [], []>} : vector<64x4xbf16>, vector<4x8xbf16>, vector<64x8xf32> -> vector<64x8xf32>
    %c0_69 = arith.constant 0 : index
    %c0_70 = arith.constant 0 : index
    %107 = vector.load %arg7[%c0_69, %c0_70] : memref<64x8xf32, #tpu.memory_space<vmem>>, vector<64x8xf32>
    %108 = arith.addf %107, %106 : vector<64x8xf32>
    %c0_71 = arith.constant 0 : index
    %c0_72 = arith.constant 0 : index
    %109 = vector.load %arg7[%c0_71, %c0_72] : memref<64x8xf32, #tpu.memory_space<vmem>>, vector<64x8xf32>
    tpu.vector_store %arg7[%c0_71, %c0_72], %108 {strides = array<i32>} : memref<64x8xf32, #tpu.memory_space<vmem>>, vector<64x8xf32>,
    %c24 = arith.constant 24 : index
    %c0_73 = arith.constant 0 : index
    %110 = vector.load %arg6[%c24, %c0_73] : memref<96x4xf32, #tpu.memory_space<vmem>>, vector<64x4xf32>
    %111 = arith.truncf %110 : vector<64x4xf32> to vector<64x4xbf16>
    %c7_74 = arith.constant 7 : index
    %c0_75 = arith.constant 0 : index
    %c0_76 = arith.constant 0 : index
    %112 = vector.load %arg2[%c7_74, %c0_75, %c0_76] : memref<9x4x8xbf16, #tpu.memory_space<vmem>>, vector<1x4x8xbf16>
    %113 = vector.shape_cast %112 : vector<1x4x8xbf16> to vector<4x8xbf16>
    %cst_77 = arith.constant dense<0.000000e+00> : vector<64x8xf32>
    %114 = tpu.matmul %111, %113, %cst_77 {dimension_numbers = #tpu.dot_dimension_numbers<[1], [0], [0], [1], [0, 0, 1, 1], [], []>} : vector<64x4xbf16>, vector<4x8xbf16>, vector<64x8xf32> -> vector<64x8xf32>
    %c0_78 = arith.constant 0 : index
    %c0_79 = arith.constant 0 : index
    %115 = vector.load %arg7[%c0_78, %c0_79] : memref<64x8xf32, #tpu.memory_space<vmem>>, vector<64x8xf32>
    %116 = arith.addf %115, %114 : vector<64x8xf32>
    %c0_80 = arith.constant 0 : index
    %c0_81 = arith.constant 0 : index
    %117 = vector.load %arg7[%c0_80, %c0_81] : memref<64x8xf32, #tpu.memory_space<vmem>>, vector<64x8xf32>
    tpu.vector_store %arg7[%c0_80, %c0_81], %116 {strides = array<i32>} : memref<64x8xf32, #tpu.memory_space<vmem>>, vector<64x8xf32>,
    %c25 = arith.constant 25 : index
    %c0_82 = arith.constant 0 : index
    %118 = vector.load %arg6[%c25, %c0_82] : memref<96x4xf32, #tpu.memory_space<vmem>>, vector<64x4xf32>
    %cst_83 = arith.constant 0.000000e+00 : f32
    %119 = vector.broadcast %cst_83 : f32 to vector<64x4xf32>
    %120 = vector.shape_cast %35 : vector<64x1xi1> to vector<64x1xi1>
    %121 = vector.broadcast %120 : vector<64x1xi1> to vector<64x4xi1>
    %122 = arith.select %121, %118, %119 : vector<64x4xi1>, vector<64x4xf32>
    %123 = arith.truncf %122 : vector<64x4xf32> to vector<64x4xbf16>
    %c8_84 = arith.constant 8 : index
    %c0_85 = arith.constant 0 : index
    %c0_86 = arith.constant 0 : index
    %124 = vector.load %arg2[%c8_84, %c0_85, %c0_86] : memref<9x4x8xbf16, #tpu.memory_space<vmem>>, vector<1x4x8xbf16>
    %125 = vector.shape_cast %124 : vector<1x4x8xbf16> to vector<4x8xbf16>
    %cst_87 = arith.constant dense<0.000000e+00> : vector<64x8xf32>
    %126 = tpu.matmul %123, %125, %cst_87 {dimension_numbers = #tpu.dot_dimension_numbers<[1], [0], [0], [1], [0, 0, 1, 1], [], []>} : vector<64x4xbf16>, vector<4x8xbf16>, vector<64x8xf32> -> vector<64x8xf32>
    %c0_88 = arith.constant 0 : index
    %c0_89 = arith.constant 0 : index
    %127 = vector.load %arg7[%c0_88, %c0_89] : memref<64x8xf32, #tpu.memory_space<vmem>>, vector<64x8xf32>
    %128 = arith.addf %127, %126 : vector<64x8xf32>
    %c0_90 = arith.constant 0 : index
    %c0_91 = arith.constant 0 : index
    %129 = vector.load %arg7[%c0_90, %c0_91] : memref<64x8xf32, #tpu.memory_space<vmem>>, vector<64x8xf32>
    tpu.vector_store %arg7[%c0_90, %c0_91], %128 {strides = array<i32>} : memref<64x8xf32, #tpu.memory_space<vmem>>, vector<64x8xf32>,
    %c0_92 = arith.constant 0 : index
    %c0_93 = arith.constant 0 : index
    %130 = vector.load %arg7[%c0_92, %c0_93] : memref<64x8xf32, #tpu.memory_space<vmem>>, vector<64x8xf32>
    %131 = arith.truncf %130 : vector<64x8xf32> to vector<64x8xbf16>
    %c0_94 = arith.constant 0 : index
    %c0_95 = arith.constant 0 : index
    %c0_96 = arith.constant 0 : index
    %132 = vector.load %arg3[%c0_94, %c0_95, %c0_96] : memref<1x64x8xbf16, #tpu.memory_space<vmem>>, vector<1x64x8xbf16>
    %133 = vector.shape_cast %132 : vector<1x64x8xbf16> to vector<64x8xbf16>
    %134 = vector.shape_cast %131 : vector<64x8xbf16> to vector<1x64x8xbf16>
    tpu.vector_store %arg3[%c0_94, %c0_95, %c0_96], %134 {strides = array<i32>} : memref<1x64x8xbf16, #tpu.memory_space<vmem>>, vector<1x64x8xbf16>,
    %cst_97 = arith.constant dense<0.000000e+00> : vector<8xf32>
    %135 = vector.multi_reduction <add>, %130, %cst_97 [0] : vector<64x8xf32> to vector<8xf32>
    %136 = vector.shape_cast %135 : vector<8xf32> to vector<1x8xf32>
    %c0_98 = arith.constant 0 : index
    %c0_99 = arith.constant 0 : index
    %c0_100 = arith.constant 0 : index
    %137 = vector.load %arg4[%c0_98, %c0_99, %c0_100] : memref<1x1x8xf32, #tpu.memory_space<vmem>>, vector<1x1x8xf32>
    %138 = vector.shape_cast %137 : vector<1x1x8xf32> to vector<1x8xf32>
    %139 = vector.shape_cast %136 : vector<1x8xf32> to vector<1x1x8xf32>
    tpu.vector_store %arg4[%c0_98, %c0_99, %c0_100], %139 {strides = array<i32>} : memref<1x1x8xf32, #tpu.memory_space<vmem>>, vector<1x1x8xf32>,
    %140 = arith.mulf %130, %130 : vector<64x8xf32>
    %cst_101 = arith.constant dense<0.000000e+00> : vector<8xf32>
    %141 = vector.multi_reduction <add>, %140, %cst_101 [0] : vector<64x8xf32> to vector<8xf32>
    %142 = vector.shape_cast %141 : vector<8xf32> to vector<1x8xf32>
    %c0_102 = arith.constant 0 : index
    %c0_103 = arith.constant 0 : index
    %c0_104 = arith.constant 0 : index
    %143 = vector.load %arg5[%c0_102, %c0_103, %c0_104] : memref<1x1x8xf32, #tpu.memory_space<vmem>>, vector<1x1x8xf32>
    %144 = vector.shape_cast %143 : vector<1x1x8xf32> to vector<1x8xf32>
    %145 = vector.shape_cast %142 : vector<1x8xf32> to vector<1x1x8xf32>
    tpu.vector_store %arg5[%c0_102, %c0_103, %c0_104], %145 {strides = array<i32>} : memref<1x1x8xf32, #tpu.memory_space<vmem>>, vector<1x1x8xf32>,
    return
  }
  func.func @transform_0(%arg0: i32) -> (i32, i32, i32, i32, i32) {
    %c0_i32 = arith.constant 0 : i32
    %c0_i32_0 = arith.constant 0 : i32
    %c0_i32_1 = arith.constant 0 : i32
    %c0_i32_2 = arith.constant 0 : i32
    %c0_i32_3 = arith.constant 0 : i32
    return %arg0, %c0_i32, %c0_i32_0, %c0_i32_1, %c0_i32_2 : i32, i32, i32, i32, i32
  }
  func.func @transform_1(%arg0: i32) -> (i32, i32, i32) {
    %c0_i32 = arith.constant 0 : i32
    %c0_i32_0 = arith.constant 0 : i32
    %c0_i32_1 = arith.constant 0 : i32
    %c0_i32_2 = arith.constant 0 : i32
    return %c0_i32, %c0_i32_0, %c0_i32_1 : i32, i32, i32
  }
  func.func @transform_2(%arg0: i32) -> (i32, i32, i32) {
    %c0_i32 = arith.constant 0 : i32
    %c0_i32_0 = arith.constant 0 : i32
    %c0_i32_1 = arith.constant 0 : i32
    return %arg0, %c0_i32, %c0_i32_0 : i32, i32, i32
  }
  func.func @transform_3(%arg0: i32) -> (i32, i32, i32) {
    %c0_i32 = arith.constant 0 : i32
    %c0_i32_0 = arith.constant 0 : i32
    %c0_i32_1 = arith.constant 0 : i32
    return %arg0, %c0_i32, %c0_i32_0 : i32, i32, i32
  }
  func.func @transform_4(%arg0: i32) -> (i32, i32, i32) {
    %c0_i32 = arith.constant 0 : i32
    %c0_i32_0 = arith.constant 0 : i32
    %c0_i32_1 = arith.constant 0 : i32
    return %arg0, %c0_i32, %c0_i32_0 : i32, i32, i32
  }
}

module attributes {stable_mosaic.version = 11 : i64} {
  func.func @_bnrelu_kernel(%arg0: i32, %arg1: memref<1x64x8xbf16, #tpu.memory_space<vmem>>, %arg2: memref<1x8xf32, #tpu.memory_space<vmem>>, %arg3: memref<1x8xf32, #tpu.memory_space<vmem>>, %arg4: memref<1x64x8xf32, #tpu.memory_space<vmem>>) attributes {dimension_semantics = [#tpu.dimension_semantics<parallel>], iteration_bounds = array<i64: 2>, scalar_prefetch = 0 : i64, scratch_operands = 0 : i64, tpu.core_type = #tpu.core_type<tc>, window_params = [{transform_indices = @transform_0, window_bounds = array<i64: 1, 64, 8>}, {pipeline_mode = #tpu.pipeline_mode<synchronous>, transform_indices = @transform_1, window_bounds = array<i64: 1, 8>}, {pipeline_mode = #tpu.pipeline_mode<synchronous>, transform_indices = @transform_2, window_bounds = array<i64: 1, 8>}, {transform_indices = @transform_3, window_bounds = array<i64: 1, 64, 8>}]} {
    %c0 = arith.constant 0 : index
    %c0_0 = arith.constant 0 : index
    %c0_1 = arith.constant 0 : index
    %0 = vector.load %arg1[%c0, %c0_0, %c0_1] : memref<1x64x8xbf16, #tpu.memory_space<vmem>>, vector<1x64x8xbf16>
    %1 = vector.shape_cast %0 : vector<1x64x8xbf16> to vector<64x8xbf16>
    %2 = arith.extf %1 : vector<64x8xbf16> to vector<64x8xf32>
    %c0_2 = arith.constant 0 : index
    %c0_3 = arith.constant 0 : index
    %3 = vector.load %arg2[%c0_2, %c0_3] : memref<1x8xf32, #tpu.memory_space<vmem>>, vector<1x8xf32>
    %4 = vector.broadcast %3 : vector<1x8xf32> to vector<64x8xf32>
    %5 = arith.mulf %2, %4 : vector<64x8xf32>
    %c0_4 = arith.constant 0 : index
    %c0_5 = arith.constant 0 : index
    %6 = vector.load %arg3[%c0_4, %c0_5] : memref<1x8xf32, #tpu.memory_space<vmem>>, vector<1x8xf32>
    %7 = vector.broadcast %6 : vector<1x8xf32> to vector<64x8xf32>
    %8 = arith.addf %5, %7 : vector<64x8xf32>
    %cst = arith.constant 0.000000e+00 : f32
    %9 = vector.broadcast %cst : f32 to vector<64x8xf32>
    %10 = arith.maximumf %8, %9 : vector<64x8xf32>
    %c0_6 = arith.constant 0 : index
    %c0_7 = arith.constant 0 : index
    %c0_8 = arith.constant 0 : index
    %11 = vector.load %arg4[%c0_6, %c0_7, %c0_8] : memref<1x64x8xf32, #tpu.memory_space<vmem>>, vector<1x64x8xf32>
    %12 = vector.shape_cast %11 : vector<1x64x8xf32> to vector<64x8xf32>
    %13 = vector.shape_cast %10 : vector<64x8xf32> to vector<1x64x8xf32>
    tpu.vector_store %arg4[%c0_6, %c0_7, %c0_8], %13 {strides = array<i32>} : memref<1x64x8xf32, #tpu.memory_space<vmem>>, vector<1x64x8xf32>,
    return
  }
  func.func @transform_0(%arg0: i32) -> (i32, i32, i32) {
    %c0_i32 = arith.constant 0 : i32
    %c0_i32_0 = arith.constant 0 : i32
    %c0_i32_1 = arith.constant 0 : i32
    return %arg0, %c0_i32, %c0_i32_0 : i32, i32, i32
  }
  func.func @transform_1(%arg0: i32) -> (i32, i32) {
    %c0_i32 = arith.constant 0 : i32
    %c0_i32_0 = arith.constant 0 : i32
    %c0_i32_1 = arith.constant 0 : i32
    return %c0_i32, %c0_i32_0 : i32, i32
  }
  func.func @transform_2(%arg0: i32) -> (i32, i32) {
    %c0_i32 = arith.constant 0 : i32
    %c0_i32_0 = arith.constant 0 : i32
    %c0_i32_1 = arith.constant 0 : i32
    return %c0_i32, %c0_i32_0 : i32, i32
  }
  func.func @transform_3(%arg0: i32) -> (i32, i32, i32) {
    %c0_i32 = arith.constant 0 : i32
    %c0_i32_0 = arith.constant 0 : i32
    %c0_i32_1 = arith.constant 0 : i32
    return %arg0, %c0_i32, %c0_i32_0 : i32, i32, i32
  }
}

module attributes {stable_mosaic.version = 11 : i64} {
  func.func @_bnrelu_conv_stats_kernel(%arg0: i32, %arg1: memref<1x64x8xbf16, #tpu.memory_space<vmem>>, %arg2: memref<1x8xf32, #tpu.memory_space<vmem>>, %arg3: memref<1x8xf32, #tpu.memory_space<vmem>>, %arg4: memref<9x8x8xbf16, #tpu.memory_space<vmem>>, %arg5: memref<1x64x8xbf16, #tpu.memory_space<vmem>>, %arg6: memref<1x1x8xf32, #tpu.memory_space<vmem>>, %arg7: memref<1x1x8xf32, #tpu.memory_space<vmem>>, %arg8: memref<96x8xf32, #tpu.memory_space<vmem>>, %arg9: memref<64x8xf32, #tpu.memory_space<vmem>>) attributes {dimension_semantics = [#tpu.dimension_semantics<parallel>], iteration_bounds = array<i64: 2>, scalar_prefetch = 0 : i64, scratch_operands = 2 : i64, tpu.core_type = #tpu.core_type<tc>, window_params = [{transform_indices = @transform_0, window_bounds = array<i64: 1, 64, 8>}, {pipeline_mode = #tpu.pipeline_mode<synchronous>, transform_indices = @transform_1, window_bounds = array<i64: 1, 8>}, {pipeline_mode = #tpu.pipeline_mode<synchronous>, transform_indices = @transform_2, window_bounds = array<i64: 1, 8>}, {pipeline_mode = #tpu.pipeline_mode<synchronous>, transform_indices = @transform_3, window_bounds = array<i64: 9, 8, 8>}, {transform_indices = @transform_4, window_bounds = array<i64: 1, 64, 8>}, {transform_indices = @transform_5, window_bounds = array<i64: 1, 1, 8>}, {transform_indices = @transform_6, window_bounds = array<i64: 1, 1, 8>}]} {
    %cst = arith.constant 0.000000e+00 : f32
    %0 = vector.broadcast %cst : f32 to vector<16x8xf32>
    %c0 = arith.constant 0 : index
    %c0_0 = arith.constant 0 : index
    %1 = vector.load %arg8[%c0, %c0_0] : memref<96x8xf32, #tpu.memory_space<vmem>>, vector<16x8xf32>
    tpu.vector_store %arg8[%c0, %c0_0], %0 {strides = array<i32>} : memref<96x8xf32, #tpu.memory_space<vmem>>, vector<16x8xf32>,
    %c80 = arith.constant 80 : index
    %c0_1 = arith.constant 0 : index
    %2 = vector.load %arg8[%c80, %c0_1] : memref<96x8xf32, #tpu.memory_space<vmem>>, vector<16x8xf32>
    tpu.vector_store %arg8[%c80, %c0_1], %0 {strides = array<i32>} : memref<96x8xf32, #tpu.memory_space<vmem>>, vector<16x8xf32>,
    %c0_2 = arith.constant 0 : index
    %c0_3 = arith.constant 0 : index
    %c0_4 = arith.constant 0 : index
    %3 = vector.load %arg1[%c0_2, %c0_3, %c0_4] : memref<1x64x8xbf16, #tpu.memory_space<vmem>>, vector<1x64x8xbf16>
    %4 = vector.shape_cast %3 : vector<1x64x8xbf16> to vector<64x8xbf16>
    %5 = arith.extf %4 : vector<64x8xbf16> to vector<64x8xf32>
    %c0_5 = arith.constant 0 : index
    %c0_6 = arith.constant 0 : index
    %6 = vector.load %arg2[%c0_5, %c0_6] : memref<1x8xf32, #tpu.memory_space<vmem>>, vector<1x8xf32>
    %7 = vector.broadcast %6 : vector<1x8xf32> to vector<64x8xf32>
    %8 = arith.mulf %5, %7 : vector<64x8xf32>
    %c0_7 = arith.constant 0 : index
    %c0_8 = arith.constant 0 : index
    %9 = vector.load %arg3[%c0_7, %c0_8] : memref<1x8xf32, #tpu.memory_space<vmem>>, vector<1x8xf32>
    %10 = vector.broadcast %9 : vector<1x8xf32> to vector<64x8xf32>
    %11 = arith.addf %8, %10 : vector<64x8xf32>
    %cst_9 = arith.constant 0.000000e+00 : f32
    %12 = vector.broadcast %cst_9 : f32 to vector<64x8xf32>
    %13 = arith.maximumf %11, %12 : vector<64x8xf32>
    %c16 = arith.constant 16 : index
    %c0_10 = arith.constant 0 : index
    %14 = vector.load %arg8[%c16, %c0_10] : memref<96x8xf32, #tpu.memory_space<vmem>>, vector<64x8xf32>
    tpu.vector_store %arg8[%c16, %c0_10], %13 {strides = array<i32>} : memref<96x8xf32, #tpu.memory_space<vmem>>, vector<64x8xf32>,
    %15 = tpu.iota {dimensions = array<i32: 0>} : vector<64x1xi32>
    %c8_i32 = arith.constant 8 : i32
    %c0_i32 = arith.constant 0 : i32
    %16 = arith.cmpi eq, %c8_i32, %c0_i32 : i32
    %c1_i32 = arith.constant 1 : i32
    %17 = arith.select %16, %c1_i32, %c8_i32 : i32
    %18 = vector.broadcast %17 : i32 to vector<64x1xi32>
    %19 = arith.remsi %15, %18 : vector<64x1xi32>
    %c0_i32_11 = arith.constant 0 : i32
    %20 = vector.broadcast %c0_i32_11 : i32 to vector<64x1xi32>
    %21 = arith.cmpi ne, %19, %20 : vector<64x1xi32>
    %c0_i32_12 = arith.constant 0 : i32
    %22 = vector.broadcast %c0_i32_12 : i32 to vector<64x1xi32>
    %23 = arith.cmpi slt, %19, %22 : vector<64x1xi32>
    %c0_i32_13 = arith.constant 0 : i32
    %24 = arith.cmpi slt, %17, %c0_i32_13 : i32
    %25 = vector.broadcast %24 : i1 to vector<64x1xi1>
    %26 = vector.broadcast %25 : vector<64x1xi1> to vector<64x1xi1>
    %27 = arith.xori %23, %26 : vector<64x1xi1>
    %28 = arith.andi %27, %21 : vector<64x1xi1>
    %29 = vector.broadcast %17 : i32 to vector<64x1xi32>
    %30 = arith.addi %19, %29 : vector<64x1xi32>
    %31 = arith.select %28, %30, %19 : vector<64x1xi1>, vector<64x1xi32>
    %c0_i32_14 = arith.constant 0 : i32
    %32 = vector.broadcast %c0_i32_14 : i32 to vector<64x1xi32>
    %33 = arith.cmpi sgt, %31, %32 : vector<64x1xi32>
    %c7_i32 = arith.constant 7 : i32
    %34 = vector.broadcast %c7_i32 : i32 to vector<64x1xi32>
    %35 = arith.cmpi slt, %31, %34 : vector<64x1xi32>
    %c7 = arith.constant 7 : index
    %c0_15 = arith.constant 0 : index
    %36 = vector.load %arg8[%c7, %c0_15] : memref<96x8xf32, #tpu.memory_space<vmem>>, vector<64x8xf32>
    %cst_16 = arith.constant 0.000000e+00 : f32
    %37 = vector.broadcast %cst_16 : f32 to vector<64x8xf32>
    %38 = vector.shape_cast %33 : vector<64x1xi1> to vector<64x1xi1>
    %39 = vector.broadcast %38 : vector<64x1xi1> to vector<64x8xi1>
    %40 = arith.select %39, %36, %37 : vector<64x8xi1>, vector<64x8xf32>
    %41 = arith.truncf %40 : vector<64x8xf32> to vector<64x8xbf16>
    %c0_17 = arith.constant 0 : index
    %c0_18 = arith.constant 0 : index
    %c0_19 = arith.constant 0 : index
    %42 = vector.load %arg4[%c0_17, %c0_18, %c0_19] : memref<9x8x8xbf16, #tpu.memory_space<vmem>>, vector<1x8x8xbf16>
    %43 = vector.shape_cast %42 : vector<1x8x8xbf16> to vector<8x8xbf16>
    %cst_20 = arith.constant dense<0.000000e+00> : vector<64x8xf32>
    %44 = tpu.matmul %41, %43, %cst_20 {dimension_numbers = #tpu.dot_dimension_numbers<[1], [0], [0], [1], [0, 0, 1, 1], [], []>} : vector<64x8xbf16>, vector<8x8xbf16>, vector<64x8xf32> -> vector<64x8xf32>
    %c0_21 = arith.constant 0 : index
    %c0_22 = arith.constant 0 : index
    %45 = vector.load %arg9[%c0_21, %c0_22] : memref<64x8xf32, #tpu.memory_space<vmem>>, vector<64x8xf32>
    tpu.vector_store %arg9[%c0_21, %c0_22], %44 {strides = array<i32>} : memref<64x8xf32, #tpu.memory_space<vmem>>, vector<64x8xf32>,
    %c8 = arith.constant 8 : index
    %c0_23 = arith.constant 0 : index
    %46 = vector.load %arg8[%c8, %c0_23] : memref<96x8xf32, #tpu.memory_space<vmem>>, vector<64x8xf32>
    %47 = arith.truncf %46 : vector<64x8xf32> to vector<64x8xbf16>
    %c1 = arith.constant 1 : index
    %c0_24 = arith.constant 0 : index
    %c0_25 = arith.constant 0 : index
    %48 = vector.load %arg4[%c1, %c0_24, %c0_25] : memref<9x8x8xbf16, #tpu.memory_space<vmem>>, vector<1x8x8xbf16>
    %49 = vector.shape_cast %48 : vector<1x8x8xbf16> to vector<8x8xbf16>
    %cst_26 = arith.constant dense<0.000000e+00> : vector<64x8xf32>
    %50 = tpu.matmul %47, %49, %cst_26 {dimension_numbers = #tpu.dot_dimension_numbers<[1], [0], [0], [1], [0, 0, 1, 1], [], []>} : vector<64x8xbf16>, vector<8x8xbf16>, vector<64x8xf32> -> vector<64x8xf32>
    %c0_27 = arith.constant 0 : index
    %c0_28 = arith.constant 0 : index
    %51 = vector.load %arg9[%c0_27, %c0_28] : memref<64x8xf32, #tpu.memory_space<vmem>>, vector<64x8xf32>
    %52 = arith.addf %51, %50 : vector<64x8xf32>
    %c0_29 = arith.constant 0 : index
    %c0_30 = arith.constant 0 : index
    %53 = vector.load %arg9[%c0_29, %c0_30] : memref<64x8xf32, #tpu.memory_space<vmem>>, vector<64x8xf32>
    tpu.vector_store %arg9[%c0_29, %c0_30], %52 {strides = array<i32>} : memref<64x8xf32, #tpu.memory_space<vmem>>, vector<64x8xf32>,
    %c9 = arith.constant 9 : index
    %c0_31 = arith.constant 0 : index
    %54 = vector.load %arg8[%c9, %c0_31] : memref<96x8xf32, #tpu.memory_space<vmem>>, vector<64x8xf32>
    %cst_32 = arith.constant 0.000000e+00 : f32
    %55 = vector.broadcast %cst_32 : f32 to vector<64x8xf32>
    %56 = vector.shape_cast %35 : vector<64x1xi1> to vector<64x1xi1>
    %57 = vector.broadcast %56 : vector<64x1xi1> to vector<64x8xi1>
    %58 = arith.select %57, %54, %55 : vector<64x8xi1>, vector<64x8xf32>
    %59 = arith.truncf %58 : vector<64x8xf32> to vector<64x8xbf16>
    %c2 = arith.constant 2 : index
    %c0_33 = arith.constant 0 : index
    %c0_34 = arith.constant 0 : index
    %60 = vector.load %arg4[%c2, %c0_33, %c0_34] : memref<9x8x8xbf16, #tpu.memory_space<vmem>>, vector<1x8x8xbf16>
    %61 = vector.shape_cast %60 : vector<1x8x8xbf16> to vector<8x8xbf16>
    %cst_35 = arith.constant dense<0.000000e+00> : vector<64x8xf32>
    %62 = tpu.matmul %59, %61, %cst_35 {dimension_numbers = #tpu.dot_dimension_numbers<[1], [0], [0], [1], [0, 0, 1, 1], [], []>} : vector<64x8xbf16>, vector<8x8xbf16>, vector<64x8xf32> -> vector<64x8xf32>
    %c0_36 = arith.constant 0 : index
    %c0_37 = arith.constant 0 : index
    %63 = vector.load %arg9[%c0_36, %c0_37] : memref<64x8xf32, #tpu.memory_space<vmem>>, vector<64x8xf32>
    %64 = arith.addf %63, %62 : vector<64x8xf32>
    %c0_38 = arith.constant 0 : index
    %c0_39 = arith.constant 0 : index
    %65 = vector.load %arg9[%c0_38, %c0_39] : memref<64x8xf32, #tpu.memory_space<vmem>>, vector<64x8xf32>
    tpu.vector_store %arg9[%c0_38, %c0_39], %64 {strides = array<i32>} : memref<64x8xf32, #tpu.memory_space<vmem>>, vector<64x8xf32>,
    %c15 = arith.constant 15 : index
    %c0_40 = arith.constant 0 : index
    %66 = vector.load %arg8[%c15, %c0_40] : memref<96x8xf32, #tpu.memory_space<vmem>>, vector<64x8xf32>
    %cst_41 = arith.constant 0.000000e+00 : f32
    %67 = vector.broadcast %cst_41 : f32 to vector<64x8xf32>
    %68 = vector.shape_cast %33 : vector<64x1xi1> to vector<64x1xi1>
    %69 = vector.broadcast %68 : vector<64x1xi1> to vector<64x8xi1>
    %70 = arith.select %69, %66, %67 : vector<64x8xi1>, vector<64x8xf32>
    %71 = arith.truncf %70 : vector<64x8xf32> to vector<64x8xbf16>
    %c3 = arith.constant 3 : index
    %c0_42 = arith.constant 0 : index
    %c0_43 = arith.constant 0 : index
    %72 = vector.load %arg4[%c3, %c0_42, %c0_43] : memref<9x8x8xbf16, #tpu.memory_space<vmem>>, vector<1x8x8xbf16>
    %73 = vector.shape_cast %72 : vector<1x8x8xbf16> to vector<8x8xbf16>
    %cst_44 = arith.constant dense<0.000000e+00> : vector<64x8xf32>
    %74 = tpu.matmul %71, %73, %cst_44 {dimension_numbers = #tpu.dot_dimension_numbers<[1], [0], [0], [1], [0, 0, 1, 1], [], []>} : vector<64x8xbf16>, vector<8x8xbf16>, vector<64x8xf32> -> vector<64x8xf32>
    %c0_45 = arith.constant 0 : index
    %c0_46 = arith.constant 0 : index
    %75 = vector.load %arg9[%c0_45, %c0_46] : memref<64x8xf32, #tpu.memory_space<vmem>>, vector<64x8xf32>
    %76 = arith.addf %75, %74 : vector<64x8xf32>
    %c0_47 = arith.constant 0 : index
    %c0_48 = arith.constant 0 : index
    %77 = vector.load %arg9[%c0_47, %c0_48] : memref<64x8xf32, #tpu.memory_space<vmem>>, vector<64x8xf32>
    tpu.vector_store %arg9[%c0_47, %c0_48], %76 {strides = array<i32>} : memref<64x8xf32, #tpu.memory_space<vmem>>, vector<64x8xf32>,
    %c16_49 = arith.constant 16 : index
    %c0_50 = arith.constant 0 : index
    %78 = vector.load %arg8[%c16_49, %c0_50] : memref<96x8xf32, #tpu.memory_space<vmem>>, vector<64x8xf32>
    %79 = arith.truncf %78 : vector<64x8xf32> to vector<64x8xbf16>
    %c4 = arith.constant 4 : index
    %c0_51 = arith.constant 0 : index
    %c0_52 = arith.constant 0 : index
    %80 = vector.load %arg4[%c4, %c0_51, %c0_52] : memref<9x8x8xbf16, #tpu.memory_space<vmem>>, vector<1x8x8xbf16>
    %81 = vector.shape_cast %80 : vector<1x8x8xbf16> to vector<8x8xbf16>
    %cst_53 = arith.constant dense<0.000000e+00> : vector<64x8xf32>
    %82 = tpu.matmul %79, %81, %cst_53 {dimension_numbers = #tpu.dot_dimension_numbers<[1], [0], [0], [1], [0, 0, 1, 1], [], []>} : vector<64x8xbf16>, vector<8x8xbf16>, vector<64x8xf32> -> vector<64x8xf32>
    %c0_54 = arith.constant 0 : index
    %c0_55 = arith.constant 0 : index
    %83 = vector.load %arg9[%c0_54, %c0_55] : memref<64x8xf32, #tpu.memory_space<vmem>>, vector<64x8xf32>
    %84 = arith.addf %83, %82 : vector<64x8xf32>
    %c0_56 = arith.constant 0 : index
    %c0_57 = arith.constant 0 : index
    %85 = vector.load %arg9[%c0_56, %c0_57] : memref<64x8xf32, #tpu.memory_space<vmem>>, vector<64x8xf32>
    tpu.vector_store %arg9[%c0_56, %c0_57], %84 {strides = array<i32>} : memref<64x8xf32, #tpu.memory_space<vmem>>, vector<64x8xf32>,
    %c17 = arith.constant 17 : index
    %c0_58 = arith.constant 0 : index
    %86 = vector.load %arg8[%c17, %c0_58] : memref<96x8xf32, #tpu.memory_space<vmem>>, vector<64x8xf32>
    %cst_59 = arith.constant 0.000000e+00 : f32
    %87 = vector.broadcast %cst_59 : f32 to vector<64x8xf32>
    %88 = vector.shape_cast %35 : vector<64x1xi1> to vector<64x1xi1>
    %89 = vector.broadcast %88 : vector<64x1xi1> to vector<64x8xi1>
    %90 = arith.select %89, %86, %87 : vector<64x8xi1>, vector<64x8xf32>
    %91 = arith.truncf %90 : vector<64x8xf32> to vector<64x8xbf16>
    %c5 = arith.constant 5 : index
    %c0_60 = arith.constant 0 : index
    %c0_61 = arith.constant 0 : index
    %92 = vector.load %arg4[%c5, %c0_60, %c0_61] : memref<9x8x8xbf16, #tpu.memory_space<vmem>>, vector<1x8x8xbf16>
    %93 = vector.shape_cast %92 : vector<1x8x8xbf16> to vector<8x8xbf16>
    %cst_62 = arith.constant dense<0.000000e+00> : vector<64x8xf32>
    %94 = tpu.matmul %91, %93, %cst_62 {dimension_numbers = #tpu.dot_dimension_numbers<[1], [0], [0], [1], [0, 0, 1, 1], [], []>} : vector<64x8xbf16>, vector<8x8xbf16>, vector<64x8xf32> -> vector<64x8xf32>
    %c0_63 = arith.constant 0 : index
    %c0_64 = arith.constant 0 : index
    %95 = vector.load %arg9[%c0_63, %c0_64] : memref<64x8xf32, #tpu.memory_space<vmem>>, vector<64x8xf32>
    %96 = arith.addf %95, %94 : vector<64x8xf32>
    %c0_65 = arith.constant 0 : index
    %c0_66 = arith.constant 0 : index
    %97 = vector.load %arg9[%c0_65, %c0_66] : memref<64x8xf32, #tpu.memory_space<vmem>>, vector<64x8xf32>
    tpu.vector_store %arg9[%c0_65, %c0_66], %96 {strides = array<i32>} : memref<64x8xf32, #tpu.memory_space<vmem>>, vector<64x8xf32>,
    %c23 = arith.constant 23 : index
    %c0_67 = arith.constant 0 : index
    %98 = vector.load %arg8[%c23, %c0_67] : memref<96x8xf32, #tpu.memory_space<vmem>>, vector<64x8xf32>
    %cst_68 = arith.constant 0.000000e+00 : f32
    %99 = vector.broadcast %cst_68 : f32 to vector<64x8xf32>
    %100 = vector.shape_cast %33 : vector<64x1xi1> to vector<64x1xi1>
    %101 = vector.broadcast %100 : vector<64x1xi1> to vector<64x8xi1>
    %102 = arith.select %101, %98, %99 : vector<64x8xi1>, vector<64x8xf32>
    %103 = arith.truncf %102 : vector<64x8xf32> to vector<64x8xbf16>
    %c6 = arith.constant 6 : index
    %c0_69 = arith.constant 0 : index
    %c0_70 = arith.constant 0 : index
    %104 = vector.load %arg4[%c6, %c0_69, %c0_70] : memref<9x8x8xbf16, #tpu.memory_space<vmem>>, vector<1x8x8xbf16>
    %105 = vector.shape_cast %104 : vector<1x8x8xbf16> to vector<8x8xbf16>
    %cst_71 = arith.constant dense<0.000000e+00> : vector<64x8xf32>
    %106 = tpu.matmul %103, %105, %cst_71 {dimension_numbers = #tpu.dot_dimension_numbers<[1], [0], [0], [1], [0, 0, 1, 1], [], []>} : vector<64x8xbf16>, vector<8x8xbf16>, vector<64x8xf32> -> vector<64x8xf32>
    %c0_72 = arith.constant 0 : index
    %c0_73 = arith.constant 0 : index
    %107 = vector.load %arg9[%c0_72, %c0_73] : memref<64x8xf32, #tpu.memory_space<vmem>>, vector<64x8xf32>
    %108 = arith.addf %107, %106 : vector<64x8xf32>
    %c0_74 = arith.constant 0 : index
    %c0_75 = arith.constant 0 : index
    %109 = vector.load %arg9[%c0_74, %c0_75] : memref<64x8xf32, #tpu.memory_space<vmem>>, vector<64x8xf32>
    tpu.vector_store %arg9[%c0_74, %c0_75], %108 {strides = array<i32>} : memref<64x8xf32, #tpu.memory_space<vmem>>, vector<64x8xf32>,
    %c24 = arith.constant 24 : index
    %c0_76 = arith.constant 0 : index
    %110 = vector.load %arg8[%c24, %c0_76] : memref<96x8xf32, #tpu.memory_space<vmem>>, vector<64x8xf32>
    %111 = arith.truncf %110 : vector<64x8xf32> to vector<64x8xbf16>
    %c7_77 = arith.constant 7 : index
    %c0_78 = arith.constant 0 : index
    %c0_79 = arith.constant 0 : index
    %112 = vector.load %arg4[%c7_77, %c0_78, %c0_79] : memref<9x8x8xbf16, #tpu.memory_space<vmem>>, vector<1x8x8xbf16>
    %113 = vector.shape_cast %112 : vector<1x8x8xbf16> to vector<8x8xbf16>
    %cst_80 = arith.constant dense<0.000000e+00> : vector<64x8xf32>
    %114 = tpu.matmul %111, %113, %cst_80 {dimension_numbers = #tpu.dot_dimension_numbers<[1], [0], [0], [1], [0, 0, 1, 1], [], []>} : vector<64x8xbf16>, vector<8x8xbf16>, vector<64x8xf32> -> vector<64x8xf32>
    %c0_81 = arith.constant 0 : index
    %c0_82 = arith.constant 0 : index
    %115 = vector.load %arg9[%c0_81, %c0_82] : memref<64x8xf32, #tpu.memory_space<vmem>>, vector<64x8xf32>
    %116 = arith.addf %115, %114 : vector<64x8xf32>
    %c0_83 = arith.constant 0 : index
    %c0_84 = arith.constant 0 : index
    %117 = vector.load %arg9[%c0_83, %c0_84] : memref<64x8xf32, #tpu.memory_space<vmem>>, vector<64x8xf32>
    tpu.vector_store %arg9[%c0_83, %c0_84], %116 {strides = array<i32>} : memref<64x8xf32, #tpu.memory_space<vmem>>, vector<64x8xf32>,
    %c25 = arith.constant 25 : index
    %c0_85 = arith.constant 0 : index
    %118 = vector.load %arg8[%c25, %c0_85] : memref<96x8xf32, #tpu.memory_space<vmem>>, vector<64x8xf32>
    %cst_86 = arith.constant 0.000000e+00 : f32
    %119 = vector.broadcast %cst_86 : f32 to vector<64x8xf32>
    %120 = vector.shape_cast %35 : vector<64x1xi1> to vector<64x1xi1>
    %121 = vector.broadcast %120 : vector<64x1xi1> to vector<64x8xi1>
    %122 = arith.select %121, %118, %119 : vector<64x8xi1>, vector<64x8xf32>
    %123 = arith.truncf %122 : vector<64x8xf32> to vector<64x8xbf16>
    %c8_87 = arith.constant 8 : index
    %c0_88 = arith.constant 0 : index
    %c0_89 = arith.constant 0 : index
    %124 = vector.load %arg4[%c8_87, %c0_88, %c0_89] : memref<9x8x8xbf16, #tpu.memory_space<vmem>>, vector<1x8x8xbf16>
    %125 = vector.shape_cast %124 : vector<1x8x8xbf16> to vector<8x8xbf16>
    %cst_90 = arith.constant dense<0.000000e+00> : vector<64x8xf32>
    %126 = tpu.matmul %123, %125, %cst_90 {dimension_numbers = #tpu.dot_dimension_numbers<[1], [0], [0], [1], [0, 0, 1, 1], [], []>} : vector<64x8xbf16>, vector<8x8xbf16>, vector<64x8xf32> -> vector<64x8xf32>
    %c0_91 = arith.constant 0 : index
    %c0_92 = arith.constant 0 : index
    %127 = vector.load %arg9[%c0_91, %c0_92] : memref<64x8xf32, #tpu.memory_space<vmem>>, vector<64x8xf32>
    %128 = arith.addf %127, %126 : vector<64x8xf32>
    %c0_93 = arith.constant 0 : index
    %c0_94 = arith.constant 0 : index
    %129 = vector.load %arg9[%c0_93, %c0_94] : memref<64x8xf32, #tpu.memory_space<vmem>>, vector<64x8xf32>
    tpu.vector_store %arg9[%c0_93, %c0_94], %128 {strides = array<i32>} : memref<64x8xf32, #tpu.memory_space<vmem>>, vector<64x8xf32>,
    %c0_95 = arith.constant 0 : index
    %c0_96 = arith.constant 0 : index
    %130 = vector.load %arg9[%c0_95, %c0_96] : memref<64x8xf32, #tpu.memory_space<vmem>>, vector<64x8xf32>
    %131 = arith.truncf %130 : vector<64x8xf32> to vector<64x8xbf16>
    %c0_97 = arith.constant 0 : index
    %c0_98 = arith.constant 0 : index
    %c0_99 = arith.constant 0 : index
    %132 = vector.load %arg5[%c0_97, %c0_98, %c0_99] : memref<1x64x8xbf16, #tpu.memory_space<vmem>>, vector<1x64x8xbf16>
    %133 = vector.shape_cast %132 : vector<1x64x8xbf16> to vector<64x8xbf16>
    %134 = vector.shape_cast %131 : vector<64x8xbf16> to vector<1x64x8xbf16>
    tpu.vector_store %arg5[%c0_97, %c0_98, %c0_99], %134 {strides = array<i32>} : memref<1x64x8xbf16, #tpu.memory_space<vmem>>, vector<1x64x8xbf16>,
    %cst_100 = arith.constant dense<0.000000e+00> : vector<8xf32>
    %135 = vector.multi_reduction <add>, %130, %cst_100 [0] : vector<64x8xf32> to vector<8xf32>
    %136 = vector.shape_cast %135 : vector<8xf32> to vector<1x8xf32>
    %c0_101 = arith.constant 0 : index
    %c0_102 = arith.constant 0 : index
    %c0_103 = arith.constant 0 : index
    %137 = vector.load %arg6[%c0_101, %c0_102, %c0_103] : memref<1x1x8xf32, #tpu.memory_space<vmem>>, vector<1x1x8xf32>
    %138 = vector.shape_cast %137 : vector<1x1x8xf32> to vector<1x8xf32>
    %139 = vector.shape_cast %136 : vector<1x8xf32> to vector<1x1x8xf32>
    tpu.vector_store %arg6[%c0_101, %c0_102, %c0_103], %139 {strides = array<i32>} : memref<1x1x8xf32, #tpu.memory_space<vmem>>, vector<1x1x8xf32>,
    %140 = arith.mulf %130, %130 : vector<64x8xf32>
    %cst_104 = arith.constant dense<0.000000e+00> : vector<8xf32>
    %141 = vector.multi_reduction <add>, %140, %cst_104 [0] : vector<64x8xf32> to vector<8xf32>
    %142 = vector.shape_cast %141 : vector<8xf32> to vector<1x8xf32>
    %c0_105 = arith.constant 0 : index
    %c0_106 = arith.constant 0 : index
    %c0_107 = arith.constant 0 : index
    %143 = vector.load %arg7[%c0_105, %c0_106, %c0_107] : memref<1x1x8xf32, #tpu.memory_space<vmem>>, vector<1x1x8xf32>
    %144 = vector.shape_cast %143 : vector<1x1x8xf32> to vector<1x8xf32>
    %145 = vector.shape_cast %142 : vector<1x8xf32> to vector<1x1x8xf32>
    tpu.vector_store %arg7[%c0_105, %c0_106, %c0_107], %145 {strides = array<i32>} : memref<1x1x8xf32, #tpu.memory_space<vmem>>, vector<1x1x8xf32>,
    return
  }
  func.func @transform_0(%arg0: i32) -> (i32, i32, i32) {
    %c0_i32 = arith.constant 0 : i32
    %c0_i32_0 = arith.constant 0 : i32
    %c0_i32_1 = arith.constant 0 : i32
    return %arg0, %c0_i32, %c0_i32_0 : i32, i32, i32
  }
  func.func @transform_1(%arg0: i32) -> (i32, i32) {
    %c0_i32 = arith.constant 0 : i32
    %c0_i32_0 = arith.constant 0 : i32
    %c0_i32_1 = arith.constant 0 : i32
    return %c0_i32, %c0_i32_0 : i32, i32
  }
  func.func @transform_2(%arg0: i32) -> (i32, i32) {
    %c0_i32 = arith.constant 0 : i32
    %c0_i32_0 = arith.constant 0 : i32
    %c0_i32_1 = arith.constant 0 : i32
    return %c0_i32, %c0_i32_0 : i32, i32
  }
  func.func @transform_3(%arg0: i32) -> (i32, i32, i32) {
    %c0_i32 = arith.constant 0 : i32
    %c0_i32_0 = arith.constant 0 : i32
    %c0_i32_1 = arith.constant 0 : i32
    %c0_i32_2 = arith.constant 0 : i32
    return %c0_i32, %c0_i32_0, %c0_i32_1 : i32, i32, i32
  }
  func.func @transform_4(%arg0: i32) -> (i32, i32, i32) {
    %c0_i32 = arith.constant 0 : i32
    %c0_i32_0 = arith.constant 0 : i32
    %c0_i32_1 = arith.constant 0 : i32
    return %arg0, %c0_i32, %c0_i32_0 : i32, i32, i32
  }
  func.func @transform_5(%arg0: i32) -> (i32, i32, i32) {
    %c0_i32 = arith.constant 0 : i32
    %c0_i32_0 = arith.constant 0 : i32
    %c0_i32_1 = arith.constant 0 : i32
    return %arg0, %c0_i32, %c0_i32_0 : i32, i32, i32
  }
  func.func @transform_6(%arg0: i32) -> (i32, i32, i32) {
    %c0_i32 = arith.constant 0 : i32
    %c0_i32_0 = arith.constant 0 : i32
    %c0_i32_1 = arith.constant 0 : i32
    return %arg0, %c0_i32, %c0_i32_0 : i32, i32, i32
  }
}

</mosaic_0001>

<llo_original>
// kernel: down_forward.5
$region0: #{down_forward.5}
  #allocation0 [shape = 'u32[]', space=smem, size = 0x4, offset = 0x4, fixed_abs, tag = 'smem constant byte address 0x4 - core index']
  #allocation1 [shape = 'u32[144,128]{1,0:T(1,128)}', space=vmem, size = 0x12000, scoped, tag = 'internal scratch']
  %s0 = inlined_call_operand.vmem [shape: bf16[2,64,8], index: 0, kind: input, shape index: {}]
  %s1 = inlined_call_operand.vmem [shape: f32[1,8], index: 1, kind: input, shape index: {}]
  %s2 = inlined_call_operand.vmem [shape: f32[1,8], index: 2, kind: input, shape index: {}]
  %s3 = inlined_call_operand.vmem [shape: f32[2,64,8], index: 3, kind: output, shape index: {}]
  %s4 = sld [smem:[#allocation0]]
  $region45: #{down_forward.5} parent=0
    _
  %s6 = ssub.s32 1, %s4
  %s7 = scalar_select 0, %s6, %s4
  loop: start=0, step=1, limit=4
  $region2: #{down_forward.5} parent=0 // loop_pre_header
    _
  $region3: #{down_forward.5} parent=0 // loop_header
    %s9 = sphi 0, %s13
    %p10 = scmp.ge.s32.totalorder %s9, 4
    %s19 = sphi 0, %s21
    %s22 = sphi 0, %s19
    %s23 = sphi 0, %s22
    %s39 = sphi 0, %s23
    %s43 = sphi 0, %s43
    %s45 = sphi 0, %s43
    %s46 = sphi 0, %s45
    %s60 = sphi 0, %s46
    %s64 = sphi 0, %s64
    %s66 = sphi 0, %s64
    %s67 = sphi 0, %s66
    %s81 = sphi 0, %s67
    %s87 = sphi 0, %s89
    %s90 = sphi 0, %s87
    %s91 = sphi 0, %s90
    %s107 = sphi 0, %s91
  $region4: #{down_forward.5} parent=0 // loop_header_branch
    %12 = sbr.rel (%p10) target = $region8
  $region5: #{down_forward.5} parent=0 // loop_body
    %s14 = ssub.s32 %s9, 1
    %s15 = ssub.s32 %s9, 2
    %s16 = sadd.s32 %s9, 1
    %s17 = ssub.s32 %s9, %s16
    %p18 = scmp.eq.s32.totalorder %s17, 0
    %s20 = sadd.s32 %s19, 1
    %s21 = scalar_select %p18, %s19, %s20
    %p24 = pneg %p18
    %p25 = scmp.eq.s32.totalorder %s9, 1
    %p26 = por %p24, %p25
    %p27 = scmp.ne.s32.totalorder %s19, %s22
    %p28 = scmp.eq.s32.totalorder %s9, 0
    %p29 = por %p27, %p28
    %p30 = scmp.ne.s32.totalorder %s19, %s22
    %p31 = scmp.eq.s32.totalorder %s14, 1
    %p32 = por %p30, %p31
    %p33 = scmp.ne.s32.totalorder %s22, %s23
    %p34 = scmp.eq.s32.totalorder %s14, 0
    %p35 = por %p33, %p34
    %p36 = scmp.ne.s32.totalorder %s22, %s23
    %p37 = scmp.eq.s32.totalorder %s15, 1
    %p38 = por %p36, %p37
    %p40 = scmp.ne.s32.totalorder %s23, %s39
    %p41 = scmp.eq.s32.totalorder %s15, 0
    %p42 = por %p40, %p41
    %s44 = sadd.s32 %s43, 1
    %p47 = scmp.eq.s32.totalorder %s9, 1
    %p48 = scmp.ne.s32.totalorder %s43, %s45
    %p49 = scmp.eq.s32.totalorder %s9, 0
    %p50 = por %p48, %p49
    %p51 = scmp.ne.s32.totalorder %s43, %s45
    %p52 = scmp.eq.s32.totalorder %s14, 1
    %p53 = por %p51, %p52
    %p54 = scmp.ne.s32.totalorder %s45, %s46
    %p55 = scmp.eq.s32.totalorder %s14, 0
    %p56 = por %p54, %p55
    %p57 = scmp.ne.s32.totalorder %s45, %s46
    %p58 = scmp.eq.s32.totalorder %s15, 1
    %p59 = por %p57, %p58
    %p61 = scmp.ne.s32.totalorder %s46, %s60
    %p62 = scmp.eq.s32.totalorder %s15, 0
    %p63 = por %p61, %p62
    %s65 = sadd.s32 %s64, 1
    %p68 = scmp.eq.s32.totalorder %s9, 1
    %p69 = scmp.ne.s32.totalorder %s64, %s66
    %p70 = scmp.eq.s32.totalorder %s9, 0
    %p71 = por %p69, %p70
    %p72 = scmp.ne.s32.totalorder %s64, %s66
    %p73 = scmp.eq.s32.totalorder %s14, 1
    %p74 = por %p72, %p73
    %p75 = scmp.ne.s32.totalorder %s66, %s67
    %p76 = scmp.eq.s32.totalorder %s14, 0
    %p77 = por %p75, %p76
    %p78 = scmp.ne.s32.totalorder %s66, %s67
    %p79 = scmp.eq.s32.totalorder %s15, 1
    %p80 = por %p78, %p79
    %p82 = scmp.ne.s32.totalorder %s67, %s81
    %p83 = scmp.eq.s32.totalorder %s15, 0
    %p84 = por %p82, %p83
    %s85 = ssub.s32 %s9, %s16
    %p86 = scmp.eq.s32.totalorder %s85, 0
    %s88 = sadd.s32 %s87, 1
    %s89 = scalar_select %p86, %s87, %s88
    %p92 = pneg %p86
    %p93 = scmp.eq.s32.totalorder %s9, 1
    %p94 = por %p92, %p93
    %p95 = scmp.ne.s32.totalorder %s87, %s90
    %p96 = scmp.eq.s32.totalorder %s9, 0
    %p97 = por %p95, %p96
    %p98 = scmp.ne.s32.totalorder %s87, %s90
    %p99 = scmp.eq.s32.totalorder %s14, 1
    %p100 = por %p98, %p99
    %p101 = scmp.ne.s32.totalorder %s90, %s91
    %p102 = scmp.eq.s32.totalorder %s14, 0
    %p103 = por %p101, %p102
    %p104 = scmp.ne.s32.totalorder %s90, %s91
    %p105 = scmp.eq.s32.totalorder %s15, 1
    %p106 = por %p104, %p105
    %p108 = scmp.ne.s32.totalorder %s91, %s107
    %p109 = scmp.eq.s32.totalorder %s15, 0
    %p110 = por %p108, %p109
    %p111 = scmp.le.s32.totalorder 1, %s9
    %p112 = scmp.lt.s32.totalorder %s9, 3
    %p113 = pnand %p111, %p112
    %p114 = pneg %p113
    // Predicated region
    $region9: #{down_forward.5} parent=5 // pred_check
      _
    $region10: #{down_forward.5} parent=5 // pred_check_branch
      %116 = sbr.rel (%p113) target = $region12
    $region11: #{down_forward.5} parent=5 // pred_region
      %s117 = ssub.s32 %s9, 1
      // Predicated region
      $region13: #{down_forward.5} parent=11 // pred_check
        %p118 = pneg %p56
      $region14: #{down_forward.5} parent=11 // pred_check_branch
        %120 = sbr.rel (%p118) target = $region16
      $region15: #{down_forward.5} parent=11 // pred_region
        _
      $region16: #{down_forward.5} parent=11 // pred_fallthru
        _
      // Predicated region
      $region17: #{down_forward.5} parent=11 // pred_check
        %p121 = pneg %p77
      $region18: #{down_forward.5} parent=11 // pred_check_branch
        %123 = sbr.rel (%p121) target = $region20
      $region19: #{down_forward.5} parent=11 // pred_region
        _
      $region20: #{down_forward.5} parent=11 // pred_fallthru
        _
    $region12: #{down_forward.5} parent=5 // pred_fallthru
      _
    %p124 = scmp.lt.s32.totalorder %s9, 2
    // Predicated region
    $region21: #{down_forward.5} parent=5 // pred_check
      %p125 = pneg %p124
    $region22: #{down_forward.5} parent=5 // pred_check_branch
      %127 = sbr.rel (%p125) target = $region24
    $region23: #{down_forward.5} parent=5 // pred_region
      // Predicated region
      $region25: #{down_forward.5} parent=23 // pred_check
        %p128 = pneg %p29
      $region26: #{down_forward.5} parent=23 // pred_check_branch
        %130 = sbr.rel (%p128) target = $region28
      $region27: #{down_forward.5} parent=23 // pred_region
        %p131 = scmp.lt.s32.totalorder %s9, 1
        %s132 = scalar_select %p131, %s9, 1
        %s133 = smul.addr %s132, 8
        %s134 = smul.addr %s133, 4
        %s135 = scalar_lea.vmem %s0, %s134
      $region28: #{down_forward.5} parent=23 // pred_fallthru
        _
    $region24: #{down_forward.5} parent=5 // pred_fallthru
      _
    %p136 = scmp.le.s32.totalorder 1, %s9
    %p137 = scmp.lt.s32.totalorder %s9, 3
    %p138 = pnand %p136, %p137
    %p139 = pneg %p138
    // Predicated region
    $region29: #{down_forward.5} parent=5 // pred_check
      _
    $region30: #{down_forward.5} parent=5 // pred_check_branch
      %141 = sbr.rel (%p138) target = $region32
    $region31: #{down_forward.5} parent=5 // pred_region
      %s142 = ssub.s32 %s9, 1
      %p143 = scmp.lt.s32.totalorder %s14, 1
      %s144 = scalar_select %p143, %s14, 1
      %s145 = smul.addr %s144, 8
      %s146 = smul.addr %s145, 4
      %s147 = scalar_lea.vmem %s0, %s146
      %p148 = pneg %p35
      %p149 = pneg %p32
      %p150 = pneg %p56
      %p151 = pneg %p53
      %p152 = pneg %p77
      %p153 = pneg %p74
      %p154 = pneg %p103
      %p155 = pneg %p100
      %p156 = scmp.lt.s32.totalorder %s14, 1
      %s157 = scalar_select %p156, %s14, 1
      %s158 = smul.addr %s157, 8
      %s159 = smul.addr %s158, 8
      %s160 = scalar_lea.vmem %s3, %s159
      %p161 = scmp.lt.s32.totalorder %s14, 1
      %s162 = scalar_select %p161, %s14, 1
      %s163 = smul.addr %s162, 8
      %s164 = smul.addr %s163, 4
      %s165 = scalar_lea.vmem %s0, %s164
      %p166 = scmp.lt.s32.totalorder %s14, 1
      %s167 = scalar_select %p166, %s14, 1
      %s168 = smul.addr %s167, 8
      %s169 = smul.addr %s168, 8
      %s170 = scalar_lea.vmem %s3, %s169
      %v171 = vld [vmem:[%s165] sm:$0xf]
      %v172 = vld [vmem:[%s165 + $0x4] sm:$0xf]
      %v173 = vld [vmem:[%s165 + $0x8] sm:$0xf]
      %v174 = vld [vmem:[%s165 + $0xc] sm:$0xf]
      %v175 = vld [vmem:[%s165 + $0x10] sm:$0xf]
      %v176 = vld [vmem:[%s165 + $0x14] sm:$0xf]
      %v177 = vld [vmem:[%s165 + $0x18] sm:$0xf]
      %v178 = vld [vmem:[%s165 + $0x1c] sm:$0xf]
      %v179 = vunpack.c.l.bf16 %v171
      %v180 = vunpack.c.l.bf16 %v172
      %v181 = vunpack.c.l.bf16 %v173
      %v182 = vunpack.c.l.bf16 %v174
      %v183 = vunpack.c.l.bf16 %v175
      %v184 = vunpack.c.l.bf16 %v176
      %v185 = vunpack.c.l.bf16 %v177
      %v186 = vunpack.c.l.bf16 %v178
      %v187 = vld [vmem:[%s1] sm:$0x1]
      %v189 = vlaneseq
      %v190 = vshrl.u32 %v189, 7
      %v191 = vsub.s32 0, %v190
      %v192 = vrot.slane %v187, %v191
      %v194 = vmul.f32 %v179, %v192
      %v195 = vmul.f32 %v180, %v192
      %v196 = vmul.f32 %v181, %v192
      %v197 = vmul.f32 %v182, %v192
      %v198 = vmul.f32 %v183, %v192
      %v199 = vmul.f32 %v184, %v192
      %v200 = vmul.f32 %v185, %v192
      %v201 = vmul.f32 %v186, %v192
      %v202 = vld [vmem:[%s2] sm:$0x1]
      %v204 = vlaneseq
      %v205 = vshrl.u32 %v204, 7
      %v206 = vsub.s32 0, %v205
      %v207 = vrot.slane %v202, %v206
      %v209 = vadd.f32 %v194, %v207
      %v210 = vadd.f32 %v195, %v207
      %v211 = vadd.f32 %v196, %v207
      %v212 = vadd.f32 %v197, %v207
      %v213 = vadd.f32 %v198, %v207
      %v214 = vadd.f32 %v199, %v207
      %v215 = vadd.f32 %v200, %v207
      %v216 = vadd.f32 %v201, %v207
      %v217 = vmax.f32 %v209, 0.0
      %v218 = vmax.f32 %v210, 0.0
      %v219 = vmax.f32 %v211, 0.0
      %v220 = vmax.f32 %v212, 0.0
      %v221 = vmax.f32 %v213, 0.0
      %v222 = vmax.f32 %v214, 0.0
      %v223 = vmax.f32 %v215, 0.0
      %v224 = vmax.f32 %v216, 0.0
      %vm225 = vcmask 64512
      %226 = vst.msk [vmem:[%s170] sm:$0xff] %vm225, %v217
      %227 = vst.msk [vmem:[%s170 + $0x8] sm:$0xff] %vm225, %v218
      %228 = vst.msk [vmem:[%s170 + $0x10] sm:$0xff] %vm225, %v219
      %229 = vst.msk [vmem:[%s170 + $0x18] sm:$0xff] %vm225, %v220
      %230 = vst.msk [vmem:[%s170 + $0x20] sm:$0xff] %vm225, %v221
      %231 = vst.msk [vmem:[%s170 + $0x28] sm:$0xff] %vm225, %v222
      %232 = vst.msk [vmem:[%s170 + $0x30] sm:$0xff] %vm225, %v223
      %233 = vst.msk [vmem:[%s170 + $0x38] sm:$0xff] %vm225, %v224
      %p234 = scmp.lt.s32.totalorder %s14, 1
      %s235 = scalar_select %p234, %s14, 1
      %s236 = smul.addr %s235, 8
      %s237 = smul.addr %s236, 8
      %s238 = scalar_lea.vmem %s3, %s237
      // Predicated region
      $region33: #{down_forward.5} parent=31 // pred_check
        %p239 = pneg %p100
      $region34: #{down_forward.5} parent=31 // pred_check_branch
        %241 = sbr.rel (%p239) target = $region36
      $region35: #{down_forward.5} parent=31 // pred_region
        _
      $region36: #{down_forward.5} parent=31 // pred_fallthru
        _
    $region32: #{down_forward.5} parent=5 // pred_fallthru
      _
    %p242 = scmp.le.s32.totalorder 2, %s9
    // Predicated region
    $region37: #{down_forward.5} parent=5 // pred_check
      %p243 = pneg %p242
    $region38: #{down_forward.5} parent=5 // pred_check_branch
      %245 = sbr.rel (%p243) target = $region40
    $region39: #{down_forward.5} parent=5 // pred_region
      %s246 = ssub.s32 %s9, 2
      // Predicated region
      $region41: #{down_forward.5} parent=39 // pred_check
        %p247 = pneg %p106
      $region42: #{down_forward.5} parent=39 // pred_check_branch
        %249 = sbr.rel (%p247) target = $region44
      $region43: #{down_forward.5} parent=39 // pred_region
        %p250 = scmp.lt.s32.totalorder %s15, 1
        %s251 = scalar_select %p250, %s15, 1
        %s252 = smul.addr %s251, 8
        %s253 = smul.addr %s252, 8
        %s254 = scalar_lea.vmem %s3, %s253
      $region44: #{down_forward.5} parent=39 // pred_fallthru
        _
    $region40: #{down_forward.5} parent=5 // pred_fallthru
      _
  $region6: #{down_forward.5} parent=0 // loop_footer
    %s13 = sadd.s32 1, %s9
  $region7: #{down_forward.5} parent=0 // loop_footer_branch
    %8 = sbr.rel target = $region3
  $region8: #{down_forward.5} parent=0 // loop_exit
    _

// kernel: down_forward.3
$region0: #{down_forward.3}
  #allocation0 [shape = 'u32[]', space=smem, size = 0x4, offset = 0x4, fixed_abs, tag = 'smem constant byte address 0x4 - core index']
  #allocation1 [shape = 'u32[144,128]{1,0:T(1,128)}', space=vmem, size = 0x12000, scoped, tag = 'internal scratch']
  #allocation2 [shape = 'f32[96,4]{1,0:T(8,128)}', space=vmem, size = 0xc000, scoped, tag = 'scratch operand']
  #allocation3 [shape = 'f32[64,8]{1,0:T(8,128)}', space=vmem, size = 0x8000, scoped, tag = 'scratch operand']
  %s0 = inlined_call_operand.vmem [shape: f32[2,8,2,8,8], index: 0, kind: input, shape index: {}]
  %s1 = inlined_call_operand.vmem [shape: bf16[9,4,8], index: 1, kind: input, shape index: {}]
  %s2 = inlined_call_operand.vmem [shape: bf16[2,64,8], index: 2, kind: output, shape index: {0}]
  %s3 = inlined_call_operand.vmem [shape: f32[2,1,8], index: 3, kind: output, shape index: {1}]
  %s4 = inlined_call_operand.vmem [shape: f32[2,1,8], index: 4, kind: output, shape index: {2}]
  %5 = xla_tuple %s2, %s3, %s4
  %s6 = sld [smem:[#allocation0]]
  $region57: #{down_forward.3} parent=0
    _
  %s8 = ssub.s32 1, %s6
  %s9 = scalar_select 0, %s8, %s6
  loop: start=0, step=1, limit=4
  $region2: #{down_forward.3} parent=0 // loop_pre_header
    _
  $region3: #{down_forward.3} parent=0 // loop_header
    %s11 = sphi 0, %s15
    %p12 = scmp.ge.s32.totalorder %s11, 4
    %s21 = sphi 0, %s23
    %s24 = sphi 0, %s21
    %s25 = sphi 0, %s24
    %s41 = sphi 0, %s25
    %s45 = sphi 0, %s45
    %s47 = sphi 0, %s45
    %s48 = sphi 0, %s47
    %s62 = sphi 0, %s48
    %s68 = sphi 0, %s70
    %s71 = sphi 0, %s68
    %s72 = sphi 0, %s71
    %s88 = sphi 0, %s72
    %s94 = sphi 0, %s96
    %s97 = sphi 0, %s94
    %s98 = sphi 0, %s97
    %s114 = sphi 0, %s98
    %s120 = sphi 0, %s122
    %s123 = sphi 0, %s120
    %s124 = sphi 0, %s123
    %s140 = sphi 0, %s124
  $region4: #{down_forward.3} parent=0 // loop_header_branch
    %14 = sbr.rel (%p12) target = $region8
  $region5: #{down_forward.3} parent=0 // loop_body
    %s16 = ssub.s32 %s11, 1
    %s17 = ssub.s32 %s11, 2
    %s18 = sadd.s32 %s11, 1
    %s19 = ssub.s32 %s11, %s18
    %p20 = scmp.eq.s32.totalorder %s19, 0
    %s22 = sadd.s32 %s21, 1
    %s23 = scalar_select %p20, %s21, %s22
    %p26 = pneg %p20
    %p27 = scmp.eq.s32.totalorder %s11, 1
    %p28 = por %p26, %p27
    %p29 = scmp.ne.s32.totalorder %s21, %s24
    %p30 = scmp.eq.s32.totalorder %s11, 0
    %p31 = por %p29, %p30
    %p32 = scmp.ne.s32.totalorder %s21, %s24
    %p33 = scmp.eq.s32.totalorder %s16, 1
    %p34 = por %p32, %p33
    %p35 = scmp.ne.s32.totalorder %s24, %s25
    %p36 = scmp.eq.s32.totalorder %s16, 0
    %p37 = por %p35, %p36
    %p38 = scmp.ne.s32.totalorder %s24, %s25
    %p39 = scmp.eq.s32.totalorder %s17, 1
    %p40 = por %p38, %p39
    %p42 = scmp.ne.s32.totalorder %s25, %s41
    %p43 = scmp.eq.s32.totalorder %s17, 0
    %p44 = por %p42, %p43
    %s46 = sadd.s32 %s45, 1
    %p49 = scmp.eq.s32.totalorder %s11, 1
    %p50 = scmp.ne.s32.totalorder %s45, %s47
    %p51 = scmp.eq.s32.totalorder %s11, 0
    %p52 = por %p50, %p51
    %p53 = scmp.ne.s32.totalorder %s45, %s47
    %p54 = scmp.eq.s32.totalorder %s16, 1
    %p55 = por %p53, %p54
    %p56 = scmp.ne.s32.totalorder %s47, %s48
    %p57 = scmp.eq.s32.totalorder %s16, 0
    %p58 = por %p56, %p57
    %p59 = scmp.ne.s32.totalorder %s47, %s48
    %p60 = scmp.eq.s32.totalorder %s17, 1
    %p61 = por %p59, %p60
    %p63 = scmp.ne.s32.totalorder %s48, %s62
    %p64 = scmp.eq.s32.totalorder %s17, 0
    %p65 = por %p63, %p64
    %s66 = ssub.s32 %s11, %s18
    %p67 = scmp.eq.s32.totalorder %s66, 0
    %s69 = sadd.s32 %s68, 1
    %s70 = scalar_select %p67, %s68, %s69
    %p73 = pneg %p67
    %p74 = scmp.eq.s32.totalorder %s11, 1
    %p75 = por %p73, %p74
    %p76 = scmp.ne.s32.totalorder %s68, %s71
    %p77 = scmp.eq.s32.totalorder %s11, 0
    %p78 = por %p76, %p77
    %p79 = scmp.ne.s32.totalorder %s68, %s71
    %p80 = scmp.eq.s32.totalorder %s16, 1
    %p81 = por %p79, %p80
    %p82 = scmp.ne.s32.totalorder %s71, %s72
    %p83 = scmp.eq.s32.totalorder %s16, 0
    %p84 = por %p82, %p83
    %p85 = scmp.ne.s32.totalorder %s71, %s72
    %p86 = scmp.eq.s32.totalorder %s17, 1
    %p87 = por %p85, %p86
    %p89 = scmp.ne.s32.totalorder %s72, %s88
    %p90 = scmp.eq.s32.totalorder %s17, 0
    %p91 = por %p89, %p90
    %s92 = ssub.s32 %s11, %s18
    %p93 = scmp.eq.s32.totalorder %s92, 0
    %s95 = sadd.s32 %s94, 1
    %s96 = scalar_select %p93, %s94, %s95
    %p99 = pneg %p93
    %p100 = scmp.eq.s32.totalorder %s11, 1
    %p101 = por %p99, %p100
    %p102 = scmp.ne.s32.totalorder %s94, %s97
    %p103 = scmp.eq.s32.totalorder %s11, 0
    %p104 = por %p102, %p103
    %p105 = scmp.ne.s32.totalorder %s94, %s97
    %p106 = scmp.eq.s32.totalorder %s16, 1
    %p107 = por %p105, %p106
    %p108 = scmp.ne.s32.totalorder %s97, %s98
    %p109 = scmp.eq.s32.totalorder %s16, 0
    %p110 = por %p108, %p109
    %p111 = scmp.ne.s32.totalorder %s97, %s98
    %p112 = scmp.eq.s32.totalorder %s17, 1
    %p113 = por %p111, %p112
    %p115 = scmp.ne.s32.totalorder %s98, %s114
    %p116 = scmp.eq.s32.totalorder %s17, 0
    %p117 = por %p115, %p116
    %s118 = ssub.s32 %s11, %s18
    %p119 = scmp.eq.s32.totalorder %s118, 0
    %s121 = sadd.s32 %s120, 1
    %s122 = scalar_select %p119, %s120, %s121
    %p125 = pneg %p119
    %p126 = scmp.eq.s32.totalorder %s11, 1
    %p127 = por %p125, %p126
    %p128 = scmp.ne.s32.totalorder %s120, %s123
    %p129 = scmp.eq.s32.totalorder %s11, 0
    %p130 = por %p128, %p129
    %p131 = scmp.ne.s32.totalorder %s120, %s123
    %p132 = scmp.eq.s32.totalorder %s16, 1
    %p133 = por %p131, %p132
    %p134 = scmp.ne.s32.totalorder %s123, %s124
    %p135 = scmp.eq.s32.totalorder %s16, 0
    %p136 = por %p134, %p135
    %p137 = scmp.ne.s32.totalorder %s123, %s124
    %p138 = scmp.eq.s32.totalorder %s17, 1
    %p139 = por %p137, %p138
    %p141 = scmp.ne.s32.totalorder %s124, %s140
    %p142 = scmp.eq.s32.totalorder %s17, 0
    %p143 = por %p141, %p142
    %p144 = scmp.le.s32.totalorder 1, %s11
    %p145 = scmp.lt.s32.totalorder %s11, 3
    %p146 = pnand %p144, %p145
    %p147 = pneg %p146
    // Predicated region
    $region9: #{down_forward.3} parent=5 // pred_check
      _
    $region10: #{down_forward.3} parent=5 // pred_check_branch
      %149 = sbr.rel (%p146) target = $region12
    $region11: #{down_forward.3} parent=5 // pred_region
      %s150 = ssub.s32 %s11, 1
      // Predicated region
      $region13: #{down_forward.3} parent=11 // pred_check
        %p151 = pneg %p58
      $region14: #{down_forward.3} parent=11 // pred_check_branch
        %153 = sbr.rel (%p151) target = $region16
      $region15: #{down_forward.3} parent=11 // pred_region
        _
      $region16: #{down_forward.3} parent=11 // pred_fallthru
        _
    $region12: #{down_forward.3} parent=5 // pred_fallthru
      _
    %p154 = scmp.lt.s32.totalorder %s11, 2
    // Predicated region
    $region17: #{down_forward.3} parent=5 // pred_check
      %p155 = pneg %p154
    $region18: #{down_forward.3} parent=5 // pred_check_branch
      %157 = sbr.rel (%p155) target = $region20
    $region19: #{down_forward.3} parent=5 // pred_region
      // Predicated region
      $region21: #{down_forward.3} parent=19 // pred_check
        %p158 = pneg %p31
      $region22: #{down_forward.3} parent=19 // pred_check_branch
        %160 = sbr.rel (%p158) target = $region24
      $region23: #{down_forward.3} parent=19 // pred_region
        %p161 = scmp.lt.s32.totalorder %s11, 1
        %s162 = scalar_select %p161, %s11, 1
        %s163 = smul.addr %s162, 16
        %s164 = smul.addr %s163, 8
        %s165 = scalar_lea.vmem %s0, %s164
      $region24: #{down_forward.3} parent=19 // pred_fallthru
        _
    $region20: #{down_forward.3} parent=5 // pred_fallthru
      _
    %p166 = scmp.le.s32.totalorder 1, %s11
    %p167 = scmp.lt.s32.totalorder %s11, 3
    %p168 = pnand %p166, %p167
    %p169 = pneg %p168
    // Predicated region
    $region25: #{down_forward.3} parent=5 // pred_check
      _
    $region26: #{down_forward.3} parent=5 // pred_check_branch
      %171 = sbr.rel (%p168) target = $region28
    $region27: #{down_forward.3} parent=5 // pred_region
      %s172 = ssub.s32 %s11, 1
      %p173 = scmp.lt.s32.totalorder %s16, 1
      %s174 = scalar_select %p173, %s16, 1
      %s175 = smul.addr %s174, 16
      %s176 = smul.addr %s175, 8
      %s177 = scalar_lea.vmem %s0, %s176
      %p178 = pneg %p37
      %p179 = pneg %p34
      %p180 = pneg %p58
      %p181 = pneg %p55
      %p182 = pneg %p84
      %p183 = pneg %p81
      %p184 = scmp.lt.s32.totalorder %s16, 1
      %s185 = scalar_select %p184, %s16, 1
      %s186 = smul.addr %s185, 8
      %s187 = smul.addr %s186, 4
      %s188 = scalar_lea.vmem %s2, %s187
      %p189 = pneg %p110
      %p190 = pneg %p107
      %p191 = scmp.lt.s32.totalorder %s16, 1
      %s192 = scalar_select %p191, %s16, 1
      %s193 = scalar_lea.vmem %s3, %s192
      %p194 = pneg %p136
      %p195 = pneg %p133
      %p196 = scmp.lt.s32.totalorder %s16, 1
      %s197 = scalar_select %p196, %s16, 1
      %s198 = scalar_lea.vmem %s4, %s197
      %p199 = scmp.lt.s32.totalorder %s16, 1
      %s200 = scalar_select %p199, %s16, 1
      %s201 = smul.addr %s200, 16
      %s202 = smul.addr %s201, 8
      %s203 = scalar_lea.vmem %s0, %s202
      %p204 = scmp.lt.s32.totalorder %s16, 1
      %s205 = scalar_select %p204, %s16, 1
      %s206 = smul.addr %s205, 8
      %s207 = smul.addr %s206, 4
      %s208 = scalar_lea.vmem %s2, %s207
      %p209 = scmp.lt.s32.totalorder %s16, 1
      %s210 = scalar_select %p209, %s16, 1
      %s211 = scalar_lea.vmem %s3, %s210
      %p212 = scmp.lt.s32.totalorder %s16, 1
      %s213 = scalar_select %p212, %s16, 1
      %s214 = scalar_lea.vmem %s4, %s213
      %vm216 = vcmask 31744
      %217 = vst.msk [vmem:[#allocation2] sm:$0xff] %vm216, 0.0
      %218 = vst.msk [vmem:[#allocation2 + $0x8] sm:$0xff] %vm216, 0.0
      %219 = vst.msk [vmem:[#allocation2 + $0x50] sm:$0xff] %vm216, 0.0
      %220 = vst.msk [vmem:[#allocation2 + $0x58] sm:$0xff] %vm216, 0.0
      %v221 = vld [vmem:[%s203] sm:$0xff]
      %v222 = vld [vmem:[%s203 + $0x8] sm:$0xff]
      %v223 = vld [vmem:[%s203 + $0x10] sm:$0xff]
      %v224 = vld [vmem:[%s203 + $0x18] sm:$0xff]
      %v225 = vld [vmem:[%s203 + $0x20] sm:$0xff]
      %v226 = vld [vmem:[%s203 + $0x28] sm:$0xff]
      %v227 = vld [vmem:[%s203 + $0x30] sm:$0xff]
      %v228 = vld [vmem:[%s203 + $0x38] sm:$0xff]
      %v229 = vld [vmem:[%s203 + $0x40] sm:$0xff]
      %v230 = vld [vmem:[%s203 + $0x48] sm:$0xff]
      %v231 = vld [vmem:[%s203 + $0x50] sm:$0xff]
      %v232 = vld [vmem:[%s203 + $0x58] sm:$0xff]
      %v233 = vld [vmem:[%s203 + $0x60] sm:$0xff]
      %v234 = vld [vmem:[%s203 + $0x68] sm:$0xff]
      %v235 = vld [vmem:[%s203 + $0x70] sm:$0xff]
      %v236 = vld [vmem:[%s203 + $0x78] sm:$0xff]
      %v237 = vmax.f32 %v221, %v222
      %v238 = vmax.f32 %v223, %v224
      %v239 = vmax.f32 %v225, %v226
      %v240 = vmax.f32 %v227, %v228
      %v241 = vmax.f32 %v229, %v230
      %v242 = vmax.f32 %v231, %v232
      %v243 = vmax.f32 %v233, %v234
      %v244 = vmax.f32 %v235, %v236
      %253 = vrot.lane.b32.xlu0 %v237, 124
      %v254 = vpop.permute.xlu0 %253
      %255 = vrot.lane.b32.xlu0 %v238, 124
      %v256 = vpop.permute.xlu0 %255
      %257 = vrot.lane.b32.xlu0 %v239, 124
      %v258 = vpop.permute.xlu0 %257
      %259 = vrot.lane.b32.xlu0 %v240, 124
      %v260 = vpop.permute.xlu0 %259
      %261 = vrot.lane.b32.xlu0 %v241, 124
      %v262 = vpop.permute.xlu0 %261
      %263 = vrot.lane.b32.xlu0 %v242, 124
      %v264 = vpop.permute.xlu0 %263
      %265 = vrot.lane.b32.xlu0 %v243, 124
      %v266 = vpop.permute.xlu0 %265
      %267 = vrot.lane.b32.xlu0 %v244, 124
      %v268 = vpop.permute.xlu0 %267
      %v277 = vmax.f32 %v237, %v254
      %v278 = vmax.f32 %v238, %v256
      %v279 = vmax.f32 %v239, %v258
      %v280 = vmax.f32 %v240, %v260
      %v281 = vmax.f32 %v241, %v262
      %v282 = vmax.f32 %v242, %v264
      %v283 = vmax.f32 %v243, %v266
      %v284 = vmax.f32 %v244, %v268
      %285 = vst.msk [vmem:[#allocation2 + $0x10] sm:$0xff] %vm216, %v277
      %286 = vst.msk [vmem:[#allocation2 + $0x18] sm:$0xff] %vm216, %v278
      %287 = vst.msk [vmem:[#allocation2 + $0x20] sm:$0xff] %vm216, %v279
      %288 = vst.msk [vmem:[#allocation2 + $0x28] sm:$0xff] %vm216, %v280
      %289 = vst.msk [vmem:[#allocation2 + $0x30] sm:$0xff] %vm216, %v281
      %290 = vst.msk [vmem:[#allocation2 + $0x38] sm:$0xff] %vm216, %v282
      %291 = vst.msk [vmem:[#allocation2 + $0x40] sm:$0xff] %vm216, %v283
      %292 = vst.msk [vmem:[#allocation2 + $0x48] sm:$0xff] %vm216, %v284
      %v293 = vlaneseq
      %v294 = vshrl.u32 %v293, 7
      %v295 = vadd.s32 %v294, 8
      %v296 = vadd.s32 %v294, 16
      %v297 = vadd.s32 %v294, 24
      %v298 = vadd.s32 %v294, 32
      %v299 = vadd.s32 %v294, 40
      %v300 = vadd.s32 %v294, 48
      %v301 = vadd.s32 %v294, 56
      %vm302 = vcmp.lt.s32.totalorder %v294, 0
      %v303 = vsub.s32 0, %v294
      %v304 = vsel %vm302, %v303, %v294
      %v305 = vshrl.u32 %v304, 3
      %v306 = vand.u32 %v304, 7
      %v307 = vsub.s32 0, %v306
      %v308 = vsel %vm302, %v307, %v306
      %vm309 = vcmp.lt.s32.totalorder %v295, 0
      %v310 = vsub.s32 0, %v295
      %v311 = vsel %vm309, %v310, %v295
      %v312 = vshrl.u32 %v311, 3
      %v313 = vand.u32 %v311, 7
      %v314 = vsub.s32 0, %v313
      %v315 = vsel %vm309, %v314, %v313
      %vm316 = vcmp.lt.s32.totalorder %v296, 0
      %v317 = vsub.s32 0, %v296
      %v318 = vsel %vm316, %v317, %v296
      %v319 = vshrl.u32 %v318, 3
      %v320 = vand.u32 %v318, 7
      %v321 = vsub.s32 0, %v320
      %v322 = vsel %vm316, %v321, %v320
      %vm323 = vcmp.lt.s32.totalorder %v297, 0
      %v324 = vsub.s32 0, %v297
      %v325 = vsel %vm323, %v324, %v297
      %v326 = vshrl.u32 %v325, 3
      %v327 = vand.u32 %v325, 7
      %v328 = vsub.s32 0, %v327
      %v329 = vsel %vm323, %v328, %v327
      %vm330 = vcmp.lt.s32.totalorder %v298, 0
      %v331 = vsub.s32 0, %v298
      %v332 = vsel %vm330, %v331, %v298
      %v333 = vshrl.u32 %v332, 3
      %v334 = vand.u32 %v332, 7
      %v335 = vsub.s32 0, %v334
      %v336 = vsel %vm330, %v335, %v334
      %vm337 = vcmp.lt.s32.totalorder %v299, 0
      %v338 = vsub.s32 0, %v299
      %v339 = vsel %vm337, %v338, %v299
      %v340 = vshrl.u32 %v339, 3
      %v341 = vand.u32 %v339, 7
      %v342 = vsub.s32 0, %v341
      %v343 = vsel %vm337, %v342, %v341
      %vm344 = vcmp.lt.s32.totalorder %v300, 0
      %v345 = vsub.s32 0, %v300
      %v346 = vsel %vm344, %v345, %v300
      %v347 = vshrl.u32 %v346, 3
      %v348 = vand.u32 %v346, 7
      %v349 = vsub.s32 0, %v348
      %v350 = vsel %vm344, %v349, %v348
      %vm351 = vcmp.lt.s32.totalorder %v301, 0
      %v352 = vsub.s32 0, %v301
      %v353 = vsel %vm351, %v352, %v301
      %v354 = vshrl.u32 %v353, 3
      %v355 = vand.u32 %v353, 7
      %v356 = vsub.s32 0, %v355
      %v357 = vsel %vm351, %v356, %v355
      %vm358 = vcmp.ne.s32.totalorder %v308, 0
      %vm359 = vcmp.ne.s32.totalorder %v315, 0
      %vm360 = vcmp.ne.s32.totalorder %v322, 0
      %vm361 = vcmp.ne.s32.totalorder %v329, 0
      %vm362 = vcmp.ne.s32.totalorder %v336, 0
      %vm363 = vcmp.ne.s32.totalorder %v343, 0
      %vm364 = vcmp.ne.s32.totalorder %v350, 0
      %vm365 = vcmp.ne.s32.totalorder %v357, 0
      %vm366 = vcmp.lt.s32.totalorder %v308, 0
      %vm367 = vcmp.lt.s32.totalorder %v315, 0
      %vm368 = vcmp.lt.s32.totalorder %v322, 0
      %vm369 = vcmp.lt.s32.totalorder %v329, 0
      %vm370 = vcmp.lt.s32.totalorder %v336, 0
      %vm371 = vcmp.lt.s32.totalorder %v343, 0
      %vm372 = vcmp.lt.s32.totalorder %v350, 0
      %vm373 = vcmp.lt.s32.totalorder %v357, 0
      %vm374 = vmand %vm366, %vm358
      %vm375 = vmand %vm367, %vm359
      %vm376 = vmand %vm368, %vm360
      %vm377 = vmand %vm369, %vm361
      %vm378 = vmand %vm370, %vm362
      %vm379 = vmand %vm371, %vm363
      %vm380 = vmand %vm372, %vm364
      %vm381 = vmand %vm373, %vm365
      %v382 = vadd.s32 %v308, 8
      %v383 = vadd.s32 %v315, 8
      %v384 = vadd.s32 %v322, 8
      %v385 = vadd.s32 %v329, 8
      %v386 = vadd.s32 %v336, 8
      %v387 = vadd.s32 %v343, 8
      %v388 = vadd.s32 %v350, 8
      %v389 = vadd.s32 %v357, 8
      %v390 = vsel %vm374, %v382, %v308
      %v391 = vsel %vm375, %v383, %v315
      %v392 = vsel %vm376, %v384, %v322
      %v393 = vsel %vm377, %v385, %v329
      %v394 = vsel %vm378, %v386, %v336
      %v395 = vsel %vm379, %v387, %v343
      %v396 = vsel %vm380, %v388, %v350
      %v397 = vsel %vm381, %v389, %v357
      %vm398 = vcmp.gt.s32.totalorder %v390, 0
      %vm399 = vcmp.gt.s32.totalorder %v391, 0
      %vm400 = vcmp.gt.s32.totalorder %v392, 0
      %vm401 = vcmp.gt.s32.totalorder %v393, 0
      %vm402 = vcmp.gt.s32.totalorder %v394, 0
      %vm403 = vcmp.gt.s32.totalorder %v395, 0
      %vm404 = vcmp.gt.s32.totalorder %v396, 0
      %vm405 = vcmp.gt.s32.totalorder %v397, 0
      %vm406 = vcmp.lt.s32.totalorder %v390, 7
      %vm407 = vcmp.lt.s32.totalorder %v391, 7
      %vm408 = vcmp.lt.s32.totalorder %v392, 7
      %vm409 = vcmp.lt.s32.totalorder %v393, 7
      %vm410 = vcmp.lt.s32.totalorder %v394, 7
      %vm411 = vcmp.lt.s32.totalorder %v395, 7
      %vm412 = vcmp.lt.s32.totalorder %v396, 7
      %vm413 = vcmp.lt.s32.totalorder %v397, 7
      %v414 = vld [vmem:[#allocation2 + $0x7] sm:$0xff]
      %v415 = vld [vmem:[#allocation2 + $0xf] sm:$0xff]
      %v416 = vld [vmem:[#allocation2 + $0x17] sm:$0xff]
      %v417 = vld [vmem:[#allocation2 + $0x1f] sm:$0xff]
      %v418 = vld [vmem:[#allocation2 + $0x27] sm:$0xff]
      %v419 = vld [vmem:[#allocation2 + $0x2f] sm:$0xff]
      %v420 = vld [vmem:[#allocation2 + $0x37] sm:$0xff]
      %v421 = vld [vmem:[#allocation2 + $0x3f] sm:$0xff]
      %v422 = vsel %vm398, 1, 0
      %v423 = vsel %vm399, 1, 0
      %v424 = vsel %vm400, 1, 0
      %v425 = vsel %vm401, 1, 0
      %v426 = vsel %vm402, 1, 0
      %v427 = vsel %vm403, 1, 0
      %v428 = vsel %vm404, 1, 0
      %v429 = vsel %vm405, 1, 0
      %vm430 = vcmp.eq.s32.totalorder %v422, 1
      %vm431 = vcmp.eq.s32.totalorder %v423, 1
      %vm432 = vcmp.eq.s32.totalorder %v424, 1
      %vm433 = vcmp.eq.s32.totalorder %v425, 1
      %vm434 = vcmp.eq.s32.totalorder %v426, 1
      %vm435 = vcmp.eq.s32.totalorder %v427, 1
      %vm436 = vcmp.eq.s32.totalorder %v428, 1
      %vm437 = vcmp.eq.s32.totalorder %v429, 1
      %v438 = vsel %vm430, %v414, 0.0
      %v439 = vsel %vm431, %v415, 0.0
      %v440 = vsel %vm432, %v416, 0.0
      %v441 = vsel %vm433, %v417, 0.0
      %v442 = vsel %vm434, %v418, 0.0
      %v443 = vsel %vm435, %v419, 0.0
      %v444 = vsel %vm436, %v420, 0.0
      %v445 = vsel %vm437, %v421, 0.0
      %v446 = vpack.c.bf16 %v439, %v438
      %v447 = vpack.c.bf16 %v441, %v440
      %v448 = vpack.c.bf16 %v443, %v442
      %v449 = vpack.c.bf16 %v445, %v444
      %v450 = vld [vmem:[%s1] sm:$0x3]
      %v452 = vsel %vm216, %v446, 0
      %v455 = vsel %vm216, %v447, 0
      %v458 = vsel %vm216, %v448, 0
      %v461 = vsel %vm216, %v449, 0
      %vm463 = vcmask 1041408
      %v465 = vsel %vm463, %v450, 0
      %467 = vmatprep.subr.bf16.mxu0 0
      %468 = vmatpush1.bf16.msra.mxu0 %v465
      %469 = vmatprep.subr.bf16.mxu0 0
      %470 = vmatpush1.bf16.msra.mxu0 0
      %471 = vmatprep.subr.bf16.mxu0 0
      %472 = vmatpush1.bf16.msra.mxu0 0
      %473 = vmatprep.subr.bf16.mxu0 0
      %474 = vmatpush1.bf16.msra.mxu0 0
      %475 = vmatprep.subr.bf16.mxu0 0
      %476 = vmatpush1.bf16.msra.mxu0 0
      %477 = vmatprep.subr.bf16.mxu0 0
      %478 = vmatpush1.bf16.msra.mxu0 0
      %479 = vmatprep.subr.bf16.mxu0 0
      %480 = vmatpush1.bf16.msra.mxu0 0
      %481 = vmatprep.subr.bf16.mxu0 0
      %482 = vmatpush1.bf16.msra.mxu0 0
      %483 = vmatprep.subr.bf16.mxu0 0
      %484 = vmatpush1.bf16.msra.mxu0 0
      %485 = vmatprep.subr.bf16.mxu0 0
      %486 = vmatpush1.bf16.msra.mxu0 0
      %487 = vmatprep.subr.bf16.mxu0 0
      %488 = vmatpush1.bf16.msra.mxu0 0
      %489 = vmatprep.subr.bf16.mxu0 0
      %490 = vmatpush1.bf16.msra.mxu0 0
      %491 = vmatprep.subr.bf16.mxu0 0
      %492 = vmatpush1.bf16.msra.mxu0 0
      %493 = vmatprep.subr.bf16.mxu0 0
      %494 = vmatpush1.bf16.msra.mxu0 0
      %495 = vmatprep.subr.bf16.mxu0 0
      %496 = vmatpush1.bf16.msra.mxu0 0
      %497 = vmatprep.subr.bf16.mxu0 0
      %498 = vmatpush1.bf16.msra.mxu0 0
      %499 = vmatprep.mubr.bf16.mxu0 0
      %500 = vmatmul.mubr.bf16.gmra.mrb[0].mxu0 %v452
      %v501 = vpop.f32.mrb[0].mxu0
      %v502 = vadd.f32 0.0, %v501
      %v503 = vpop.f32.mrb[0].mxu0
      %v504 = vpop.f32.mrb[0].mxu0
      %v505 = vadd.f32 0.0, %v504
      %v506 = vpop.f32.mrb[0].mxu0
      %507 = vmatprep.mubr.bf16.mxu0 0
      %508 = vmatmul.mubr.bf16.gmra.mrb[0].mxu0 %v455
      %v509 = vpop.f32.mrb[0].mxu0
      %v510 = vadd.f32 0.0, %v509
      %v511 = vpop.f32.mrb[0].mxu0
      %v512 = vpop.f32.mrb[0].mxu0
      %v513 = vadd.f32 0.0, %v512
      %v514 = vpop.f32.mrb[0].mxu0
      %515 = vmatprep.mubr.bf16.mxu0 0
      %516 = vmatmul.mubr.bf16.gmra.mrb[0].mxu0 %v458
      %v517 = vpop.f32.mrb[0].mxu0
      %v518 = vadd.f32 0.0, %v517
      %v519 = vpop.f32.mrb[0].mxu0
      %v520 = vpop.f32.mrb[0].mxu0
      %v521 = vadd.f32 0.0, %v520
      %v522 = vpop.f32.mrb[0].mxu0
      %523 = vmatprep.mubr.bf16.mxu0 0
      %524 = vmatmul.mubr.bf16.gmra.mrb[0].mxu0 %v461
      %v525 = vpop.f32.mrb[0].mxu0
      %v526 = vadd.f32 0.0, %v525
      %v527 = vpop.f32.mrb[0].mxu0
      %v528 = vpop.f32.mrb[0].mxu0
      %v529 = vadd.f32 0.0, %v528
      %v530 = vpop.f32.mrb[0].mxu0
      %531 = vdwg.mxu0
      %vm532 = vcmask 64512
      %533 = vst.msk [vmem:[#allocation3] sm:$0xff] %vm532, %v502
      %534 = vst.msk [vmem:[#allocation3 + $0x8] sm:$0xff] %vm532, %v505
      %535 = vst.msk [vmem:[#allocation3 + $0x10] sm:$0xff] %vm532, %v510
      %536 = vst.msk [vmem:[#allocation3 + $0x18] sm:$0xff] %vm532, %v513
      %537 = vst.msk [vmem:[#allocation3 + $0x20] sm:$0xff] %vm532, %v518
      %538 = vst.msk [vmem:[#allocation3 + $0x28] sm:$0xff] %vm532, %v521
      %539 = vst.msk [vmem:[#allocation3 + $0x30] sm:$0xff] %vm532, %v526
      %540 = vst.msk [vmem:[#allocation3 + $0x38] sm:$0xff] %vm532, %v529
      %v541 = vld [vmem:[#allocation2 + $0x8] sm:$0xff]
      %v542 = vld [vmem:[#allocation2 + $0x10] sm:$0xff]
      %v543 = vld [vmem:[#allocation2 + $0x18] sm:$0xff]
      %v544 = vld [vmem:[#allocation2 + $0x20] sm:$0xff]
      %v545 = vld [vmem:[#allocation2 + $0x28] sm:$0xff]
      %v546 = vld [vmem:[#allocation2 + $0x30] sm:$0xff]
      %v547 = vld [vmem:[#allocation2 + $0x38] sm:$0xff]
      %v548 = vld [vmem:[#allocation2 + $0x40] sm:$0xff]
      %v549 = vpack.c.bf16 %v542, %v541
      %v550 = vpack.c.bf16 %v544, %v543
      %v551 = vpack.c.bf16 %v546, %v545
      %v552 = vpack.c.bf16 %v548, %v547
      %s553 = scalar_lea.vmem %s1, 2
      %v554 = vld [vmem:[%s553] sm:$0x3]
      %v556 = vsel %vm216, %v549, 0
      %v559 = vsel %vm216, %v550, 0
      %v562 = vsel %vm216, %v551, 0
      %v565 = vsel %vm216, %v552, 0
      %v568 = vsel %vm463, %v554, 0
      %570 = vmatprep.subr.bf16.mxu0 0
      %571 = vmatpush1.bf16.msra.mxu0 %v568
      %572 = vmatprep.subr.bf16.mxu0 0
      %573 = vmatpush1.bf16.msra.mxu0 0
      %574 = vmatprep.subr.bf16.mxu0 0
      %575 = vmatpush1.bf16.msra.mxu0 0
      %576 = vmatprep.subr.bf16.mxu0 0
      %577 = vmatpush1.bf16.msra.mxu0 0
      %578 = vmatprep.subr.bf16.mxu0 0
      %579 = vmatpush1.bf16.msra.mxu0 0
      %580 = vmatprep.subr.bf16.mxu0 0
      %581 = vmatpush1.bf16.msra.mxu0 0
      %582 = vmatprep.subr.bf16.mxu0 0
      %583 = vmatpush1.bf16.msra.mxu0 0
      %584 = vmatprep.subr.bf16.mxu0 0
      %585 = vmatpush1.bf16.msra.mxu0 0
      %586 = vmatprep.subr.bf16.mxu0 0
      %587 = vmatpush1.bf16.msra.mxu0 0
      %588 = vmatprep.subr.bf16.mxu0 0
      %589 = vmatpush1.bf16.msra.mxu0 0
      %590 = vmatprep.subr.bf16.mxu0 0
      %591 = vmatpush1.bf16.msra.mxu0 0
      %592 = vmatprep.subr.bf16.mxu0 0
      %593 = vmatpush1.bf16.msra.mxu0 0
      %594 = vmatprep.subr.bf16.mxu0 0
      %595 = vmatpush1.bf16.msra.mxu0 0
      %596 = vmatprep.subr.bf16.mxu0 0
      %597 = vmatpush1.bf16.msra.mxu0 0
      %598 = vmatprep.subr.bf16.mxu0 0
      %599 = vmatpush1.bf16.msra.mxu0 0
      %600 = vmatprep.subr.bf16.mxu0 0
      %601 = vmatpush1.bf16.msra.mxu0 0
      %602 = vmatprep.mubr.bf16.mxu0 0
      %603 = vmatmul.mubr.bf16.gmra.mrb[0].mxu0 %v556
      %v604 = vpop.f32.mrb[0].mxu0
      %v605 = vadd.f32 0.0, %v604
      %v606 = vpop.f32.mrb[0].mxu0
      %v607 = vpop.f32.mrb[0].mxu0
      %v608 = vadd.f32 0.0, %v607
      %v609 = vpop.f32.mrb[0].mxu0
      %610 = vmatprep.mubr.bf16.mxu0 0
      %611 = vmatmul.mubr.bf16.gmra.mrb[0].mxu0 %v559
      %v612 = vpop.f32.mrb[0].mxu0
      %v613 = vadd.f32 0.0, %v612
      %v614 = vpop.f32.mrb[0].mxu0
      %v615 = vpop.f32.mrb[0].mxu0
      %v616 = vadd.f32 0.0, %v615
      %v617 = vpop.f32.mrb[0].mxu0
      %618 = vmatprep.mubr.bf16.mxu0 0
      %619 = vmatmul.mubr.bf16.gmra.mrb[0].mxu0 %v562
      %v620 = vpop.f32.mrb[0].mxu0
      %v621 = vadd.f32 0.0, %v620
      %v622 = vpop.f32.mrb[0].mxu0
      %v623 = vpop.f32.mrb[0].mxu0
      %v624 = vadd.f32 0.0, %v623
      %v625 = vpop.f32.mrb[0].mxu0
      %626 = vmatprep.mubr.bf16.mxu0 0
      %627 = vmatmul.mubr.bf16.gmra.mrb[0].mxu0 %v565
      %v628 = vpop.f32.mrb[0].mxu0
      %v629 = vadd.f32 0.0, %v628
      %v630 = vpop.f32.mrb[0].mxu0
      %v631 = vpop.f32.mrb[0].mxu0
      %v632 = vadd.f32 0.0, %v631
      %v633 = vpop.f32.mrb[0].mxu0
      %634 = vdwg.mxu0
      %v635 = vld [vmem:[#allocation3] sm:$0xff]
      %v636 = vld [vmem:[#allocation3 + $0x8] sm:$0xff]
      %v637 = vld [vmem:[#allocation3 + $0x10] sm:$0xff]
      %v638 = vld [vmem:[#allocation3 + $0x18] sm:$0xff]
      %v639 = vld [vmem:[#allocation3 + $0x20] sm:$0xff]
      %v640 = vld [vmem:[#allocation3 + $0x28] sm:$0xff]
      %v641 = vld [vmem:[#allocation3 + $0x30] sm:$0xff]
      %v642 = vld [vmem:[#allocation3 + $0x38] sm:$0xff]
      %v643 = vadd.f32 %v635, %v605
      %v644 = vadd.f32 %v636, %v608
      %v645 = vadd.f32 %v637, %v613
      %v646 = vadd.f32 %v638, %v616
      %v647 = vadd.f32 %v639, %v621
      %v648 = vadd.f32 %v640, %v624
      %v649 = vadd.f32 %v641, %v629
      %v650 = vadd.f32 %v642, %v632
      %651 = vst.msk [vmem:[#allocation3] sm:$0xff] %vm532, %v643
      %652 = vst.msk [vmem:[#allocation3 + $0x8] sm:$0xff] %vm532, %v644
      %653 = vst.msk [vmem:[#allocation3 + $0x10] sm:$0xff] %vm532, %v645
      %654 = vst.msk [vmem:[#allocation3 + $0x18] sm:$0xff] %vm532, %v646
      %655 = vst.msk [vmem:[#allocation3 + $0x20] sm:$0xff] %vm532, %v647
      %656 = vst.msk [vmem:[#allocation3 + $0x28] sm:$0xff] %vm532, %v648
      %657 = vst.msk [vmem:[#allocation3 + $0x30] sm:$0xff] %vm532, %v649
      %658 = vst.msk [vmem:[#allocation3 + $0x38] sm:$0xff] %vm532, %v650
      %v659 = vld [vmem:[#allocation2 + $0x9] sm:$0xff]
      %v660 = vld [vmem:[#allocation2 + $0x11] sm:$0xff]
      %v661 = vld [vmem:[#allocation2 + $0x19] sm:$0xff]
      %v662 = vld [vmem:[#allocation2 + $0x21] sm:$0xff]
      %v663 = vld [vmem:[#allocation2 + $0x29] sm:$0xff]
      %v664 = vld [vmem:[#allocation2 + $0x31] sm:$0xff]
      %v665 = vld [vmem:[#allocation2 + $0x39] sm:$0xff]
      %v666 = vld [vmem:[#allocation2 + $0x41] sm:$0xff]
      %v667 = vsel %vm406, 1, 0
      %v668 = vsel %vm407, 1, 0
      %v669 = vsel %vm408, 1, 0
      %v670 = vsel %vm409, 1, 0
      %v671 = vsel %vm410, 1, 0
      %v672 = vsel %vm411, 1, 0
      %v673 = vsel %vm412, 1, 0
      %v674 = vsel %vm413, 1, 0
      %vm675 = vcmp.eq.s32.totalorder %v667, 1
      %vm676 = vcmp.eq.s32.totalorder %v668, 1
      %vm677 = vcmp.eq.s32.totalorder %v669, 1
      %vm678 = vcmp.eq.s32.totalorder %v670, 1
      %vm679 = vcmp.eq.s32.totalorder %v671, 1
      %vm680 = vcmp.eq.s32.totalorder %v672, 1
      %vm681 = vcmp.eq.s32.totalorder %v673, 1
      %vm682 = vcmp.eq.s32.totalorder %v674, 1
      %v683 = vsel %vm675, %v659, 0.0
      %v684 = vsel %vm676, %v660, 0.0
      %v685 = vsel %vm677, %v661, 0.0
      %v686 = vsel %vm678, %v662, 0.0
      %v687 = vsel %vm679, %v663, 0.0
      %v688 = vsel %vm680, %v664, 0.0
      %v689 = vsel %vm681, %v665, 0.0
      %v690 = vsel %vm682, %v666, 0.0
      %v691 = vpack.c.bf16 %v684, %v683
      %v692 = vpack.c.bf16 %v686, %v685
      %v693 = vpack.c.bf16 %v688, %v687
      %v694 = vpack.c.bf16 %v690, %v689
      %s695 = scalar_lea.vmem %s1, 4
      %v696 = vld [vmem:[%s695] sm:$0x3]
      %v698 = vsel %vm216, %v691, 0
      %v701 = vsel %vm216, %v692, 0
      %v704 = vsel %vm216, %v693, 0
      %v707 = vsel %vm216, %v694, 0
      %v710 = vsel %vm463, %v696, 0
      %712 = vmatprep.subr.bf16.mxu0 0
      %713 = vmatpush1.bf16.msra.mxu0 %v710
      %714 = vmatprep.subr.bf16.mxu0 0
      %715 = vmatpush1.bf16.msra.mxu0 0
      %716 = vmatprep.subr.bf16.mxu0 0
      %717 = vmatpush1.bf16.msra.mxu0 0
      %718 = vmatprep.subr.bf16.mxu0 0
      %719 = vmatpush1.bf16.msra.mxu0 0
      %720 = vmatprep.subr.bf16.mxu0 0
      %721 = vmatpush1.bf16.msra.mxu0 0
      %722 = vmatprep.subr.bf16.mxu0 0
      %723 = vmatpush1.bf16.msra.mxu0 0
      %724 = vmatprep.subr.bf16.mxu0 0
      %725 = vmatpush1.bf16.msra.mxu0 0
      %726 = vmatprep.subr.bf16.mxu0 0
      %727 = vmatpush1.bf16.msra.mxu0 0
      %728 = vmatprep.subr.bf16.mxu0 0
      %729 = vmatpush1.bf16.msra.mxu0 0
      %730 = vmatprep.subr.bf16.mxu0 0
      %731 = vmatpush1.bf16.msra.mxu0 0
      %732 = vmatprep.subr.bf16.mxu0 0
      %733 = vmatpush1.bf16.msra.mxu0 0
      %734 = vmatprep.subr.bf16.mxu0 0
      %735 = vmatpush1.bf16.msra.mxu0 0
      %736 = vmatprep.subr.bf16.mxu0 0
      %737 = vmatpush1.bf16.msra.mxu0 0
      %738 = vmatprep.subr.bf16.mxu0 0
      %739 = vmatpush1.bf16.msra.mxu0 0
      %740 = vmatprep.subr.bf16.mxu0 0
      %741 = vmatpush1.bf16.msra.mxu0 0
      %742 = vmatprep.subr.bf16.mxu0 0
      %743 = vmatpush1.bf16.msra.mxu0 0
      %744 = vmatprep.mubr.bf16.mxu0 0
      %745 = vmatmul.mubr.bf16.gmra.mrb[0].mxu0 %v698
      %v746 = vpop.f32.mrb[0].mxu0
      %v747 = vadd.f32 0.0, %v746
      %v748 = vpop.f32.mrb[0].mxu0
      %v749 = vpop.f32.mrb[0].mxu0
      %v750 = vadd.f32 0.0, %v749
      %v751 = vpop.f32.mrb[0].mxu0
      %752 = vmatprep.mubr.bf16.mxu0 0
      %753 = vmatmul.mubr.bf16.gmra.mrb[0].mxu0 %v701
      %v754 = vpop.f32.mrb[0].mxu0
      %v755 = vadd.f32 0.0, %v754
      %v756 = vpop.f32.mrb[0].mxu0
      %v757 = vpop.f32.mrb[0].mxu0
      %v758 = vadd.f32 0.0, %v757
      %v759 = vpop.f32.mrb[0].mxu0
      %760 = vmatprep.mubr.bf16.mxu0 0
      %761 = vmatmul.mubr.bf16.gmra.mrb[0].mxu0 %v704
      %v762 = vpop.f32.mrb[0].mxu0
      %v763 = vadd.f32 0.0, %v762
      %v764 = vpop.f32.mrb[0].mxu0
      %v765 = vpop.f32.mrb[0].mxu0
      %v766 = vadd.f32 0.0, %v765
      %v767 = vpop.f32.mrb[0].mxu0
      %768 = vmatprep.mubr.bf16.mxu0 0
      %769 = vmatmul.mubr.bf16.gmra.mrb[0].mxu0 %v707
      %v770 = vpop.f32.mrb[0].mxu0
      %v771 = vadd.f32 0.0, %v770
      %v772 = vpop.f32.mrb[0].mxu0
      %v773 = vpop.f32.mrb[0].mxu0
      %v774 = vadd.f32 0.0, %v773
      %v775 = vpop.f32.mrb[0].mxu0
      %776 = vdwg.mxu0
      %v777 = vld [vmem:[#allocation3] sm:$0xff]
      %v778 = vld [vmem:[#allocation3 + $0x8] sm:$0xff]
      %v779 = vld [vmem:[#allocation3 + $0x10] sm:$0xff]
      %v780 = vld [vmem:[#allocation3 + $0x18] sm:$0xff]
      %v781 = vld [vmem:[#allocation3 + $0x20] sm:$0xff]
      %v782 = vld [vmem:[#allocation3 + $0x28] sm:$0xff]
      %v783 = vld [vmem:[#allocation3 + $0x30] sm:$0xff]
      %v784 = vld [vmem:[#allocation3 + $0x38] sm:$0xff]
      %v785 = vadd.f32 %v777, %v747
      %v786 = vadd.f32 %v778, %v750
      %v787 = vadd.f32 %v779, %v755
      %v788 = vadd.f32 %v780, %v758
      %v789 = vadd.f32 %v781, %v763
      %v790 = vadd.f32 %v782, %v766
      %v791 = vadd.f32 %v783, %v771
      %v792 = vadd.f32 %v784, %v774
      %793 = vst.msk [vmem:[#allocation3] sm:$0xff] %vm532, %v785
      %794 = vst.msk [vmem:[#allocation3 + $0x8] sm:$0xff] %vm532, %v786
      %795 = vst.msk [vmem:[#allocation3 + $0x10] sm:$0xff] %vm532, %v787
      %796 = vst.msk [vmem:[#allocation3 + $0x18] sm:$0xff] %vm532, %v788
      %797 = vst.msk [vmem:[#allocation3 + $0x20] sm:$0xff] %vm532, %v789
      %798 = vst.msk [vmem:[#allocation3 + $0x28] sm:$0xff] %vm532, %v790
      %799 = vst.msk [vmem:[#allocation3 + $0x30] sm:$0xff] %vm532, %v791
      %800 = vst.msk [vmem:[#allocation3 + $0x38] sm:$0xff] %vm532, %v792
      %v801 = vld [vmem:[#allocation2 + $0xf] sm:$0xff]
      %v802 = vld [vmem:[#allocation2 + $0x17] sm:$0xff]
      %v803 = vld [vmem:[#allocation2 + $0x1f] sm:$0xff]
      %v804 = vld [vmem:[#allocation2 + $0x27] sm:$0xff]
      %v805 = vld [vmem:[#allocation2 + $0x2f] sm:$0xff]
      %v806 = vld [vmem:[#allocation2 + $0x37] sm:$0xff]
      %v807 = vld [vmem:[#allocation2 + $0x3f] sm:$0xff]
      %v808 = vld [vmem:[#allocation2 + $0x47] sm:$0xff]
      %v809 = vsel %vm430, %v801, 0.0
      %v810 = vsel %vm431, %v802, 0.0
      %v811 = vsel %vm432, %v803, 0.0
      %v812 = vsel %vm433, %v804, 0.0
      %v813 = vsel %vm434, %v805, 0.0
      %v814 = vsel %vm435, %v806, 0.0
      %v815 = vsel %vm436, %v807, 0.0
      %v816 = vsel %vm437, %v808, 0.0
      %v817 = vpack.c.bf16 %v810, %v809
      %v818 = vpack.c.bf16 %v812, %v811
      %v819 = vpack.c.bf16 %v814, %v813
      %v820 = vpack.c.bf16 %v816, %v815
      %s821 = scalar_lea.vmem %s1, 6
      %v822 = vld [vmem:[%s821] sm:$0x3]
      %v824 = vsel %vm216, %v817, 0
      %v827 = vsel %vm216, %v818, 0
      %v830 = vsel %vm216, %v819, 0
      %v833 = vsel %vm216, %v820, 0
      %v836 = vsel %vm463, %v822, 0
      %838 = vmatprep.subr.bf16.mxu0 0
      %839 = vmatpush1.bf16.msra.mxu0 %v836
      %840 = vmatprep.subr.bf16.mxu0 0
      %841 = vmatpush1.bf16.msra.mxu0 0
      %842 = vmatprep.subr.bf16.mxu0 0
      %843 = vmatpush1.bf16.msra.mxu0 0
      %844 = vmatprep.subr.bf16.mxu0 0
      %845 = vmatpush1.bf16.msra.mxu0 0
      %846 = vmatprep.subr.bf16.mxu0 0
      %847 = vmatpush1.bf16.msra.mxu0 0
      %848 = vmatprep.subr.bf16.mxu0 0
      %849 = vmatpush1.bf16.msra.mxu0 0
      %850 = vmatprep.subr.bf16.mxu0 0
      %851 = vmatpush1.bf16.msra.mxu0 0
      %852 = vmatprep.subr.bf16.mxu0 0
      %853 = vmatpush1.bf16.msra.mxu0 0
      %854 = vmatprep.subr.bf16.mxu0 0
      %855 = vmatpush1.bf16.msra.mxu0 0
      %856 = vmatprep.subr.bf16.mxu0 0
      %857 = vmatpush1.bf16.msra.mxu0 0
      %858 = vmatprep.subr.bf16.mxu0 0
      %859 = vmatpush1.bf16.msra.mxu0 0
      %860 = vmatprep.subr.bf16.mxu0 0
      %861 = vmatpush1.bf16.msra.mxu0 0
      %862 = vmatprep.subr.bf16.mxu0 0
      %863 = vmatpush1.bf16.msra.mxu0 0
      %864 = vmatprep.subr.bf16.mxu0 0
      %865 = vmatpush1.bf16.msra.mxu0 0
      %866 = vmatprep.subr.bf16.mxu0 0
      %867 = vmatpush1.bf16.msra.mxu0 0
      %868 = vmatprep.subr.bf16.mxu0 0
      %869 = vmatpush1.bf16.msra.mxu0 0
      %870 = vmatprep.mubr.bf16.mxu0 0
      %871 = vmatmul.mubr.bf16.gmra.mrb[0].mxu0 %v824
      %v872 = vpop.f32.mrb[0].mxu0
      %v873 = vadd.f32 0.0, %v872
      %v874 = vpop.f32.mrb[0].mxu0
      %v875 = vpop.f32.mrb[0].mxu0
      %v876 = vadd.f32 0.0, %v875
      %v877 = vpop.f32.mrb[0].mxu0
      %878 = vmatprep.mubr.bf16.mxu0 0
      %879 = vmatmul.mubr.bf16.gmra.mrb[0].mxu0 %v827
      %v880 = vpop.f32.mrb[0].mxu0
      %v881 = vadd.f32 0.0, %v880
      %v882 = vpop.f32.mrb[0].mxu0
      %v883 = vpop.f32.mrb[0].mxu0
      %v884 = vadd.f32 0.0, %v883
      %v885 = vpop.f32.mrb[0].mxu0
      %886 = vmatprep.mubr.bf16.mxu0 0
      %887 = vmatmul.mubr.bf16.gmra.mrb[0].mxu0 %v830
      %v888 = vpop.f32.mrb[0].mxu0
      %v889 = vadd.f32 0.0, %v888
      %v890 = vpop.f32.mrb[0].mxu0
      %v891 = vpop.f32.mrb[0].mxu0
      %v892 = vadd.f32 0.0, %v891
      %v893 = vpop.f32.mrb[0].mxu0
      %894 = vmatprep.mubr.bf16.mxu0 0
      %895 = vmatmul.mubr.bf16.gmra.mrb[0].mxu0 %v833
      %v896 = vpop.f32.mrb[0].mxu0
      %v897 = vadd.f32 0.0, %v896
      %v898 = vpop.f32.mrb[0].mxu0
      %v899 = vpop.f32.mrb[0].mxu0
      %v900 = vadd.f32 0.0, %v899
      %v901 = vpop.f32.mrb[0].mxu0
      %902 = vdwg.mxu0
      %v903 = vld [vmem:[#allocation3] sm:$0xff]
      %v904 = vld [vmem:[#allocation3 + $0x8] sm:$0xff]
      %v905 = vld [vmem:[#allocation3 + $0x10] sm:$0xff]
      %v906 = vld [vmem:[#allocation3 + $0x18] sm:$0xff]
      %v907 = vld [vmem:[#allocation3 + $0x20] sm:$0xff]
      %v908 = vld [vmem:[#allocation3 + $0x28] sm:$0xff]
      %v909 = vld [vmem:[#allocation3 + $0x30] sm:$0xff]
      %v910 = vld [vmem:[#allocation3 + $0x38] sm:$0xff]
      %v911 = vadd.f32 %v903, %v873
      %v912 = vadd.f32 %v904, %v876
      %v913 = vadd.f32 %v905, %v881
      %v914 = vadd.f32 %v906, %v884
      %v915 = vadd.f32 %v907, %v889
      %v916 = vadd.f32 %v908, %v892
      %v917 = vadd.f32 %v909, %v897
      %v918 = vadd.f32 %v910, %v900
      %919 = vst.msk [vmem:[#allocation3] sm:$0xff] %vm532, %v911
      %920 = vst.msk [vmem:[#allocation3 + $0x8] sm:$0xff] %vm532, %v912
      %921 = vst.msk [vmem:[#allocation3 + $0x10] sm:$0xff] %vm532, %v913
      %922 = vst.msk [vmem:[#allocation3 + $0x18] sm:$0xff] %vm532, %v914
      %923 = vst.msk [vmem:[#allocation3 + $0x20] sm:$0xff] %vm532, %v915
      %924 = vst.msk [vmem:[#allocation3 + $0x28] sm:$0xff] %vm532, %v916
      %925 = vst.msk [vmem:[#allocation3 + $0x30] sm:$0xff] %vm532, %v917
      %926 = vst.msk [vmem:[#allocation3 + $0x38] sm:$0xff] %vm532, %v918
      %v927 = vld [vmem:[#allocation2 + $0x10] sm:$0xff]
      %v928 = vld [vmem:[#allocation2 + $0x18] sm:$0xff]
      %v929 = vld [vmem:[#allocation2 + $0x20] sm:$0xff]
      %v930 = vld [vmem:[#allocation2 + $0x28] sm:$0xff]
      %v931 = vld [vmem:[#allocation2 + $0x30] sm:$0xff]
      %v932 = vld [vmem:[#allocation2 + $0x38] sm:$0xff]
      %v933 = vld [vmem:[#allocation2 + $0x40] sm:$0xff]
      %v934 = vld [vmem:[#allocation2 + $0x48] sm:$0xff]
      %v935 = vpack.c.bf16 %v928, %v927
      %v936 = vpack.c.bf16 %v930, %v929
      %v937 = vpack.c.bf16 %v932, %v931
      %v938 = vpack.c.bf16 %v934, %v933
      %s939 = scalar_lea.vmem %s1, 8
      %v940 = vld [vmem:[%s939] sm:$0x3]
      %v942 = vsel %vm216, %v935, 0
      %v945 = vsel %vm216, %v936, 0
      %v948 = vsel %vm216, %v937, 0
      %v951 = vsel %vm216, %v938, 0
      %v954 = vsel %vm463, %v940, 0
      %956 = vmatprep.subr.bf16.mxu0 0
      %957 = vmatpush1.bf16.msra.mxu0 %v954
      %958 = vmatprep.subr.bf16.mxu0 0
      %959 = vmatpush1.bf16.msra.mxu0 0
      %960 = vmatprep.subr.bf16.mxu0 0
      %961 = vmatpush1.bf16.msra.mxu0 0
      %962 = vmatprep.subr.bf16.mxu0 0
      %963 = vmatpush1.bf16.msra.mxu0 0
      %964 = vmatprep.subr.bf16.mxu0 0
      %965 = vmatpush1.bf16.msra.mxu0 0
      %966 = vmatprep.subr.bf16.mxu0 0
      %967 = vmatpush1.bf16.msra.mxu0 0
      %968 = vmatprep.subr.bf16.mxu0 0
      %969 = vmatpush1.bf16.msra.mxu0 0
      %970 = vmatprep.subr.bf16.mxu0 0
      %971 = vmatpush1.bf16.msra.mxu0 0
      %972 = vmatprep.subr.bf16.mxu0 0
      %973 = vmatpush1.bf16.msra.mxu0 0
      %974 = vmatprep.subr.bf16.mxu0 0
      %975 = vmatpush1.bf16.msra.mxu0 0
      %976 = vmatprep.subr.bf16.mxu0 0
      %977 = vmatpush1.bf16.msra.mxu0 0
      %978 = vmatprep.subr.bf16.mxu0 0
      %979 = vmatpush1.bf16.msra.mxu0 0
      %980 = vmatprep.subr.bf16.mxu0 0
      %981 = vmatpush1.bf16.msra.mxu0 0
      %982 = vmatprep.subr.bf16.mxu0 0
      %983 = vmatpush1.bf16.msra.mxu0 0
      %984 = vmatprep.subr.bf16.mxu0 0
      %985 = vmatpush1.bf16.msra.mxu0 0
      %986 = vmatprep.subr.bf16.mxu0 0
      %987 = vmatpush1.bf16.msra.mxu0 0
      %988 = vmatprep.mubr.bf16.mxu0 0
      %989 = vmatmul.mubr.bf16.gmra.mrb[0].mxu0 %v942
      %v990 = vpop.f32.mrb[0].mxu0
      %v991 = vadd.f32 0.0, %v990
      %v992 = vpop.f32.mrb[0].mxu0
      %v993 = vpop.f32.mrb[0].mxu0
      %v994 = vadd.f32 0.0, %v993
      %v995 = vpop.f32.mrb[0].mxu0
      %996 = vmatprep.mubr.bf16.mxu0 0
      %997 = vmatmul.mubr.bf16.gmra.mrb[0].mxu0 %v945
      %v998 = vpop.f32.mrb[0].mxu0
      %v999 = vadd.f32 0.0, %v998
      %v1000 = vpop.f32.mrb[0].mxu0
      %v1001 = vpop.f32.mrb[0].mxu0
      %v1002 = vadd.f32 0.0, %v1001
      %v1003 = vpop.f32.mrb[0].mxu0
      %1004 = vmatprep.mubr.bf16.mxu0 0
      %1005 = vmatmul.mubr.bf16.gmra.mrb[0].mxu0 %v948
      %v1006 = vpop.f32.mrb[0].mxu0
      %v1007 = vadd.f32 0.0, %v1006
      %v1008 = vpop.f32.mrb[0].mxu0
      %v1009 = vpop.f32.mrb[0].mxu0
      %v1010 = vadd.f32 0.0, %v1009
      %v1011 = vpop.f32.mrb[0].mxu0
      %1012 = vmatprep.mubr.bf16.mxu0 0
      %1013 = vmatmul.mubr.bf16.gmra.mrb[0].mxu0 %v951
      %v1014 = vpop.f32.mrb[0].mxu0
      %v1015 = vadd.f32 0.0, %v1014
      %v1016 = vpop.f32.mrb[0].mxu0
      %v1017 = vpop.f32.mrb[0].mxu0
      %v1018 = vadd.f32 0.0, %v1017
      %v1019 = vpop.f32.mrb[0].mxu0
      %1020 = vdwg.mxu0
      %v1021 = vld [vmem:[#allocation3] sm:$0xff]
      %v1022 = vld [vmem:[#allocation3 + $0x8] sm:$0xff]
      %v1023 = vld [vmem:[#allocation3 + $0x10] sm:$0xff]
      %v1024 = vld [vmem:[#allocation3 + $0x18] sm:$0xff]
      %v1025 = vld [vmem:[#allocation3 + $0x20] sm:$0xff]
      %v1026 = vld [vmem:[#allocation3 + $0x28] sm:$0xff]
      %v1027 = vld [vmem:[#allocation3 + $0x30] sm:$0xff]
      %v1028 = vld [vmem:[#allocation3 + $0x38] sm:$0xff]
      %v1029 = vadd.f32 %v1021, %v991
      %v1030 = vadd.f32 %v1022, %v994
      %v1031 = vadd.f32 %v1023, %v999
      %v1032 = vadd.f32 %v1024, %v1002
      %v1033 = vadd.f32 %v1025, %v1007
      %v1034 = vadd.f32 %v1026, %v1010
      %v1035 = vadd.f32 %v1027, %v1015
      %v1036 = vadd.f32 %v1028, %v1018
      %1037 = vst.msk [vmem:[#allocation3] sm:$0xff] %vm532, %v1029
      %1038 = vst.msk [vmem:[#allocation3 + $0x8] sm:$0xff] %vm532, %v1030
      %1039 = vst.msk [vmem:[#allocation3 + $0x10] sm:$0xff] %vm532, %v1031
      %1040 = vst.msk [vmem:[#allocation3 + $0x18] sm:$0xff] %vm532, %v1032
      %1041 = vst.msk [vmem:[#allocation3 + $0x20] sm:$0xff] %vm532, %v1033
      %1042 = vst.msk [vmem:[#allocation3 + $0x28] sm:$0xff] %vm532, %v1034
      %1043 = vst.msk [vmem:[#allocation3 + $0x30] sm:$0xff] %vm532, %v1035
      %1044 = vst.msk [vmem:[#allocation3 + $0x38] sm:$0xff] %vm532, %v1036
      %v1045 = vld [vmem:[#allocation2 + $0x11] sm:$0xff]
      %v1046 = vld [vmem:[#allocation2 + $0x19] sm:$0xff]
      %v1047 = vld [vmem:[#allocation2 + $0x21] sm:$0xff]
      %v1048 = vld [vmem:[#allocation2 + $0x29] sm:$0xff]
      %v1049 = vld [vmem:[#allocation2 + $0x31] sm:$0xff]
      %v1050 = vld [vmem:[#allocation2 + $0x39] sm:$0xff]
      %v1051 = vld [vmem:[#allocation2 + $0x41] sm:$0xff]
      %v1052 = vld [vmem:[#allocation2 + $0x49] sm:$0xff]
      %v1053 = vsel %vm675, %v1045, 0.0
      %v1054 = vsel %vm676, %v1046, 0.0
      %v1055 = vsel %vm677, %v1047, 0.0
      %v1056 = vsel %vm678, %v1048, 0.0
      %v1057 = vsel %vm679, %v1049, 0.0
      %v1058 = vsel %vm680, %v1050, 0.0
      %v1059 = vsel %vm681, %v1051, 0.0
      %v1060 = vsel %vm682, %v1052, 0.0
      %v1061 = vpack.c.bf16 %v1054, %v1053
      %v1062 = vpack.c.bf16 %v1056, %v1055
      %v1063 = vpack.c.bf16 %v1058, %v1057
      %v1064 = vpack.c.bf16 %v1060, %v1059
      %s1065 = scalar_lea.vmem %s1, 10
      %v1066 = vld [vmem:[%s1065] sm:$0x3]
      %v1068 = vsel %vm216, %v1061, 0
      %v1071 = vsel %vm216, %v1062, 0
      %v1074 = vsel %vm216, %v1063, 0
      %v1077 = vsel %vm216, %v1064, 0
      %v1080 = vsel %vm463, %v1066, 0
      %1082 = vmatprep.subr.bf16.mxu0 0
      %1083 = vmatpush1.bf16.msra.mxu0 %v1080
      %1084 = vmatprep.subr.bf16.mxu0 0
      %1085 = vmatpush1.bf16.msra.mxu0 0
      %1086 = vmatprep.subr.bf16.mxu0 0
      %1087 = vmatpush1.bf16.msra.mxu0 0
      %1088 = vmatprep.subr.bf16.mxu0 0
      %1089 = vmatpush1.bf16.msra.mxu0 0
      %1090 = vmatprep.subr.bf16.mxu0 0
      %1091 = vmatpush1.bf16.msra.mxu0 0
      %1092 = vmatprep.subr.bf16.mxu0 0
      %1093 = vmatpush1.bf16.msra.mxu0 0
      %1094 = vmatprep.subr.bf16.mxu0 0
      %1095 = vmatpush1.bf16.msra.mxu0 0
      %1096 = vmatprep.subr.bf16.mxu0 0
      %1097 = vmatpush1.bf16.msra.mxu0 0
      %1098 = vmatprep.subr.bf16.mxu0 0
      %1099 = vmatpush1.bf16.msra.mxu0 0
      %1100 = vmatprep.subr.bf16.mxu0 0
      %1101 = vmatpush1.bf16.msra.mxu0 0
      %1102 = vmatprep.subr.bf16.mxu0 0
      %1103 = vmatpush1.bf16.msra.mxu0 0
      %1104 = vmatprep.subr.bf16.mxu0 0
      %1105 = vmatpush1.bf16.msra.mxu0 0
      %1106 = vmatprep.subr.bf16.mxu0 0
      %1107 = vmatpush1.bf16.msra.mxu0 0
      %1108 = vmatprep.subr.bf16.mxu0 0
      %1109 = vmatpush1.bf16.msra.mxu0 0
      %1110 = vmatprep.subr.bf16.mxu0 0
      %1111 = vmatpush1.bf16.msra.mxu0 0
      %1112 = vmatprep.subr.bf16.mxu0 0
      %1113 = vmatpush1.bf16.msra.mxu0 0
      %1114 = vmatprep.mubr.bf16.mxu0 0
      %1115 = vmatmul.mubr.bf16.gmra.mrb[0].mxu0 %v1068
      %v1116 = vpop.f32.mrb[0].mxu0
      %v1117 = vadd.f32 0.0, %v1116
      %v1118 = vpop.f32.mrb[0].mxu0
      %v1119 = vpop.f32.mrb[0].mxu0
      %v1120 = vadd.f32 0.0, %v1119
      %v1121 = vpop.f32.mrb[0].mxu0
      %1122 = vmatprep.mubr.bf16.mxu0 0
      %1123 = vmatmul.mubr.bf16.gmra.mrb[0].mxu0 %v1071
      %v1124 = vpop.f32.mrb[0].mxu0
      %v1125 = vadd.f32 0.0, %v1124
      %v1126 = vpop.f32.mrb[0].mxu0
      %v1127 = vpop.f32.mrb[0].mxu0
      %v1128 = vadd.f32 0.0, %v1127
      %v1129 = vpop.f32.mrb[0].mxu0
      %1130 = vmatprep.mubr.bf16.mxu0 0
      %1131 = vmatmul.mubr.bf16.gmra.mrb[0].mxu0 %v1074
      %v1132 = vpop.f32.mrb[0].mxu0
      %v1133 = vadd.f32 0.0, %v1132
      %v1134 = vpop.f32.mrb[0].mxu0
      %v1135 = vpop.f32.mrb[0].mxu0
      %v1136 = vadd.f32 0.0, %v1135
      %v1137 = vpop.f32.mrb[0].mxu0
      %1138 = vmatprep.mubr.bf16.mxu0 0
      %1139 = vmatmul.mubr.bf16.gmra.mrb[0].mxu0 %v1077
      %v1140 = vpop.f32.mrb[0].mxu0
      %v1141 = vadd.f32 0.0, %v1140
      %v1142 = vpop.f32.mrb[0].mxu0
      %v1143 = vpop.f32.mrb[0].mxu0
      %v1144 = vadd.f32 0.0, %v1143
      %v1145 = vpop.f32.mrb[0].mxu0
      %1146 = vdwg.mxu0
      %v1147 = vld [vmem:[#allocation3] sm:$0xff]
      %v1148 = vld [vmem:[#allocation3 + $0x8] sm:$0xff]
      %v1149 = vld [vmem:[#allocation3 + $0x10] sm:$0xff]
      %v1150 = vld [vmem:[#allocation3 + $0x18] sm:$0xff]
      %v1151 = vld [vmem:[#allocation3 + $0x20] sm:$0xff]
      %v1152 = vld [vmem:[#allocation3 + $0x28] sm:$0xff]
      %v1153 = vld [vmem:[#allocation3 + $0x30] sm:$0xff]
      %v1154 = vld [vmem:[#allocation3 + $0x38] sm:$0xff]
      %v1155 = vadd.f32 %v1147, %v1117
      %v1156 = vadd.f32 %v1148, %v1120
      %v1157 = vadd.f32 %v1149, %v1125
      %v1158 = vadd.f32 %v1150, %v1128
      %v1159 = vadd.f32 %v1151, %v1133
      %v1160 = vadd.f32 %v1152, %v1136
      %v1161 = vadd.f32 %v1153, %v1141
      %v1162 = vadd.f32 %v1154, %v1144
      %1163 = vst.msk [vmem:[#allocation3] sm:$0xff] %vm532, %v1155
      %1164 = vst.msk [vmem:[#allocation3 + $0x8] sm:$0xff] %vm532, %v1156
      %1165 = vst.msk [vmem:[#allocation3 + $0x10] sm:$0xff] %vm532, %v1157
      %1166 = vst.msk [vmem:[#allocation3 + $0x18] sm:$0xff] %vm532, %v1158
      %1167 = vst.msk [vmem:[#allocation3 + $0x20] sm:$0xff] %vm532, %v1159
      %1168 = vst.msk [vmem:[#allocation3 + $0x28] sm:$0xff] %vm532, %v1160
      %1169 = vst.msk [vmem:[#allocation3 + $0x30] sm:$0xff] %vm532, %v1161
      %1170 = vst.msk [vmem:[#allocation3 + $0x38] sm:$0xff] %vm532, %v1162
      %v1171 = vld [vmem:[#allocation2 + $0x17] sm:$0xff]
      %v1172 = vld [vmem:[#allocation2 + $0x1f] sm:$0xff]
      %v1173 = vld [vmem:[#allocation2 + $0x27] sm:$0xff]
      %v1174 = vld [vmem:[#allocation2 + $0x2f] sm:$0xff]
      %v1175 = vld [vmem:[#allocation2 + $0x37] sm:$0xff]
      %v1176 = vld [vmem:[#allocation2 + $0x3f] sm:$0xff]
      %v1177 = vld [vmem:[#allocation2 + $0x47] sm:$0xff]
      %v1178 = vld [vmem:[#allocation2 + $0x4f] sm:$0xff]
      %v1179 = vsel %vm430, %v1171, 0.0
      %v1180 = vsel %vm431, %v1172, 0.0
      %v1181 = vsel %vm432, %v1173, 0.0
      %v1182 = vsel %vm433, %v1174, 0.0
      %v1183 = vsel %vm434, %v1175, 0.0
      %v1184 = vsel %vm435, %v1176, 0.0
      %v1185 = vsel %vm436, %v1177, 0.0
      %v1186 = vsel %vm437, %v1178, 0.0
      %v1187 = vpack.c.bf16 %v1180, %v1179
      %v1188 = vpack.c.bf16 %v1182, %v1181
      %v1189 = vpack.c.bf16 %v1184, %v1183
      %v1190 = vpack.c.bf16 %v1186, %v1185
      %s1191 = scalar_lea.vmem %s1, 12
      %v1192 = vld [vmem:[%s1191] sm:$0x3]
      %v1194 = vsel %vm216, %v1187, 0
      %v1197 = vsel %vm216, %v1188, 0
      %v1200 = vsel %vm216, %v1189, 0
      %v1203 = vsel %vm216, %v1190, 0
      %v1206 = vsel %vm463, %v1192, 0
      %1208 = vmatprep.subr.bf16.mxu0 0
      %1209 = vmatpush1.bf16.msra.mxu0 %v1206
      %1210 = vmatprep.subr.bf16.mxu0 0
      %1211 = vmatpush1.bf16.msra.mxu0 0
      %1212 = vmatprep.subr.bf16.mxu0 0
      %1213 = vmatpush1.bf16.msra.mxu0 0
      %1214 = vmatprep.subr.bf16.mxu0 0
      %1215 = vmatpush1.bf16.msra.mxu0 0
      %1216 = vmatprep.subr.bf16.mxu0 0
      %1217 = vmatpush1.bf16.msra.mxu0 0
      %1218 = vmatprep.subr.bf16.mxu0 0
      %1219 = vmatpush1.bf16.msra.mxu0 0
      %1220 = vmatprep.subr.bf16.mxu0 0
      %1221 = vmatpush1.bf16.msra.mxu0 0
      %1222 = vmatprep.subr.bf16.mxu0 0
      %1223 = vmatpush1.bf16.msra.mxu0 0
      %1224 = vmatprep.subr.bf16.mxu0 0
      %1225 = vmatpush1.bf16.msra.mxu0 0
      %1226 = vmatprep.subr.bf16.mxu0 0
      %1227 = vmatpush1.bf16.msra.mxu0 0
      %1228 = vmatprep.subr.bf16.mxu0 0
      %1229 = vmatpush1.bf16.msra.mxu0 0
      %1230 = vmatprep.subr.bf16.mxu0 0
      %1231 = vmatpush1.bf16.msra.mxu0 0
      %1232 = vmatprep.subr.bf16.mxu0 0
      %1233 = vmatpush1.bf16.msra.mxu0 0
      %1234 = vmatprep.subr.bf16.mxu0 0
      %1235 = vmatpush1.bf16.msra.mxu0 0
      %1236 = vmatprep.subr.bf16.mxu0 0
      %1237 = vmatpush1.bf16.msra.mxu0 0
      %1238 = vmatprep.subr.bf16.mxu0 0
      %1239 = vmatpush1.bf16.msra.mxu0 0
      %1240 = vmatprep.mubr.bf16.mxu0 0
      %1241 = vmatmul.mubr.bf16.gmra.mrb[0].mxu0 %v1194
      %v1242 = vpop.f32.mrb[0].mxu0
      %v1243 = vadd.f32 0.0, %v1242
      %v1244 = vpop.f32.mrb[0].mxu0
      %v1245 = vpop.f32.mrb[0].mxu0
      %v1246 = vadd.f32 0.0, %v1245
      %v1247 = vpop.f32.mrb[0].mxu0
      %1248 = vmatprep.mubr.bf16.mxu0 0
      %1249 = vmatmul.mubr.bf16.gmra.mrb[0].mxu0 %v1197
      %v1250 = vpop.f32.mrb[0].mxu0
      %v1251 = vadd.f32 0.0, %v1250
      %v1252 = vpop.f32.mrb[0].mxu0
      %v1253 = vpop.f32.mrb[0].mxu0
      %v1254 = vadd.f32 0.0, %v1253
      %v1255 = vpop.f32.mrb[0].mxu0
      %1256 = vmatprep.mubr.bf16.mxu0 0
      %1257 = vmatmul.mubr.bf16.gmra.mrb[0].mxu0 %v1200
      %v1258 = vpop.f32.mrb[0].mxu0
      %v1259 = vadd.f32 0.0, %v1258
      %v1260 = vpop.f32.mrb[0].mxu0
      %v1261 = vpop.f32.mrb[0].mxu0
      %v1262 = vadd.f32 0.0, %v1261
      %v1263 = vpop.f32.mrb[0].mxu0
      %1264 = vmatprep.mubr.bf16.mxu0 0
      %1265 = vmatmul.mubr.bf16.gmra.mrb[0].mxu0 %v1203
      %v1266 = vpop.f32.mrb[0].mxu0
      %v1267 = vadd.f32 0.0, %v1266
      %v1268 = vpop.f32.mrb[0].mxu0
      %v1269 = vpop.f32.mrb[0].mxu0
      %v1270 = vadd.f32 0.0, %v1269
      %v1271 = vpop.f32.mrb[0].mxu0
      %1272 = vdwg.mxu0
      %v1273 = vld [vmem:[#allocation3] sm:$0xff]
      %v1274 = vld [vmem:[#allocation3 + $0x8] sm:$0xff]
      %v1275 = vld [vmem:[#allocation3 + $0x10] sm:$0xff]
      %v1276 = vld [vmem:[#allocation3 + $0x18] sm:$0xff]
      %v1277 = vld [vmem:[#allocation3 + $0x20] sm:$0xff]
      %v1278 = vld [vmem:[#allocation3 + $0x28] sm:$0xff]
      %v1279 = vld [vmem:[#allocation3 + $0x30] sm:$0xff]
      %v1280 = vld [vmem:[#allocation3 + $0x38] sm:$0xff]
      %v1281 = vadd.f32 %v1273, %v1243
      %v1282 = vadd.f32 %v1274, %v1246
      %v1283 = vadd.f32 %v1275, %v1251
      %v1284 = vadd.f32 %v1276, %v1254
      %v1285 = vadd.f32 %v1277, %v1259
      %v1286 = vadd.f32 %v1278, %v1262
      %v1287 = vadd.f32 %v1279, %v1267
      %v1288 = vadd.f32 %v1280, %v1270
      %1289 = vst.msk [vmem:[#allocation3] sm:$0xff] %vm532, %v1281
      %1290 = vst.msk [vmem:[#allocation3 + $0x8] sm:$0xff] %vm532, %v1282
      %1291 = vst.msk [vmem:[#allocation3 + $0x10] sm:$0xff] %vm532, %v1283
      %1292 = vst.msk [vmem:[#allocation3 + $0x18] sm:$0xff] %vm532, %v1284
      %1293 = vst.msk [vmem:[#allocation3 + $0x20] sm:$0xff] %vm532, %v1285
      %1294 = vst.msk [vmem:[#allocation3 + $0x28] sm:$0xff] %vm532, %v1286
      %1295 = vst.msk [vmem:[#allocation3 + $0x30] sm:$0xff] %vm532, %v1287
      %1296 = vst.msk [vmem:[#allocation3 + $0x38] sm:$0xff] %vm532, %v1288
      %v1297 = vld [vmem:[#allocation2 + $0x18] sm:$0xff]
      %v1298 = vld [vmem:[#allocation2 + $0x20] sm:$0xff]
      %v1299 = vld [vmem:[#allocation2 + $0x28] sm:$0xff]
      %v1300 = vld [vmem:[#allocation2 + $0x30] sm:$0xff]
      %v1301 = vld [vmem:[#allocation2 + $0x38] sm:$0xff]
      %v1302 = vld [vmem:[#allocation2 + $0x40] sm:$0xff]
      %v1303 = vld [vmem:[#allocation2 + $0x48] sm:$0xff]
      %v1304 = vld [vmem:[#allocation2 + $0x50] sm:$0xff]
      %v1305 = vpack.c.bf16 %v1298, %v1297
      %v1306 = vpack.c.bf16 %v1300, %v1299
      %v1307 = vpack.c.bf16 %v1302, %v1301
      %v1308 = vpack.c.bf16 %v1304, %v1303
      %s1309 = scalar_lea.vmem %s1, 14
      %v1310 = vld [vmem:[%s1309] sm:$0x3]
      %v1312 = vsel %vm216, %v1305, 0
      %v1315 = vsel %vm216, %v1306, 0
      %v1318 = vsel %vm216, %v1307, 0
      %v1321 = vsel %vm216, %v1308, 0
      %v1324 = vsel %vm463, %v1310, 0
      %1326 = vmatprep.subr.bf16.mxu0 0
      %1327 = vmatpush1.bf16.msra.mxu0 %v1324
      %1328 = vmatprep.subr.bf16.mxu0 0
      %1329 = vmatpush1.bf16.msra.mxu0 0
      %1330 = vmatprep.subr.bf16.mxu0 0
      %1331 = vmatpush1.bf16.msra.mxu0 0
      %1332 = vmatprep.subr.bf16.mxu0 0
      %1333 = vmatpush1.bf16.msra.mxu0 0
      %1334 = vmatprep.subr.bf16.mxu0 0
      %1335 = vmatpush1.bf16.msra.mxu0 0
      %1336 = vmatprep.subr.bf16.mxu0 0
      %1337 = vmatpush1.bf16.msra.mxu0 0
      %1338 = vmatprep.subr.bf16.mxu0 0
      %1339 = vmatpush1.bf16.msra.mxu0 0
      %1340 = vmatprep.subr.bf16.mxu0 0
      %1341 = vmatpush1.bf16.msra.mxu0 0
      %1342 = vmatprep.subr.bf16.mxu0 0
      %1343 = vmatpush1.bf16.msra.mxu0 0
      %1344 = vmatprep.subr.bf16.mxu0 0
      %1345 = vmatpush1.bf16.msra.mxu0 0
      %1346 = vmatprep.subr.bf16.mxu0 0
      %1347 = vmatpush1.bf16.msra.mxu0 0
      %1348 = vmatprep.subr.bf16.mxu0 0
      %1349 = vmatpush1.bf16.msra.mxu0 0
      %1350 = vmatprep.subr.bf16.mxu0 0
      %1351 = vmatpush1.bf16.msra.mxu0 0
      %1352 = vmatprep.subr.bf16.mxu0 0
      %1353 = vmatpush1.bf16.msra.mxu0 0
      %1354 = vmatprep.subr.bf16.mxu0 0
      %1355 = vmatpush1.bf16.msra.mxu0 0
      %1356 = vmatprep.subr.bf16.mxu0 0
      %1357 = vmatpush1.bf16.msra.mxu0 0
      %1358 = vmatprep.mubr.bf16.mxu0 0
      %1359 = vmatmul.mubr.bf16.gmra.mrb[0].mxu0 %v1312
      %v1360 = vpop.f32.mrb[0].mxu0
      %v1361 = vadd.f32 0.0, %v1360
      %v1362 = vpop.f32.mrb[0].mxu0
      %v1363 = vpop.f32.mrb[0].mxu0
      %v1364 = vadd.f32 0.0, %v1363
      %v1365 = vpop.f32.mrb[0].mxu0
      %1366 = vmatprep.mubr.bf16.mxu0 0
      %1367 = vmatmul.mubr.bf16.gmra.mrb[0].mxu0 %v1315
      %v1368 = vpop.f32.mrb[0].mxu0
      %v1369 = vadd.f32 0.0, %v1368
      %v1370 = vpop.f32.mrb[0].mxu0
      %v1371 = vpop.f32.mrb[0].mxu0
      %v1372 = vadd.f32 0.0, %v1371
      %v1373 = vpop.f32.mrb[0].mxu0
      %1374 = vmatprep.mubr.bf16.mxu0 0
      %1375 = vmatmul.mubr.bf16.gmra.mrb[0].mxu0 %v1318
      %v1376 = vpop.f32.mrb[0].mxu0
      %v1377 = vadd.f32 0.0, %v1376
      %v1378 = vpop.f32.mrb[0].mxu0
      %v1379 = vpop.f32.mrb[0].mxu0
      %v1380 = vadd.f32 0.0, %v1379
      %v1381 = vpop.f32.mrb[0].mxu0
      %1382 = vmatprep.mubr.bf16.mxu0 0
      %1383 = vmatmul.mubr.bf16.gmra.mrb[0].mxu0 %v1321
      %v1384 = vpop.f32.mrb[0].mxu0
      %v1385 = vadd.f32 0.0, %v1384
      %v1386 = vpop.f32.mrb[0].mxu0
      %v1387 = vpop.f32.mrb[0].mxu0
      %v1388 = vadd.f32 0.0, %v1387
      %v1389 = vpop.f32.mrb[0].mxu0
      %1390 = vdwg.mxu0
      %v1391 = vld [vmem:[#allocation3] sm:$0xff]
      %v1392 = vld [vmem:[#allocation3 + $0x8] sm:$0xff]
      %v1393 = vld [vmem:[#allocation3 + $0x10] sm:$0xff]
      %v1394 = vld [vmem:[#allocation3 + $0x18] sm:$0xff]
      %v1395 = vld [vmem:[#allocation3 + $0x20] sm:$0xff]
      %v1396 = vld [vmem:[#allocation3 + $0x28] sm:$0xff]
      %v1397 = vld [vmem:[#allocation3 + $0x30] sm:$0xff]
      %v1398 = vld [vmem:[#allocation3 + $0x38] sm:$0xff]
      %v1399 = vadd.f32 %v1391, %v1361
      %v1400 = vadd.f32 %v1392, %v1364
      %v1401 = vadd.f32 %v1393, %v1369
      %v1402 = vadd.f32 %v1394, %v1372
      %v1403 = vadd.f32 %v1395, %v1377
      %v1404 = vadd.f32 %v1396, %v1380
      %v1405 = vadd.f32 %v1397, %v1385
      %v1406 = vadd.f32 %v1398, %v1388
      %1407 = vst.msk [vmem:[#allocation3] sm:$0xff] %vm532, %v1399
      %1408 = vst.msk [vmem:[#allocation3 + $0x8] sm:$0xff] %vm532, %v1400
      %1409 = vst.msk [vmem:[#allocation3 + $0x10] sm:$0xff] %vm532, %v1401
      %1410 = vst.msk [vmem:[#allocation3 + $0x18] sm:$0xff] %vm532, %v1402
      %1411 = vst.msk [vmem:[#allocation3 + $0x20] sm:$0xff] %vm532, %v1403
      %1412 = vst.msk [vmem:[#allocation3 + $0x28] sm:$0xff] %vm532, %v1404
      %1413 = vst.msk [vmem:[#allocation3 + $0x30] sm:$0xff] %vm532, %v1405
      %1414 = vst.msk [vmem:[#allocation3 + $0x38] sm:$0xff] %vm532, %v1406
      %v1415 = vld [vmem:[#allocation2 + $0x19] sm:$0xff]
      %v1416 = vld [vmem:[#allocation2 + $0x21] sm:$0xff]
      %v1417 = vld [vmem:[#allocation2 + $0x29] sm:$0xff]
      %v1418 = vld [vmem:[#allocation2 + $0x31] sm:$0xff]
      %v1419 = vld [vmem:[#allocation2 + $0x39] sm:$0xff]
      %v1420 = vld [vmem:[#allocation2 + $0x41] sm:$0xff]
      %v1421 = vld [vmem:[#allocation2 + $0x49] sm:$0xff]
      %v1422 = vld [vmem:[#allocation2 + $0x51] sm:$0xff]
      %v1423 = vsel %vm675, %v1415, 0.0
      %v1424 = vsel %vm676, %v1416, 0.0
      %v1425 = vsel %vm677, %v1417, 0.0
      %v1426 = vsel %vm678, %v1418, 0.0
      %v1427 = vsel %vm679, %v1419, 0.0
      %v1428 = vsel %vm680, %v1420, 0.0
      %v1429 = vsel %vm681, %v1421, 0.0
      %v1430 = vsel %vm682, %v1422, 0.0
      %v1431 = vpack.c.bf16 %v1424, %v1423
      %v1432 = vpack.c.bf16 %v1426, %v1425
      %v1433 = vpack.c.bf16 %v1428, %v1427
      %v1434 = vpack.c.bf16 %v1430, %v1429
      %s1435 = scalar_lea.vmem %s1, 16
      %v1436 = vld [vmem:[%s1435] sm:$0x3]
      %v1438 = vsel %vm216, %v1431, 0
      %v1441 = vsel %vm216, %v1432, 0
      %v1444 = vsel %vm216, %v1433, 0
      %v1447 = vsel %vm216, %v1434, 0
      %v1450 = vsel %vm463, %v1436, 0
      %1452 = vmatprep.subr.bf16.mxu0 0
      %1453 = vmatpush1.bf16.msra.mxu0 %v1450
      %1454 = vmatprep.subr.bf16.mxu0 0
      %1455 = vmatpush1.bf16.msra.mxu0 0
      %1456 = vmatprep.subr.bf16.mxu0 0
      %1457 = vmatpush1.bf16.msra.mxu0 0
      %1458 = vmatprep.subr.bf16.mxu0 0
      %1459 = vmatpush1.bf16.msra.mxu0 0
      %1460 = vmatprep.subr.bf16.mxu0 0
      %1461 = vmatpush1.bf16.msra.mxu0 0
      %1462 = vmatprep.subr.bf16.mxu0 0
      %1463 = vmatpush1.bf16.msra.mxu0 0
      %1464 = vmatprep.subr.bf16.mxu0 0
      %1465 = vmatpush1.bf16.msra.mxu0 0
      %1466 = vmatprep.subr.bf16.mxu0 0
      %1467 = vmatpush1.bf16.msra.mxu0 0
      %1468 = vmatprep.subr.bf16.mxu0 0
      %1469 = vmatpush1.bf16.msra.mxu0 0
      %1470 = vmatprep.subr.bf16.mxu0 0
      %1471 = vmatpush1.bf16.msra.mxu0 0
      %1472 = vmatprep.subr.bf16.mxu0 0
      %1473 = vmatpush1.bf16.msra.mxu0 0
      %1474 = vmatprep.subr.bf16.mxu0 0
      %1475 = vmatpush1.bf16.msra.mxu0 0
      %1476 = vmatprep.subr.bf16.mxu0 0
      %1477 = vmatpush1.bf16.msra.mxu0 0
      %1478 = vmatprep.subr.bf16.mxu0 0
      %1479 = vmatpush1.bf16.msra.mxu0 0
      %1480 = vmatprep.subr.bf16.mxu0 0
      %1481 = vmatpush1.bf16.msra.mxu0 0
      %1482 = vmatprep.subr.bf16.mxu0 0
      %1483 = vmatpush1.bf16.msra.mxu0 0
      %1484 = vmatprep.mubr.bf16.mxu0 0
      %1485 = vmatmul.mubr.bf16.gmra.mrb[0].mxu0 %v1438
      %v1486 = vpop.f32.mrb[0].mxu0
      %v1487 = vadd.f32 0.0, %v1486
      %v1488 = vpop.f32.mrb[0].mxu0
      %v1489 = vpop.f32.mrb[0].mxu0
      %v1490 = vadd.f32 0.0, %v1489
      %v1491 = vpop.f32.mrb[0].mxu0
      %1492 = vmatprep.mubr.bf16.mxu0 0
      %1493 = vmatmul.mubr.bf16.gmra.mrb[0].mxu0 %v1441
      %v1494 = vpop.f32.mrb[0].mxu0
      %v1495 = vadd.f32 0.0, %v1494
      %v1496 = vpop.f32.mrb[0].mxu0
      %v1497 = vpop.f32.mrb[0].mxu0
      %v1498 = vadd.f32 0.0, %v1497
      %v1499 = vpop.f32.mrb[0].mxu0
      %1500 = vmatprep.mubr.bf16.mxu0 0
      %1501 = vmatmul.mubr.bf16.gmra.mrb[0].mxu0 %v1444
      %v1502 = vpop.f32.mrb[0].mxu0
      %v1503 = vadd.f32 0.0, %v1502
      %v1504 = vpop.f32.mrb[0].mxu0
      %v1505 = vpop.f32.mrb[0].mxu0
      %v1506 = vadd.f32 0.0, %v1505
      %v1507 = vpop.f32.mrb[0].mxu0
      %1508 = vmatprep.mubr.bf16.mxu0 0
      %1509 = vmatmul.mubr.bf16.gmra.mrb[0].mxu0 %v1447
      %v1510 = vpop.f32.mrb[0].mxu0
      %v1511 = vadd.f32 0.0, %v1510
      %v1512 = vpop.f32.mrb[0].mxu0
      %v1513 = vpop.f32.mrb[0].mxu0
      %v1514 = vadd.f32 0.0, %v1513
      %v1515 = vpop.f32.mrb[0].mxu0
      %1516 = vdwg.mxu0
      %v1517 = vld [vmem:[#allocation3] sm:$0xff]
      %v1518 = vld [vmem:[#allocation3 + $0x8] sm:$0xff]
      %v1519 = vld [vmem:[#allocation3 + $0x10] sm:$0xff]
      %v1520 = vld [vmem:[#allocation3 + $0x18] sm:$0xff]
      %v1521 = vld [vmem:[#allocation3 + $0x20] sm:$0xff]
      %v1522 = vld [vmem:[#allocation3 + $0x28] sm:$0xff]
      %v1523 = vld [vmem:[#allocation3 + $0x30] sm:$0xff]
      %v1524 = vld [vmem:[#allocation3 + $0x38] sm:$0xff]
      %v1525 = vadd.f32 %v1517, %v1487
      %v1526 = vadd.f32 %v1518, %v1490
      %v1527 = vadd.f32 %v1519, %v1495
      %v1528 = vadd.f32 %v1520, %v1498
      %v1529 = vadd.f32 %v1521, %v1503
      %v1530 = vadd.f32 %v1522, %v1506
      %v1531 = vadd.f32 %v1523, %v1511
      %v1532 = vadd.f32 %v1524, %v1514
      %1533 = vst.msk [vmem:[#allocation3] sm:$0xff] %vm532, %v1525
      %1534 = vst.msk [vmem:[#allocation3 + $0x8] sm:$0xff] %vm532, %v1526
      %1535 = vst.msk [vmem:[#allocation3 + $0x10] sm:$0xff] %vm532, %v1527
      %1536 = vst.msk [vmem:[#allocation3 + $0x18] sm:$0xff] %vm532, %v1528
      %1537 = vst.msk [vmem:[#allocation3 + $0x20] sm:$0xff] %vm532, %v1529
      %1538 = vst.msk [vmem:[#allocation3 + $0x28] sm:$0xff] %vm532, %v1530
      %1539 = vst.msk [vmem:[#allocation3 + $0x30] sm:$0xff] %vm532, %v1531
      %1540 = vst.msk [vmem:[#allocation3 + $0x38] sm:$0xff] %vm532, %v1532
      %v1541 = vld [vmem:[#allocation3] sm:$0xff]
      %v1542 = vld [vmem:[#allocation3 + $0x8] sm:$0xff]
      %v1543 = vld [vmem:[#allocation3 + $0x10] sm:$0xff]
      %v1544 = vld [vmem:[#allocation3 + $0x18] sm:$0xff]
      %v1545 = vld [vmem:[#allocation3 + $0x20] sm:$0xff]
      %v1546 = vld [vmem:[#allocation3 + $0x28] sm:$0xff]
      %v1547 = vld [vmem:[#allocation3 + $0x30] sm:$0xff]
      %v1548 = vld [vmem:[#allocation3 + $0x38] sm:$0xff]
      %v1549 = vpack.c.bf16 %v1542, %v1541
      %v1550 = vpack.c.bf16 %v1544, %v1543
      %v1551 = vpack.c.bf16 %v1546, %v1545
      %v1552 = vpack.c.bf16 %v1548, %v1547
      %v1557 = vunpack.c.l.b16 %v1549
      %v1558 = vunpack.c.h.b16 %v1549
      %v1559 = vunpack.c.l.b16 %v1550
      %v1560 = vunpack.c.h.b16 %v1550
      %v1561 = vunpack.c.l.b16 %v1551
      %v1562 = vunpack.c.h.b16 %v1551
      %v1563 = vunpack.c.l.b16 %v1552
      %v1564 = vunpack.c.h.b16 %v1552
      %v1565 = vpack.c.b16 %v1557, %v1557
      %v1566 = vpack.c.b16 %v1558, %v1558
      %v1567 = vpack.c.b16 %v1559, %v1559
      %v1568 = vpack.c.b16 %v1560, %v1560
      %v1569 = vpack.c.b16 %v1561, %v1561
      %v1570 = vpack.c.b16 %v1562, %v1562
      %v1571 = vpack.c.b16 %v1563, %v1563
      %v1572 = vpack.c.b16 %v1564, %v1564
      %vm1581 = vcmask 60416
      %1582 = vst.msk [vmem:[%s208] sm:$0xf] %vm1581, %v1565
      %1583 = vst.msk [vmem:[%s208 + $0x4] sm:$0xf] %vm1581, %v1566
      %1584 = vst.msk [vmem:[%s208 + $0x8] sm:$0xf] %vm1581, %v1567
      %1585 = vst.msk [vmem:[%s208 + $0xc] sm:$0xf] %vm1581, %v1568
      %1586 = vst.msk [vmem:[%s208 + $0x10] sm:$0xf] %vm1581, %v1569
      %1587 = vst.msk [vmem:[%s208 + $0x14] sm:$0xf] %vm1581, %v1570
      %1588 = vst.msk [vmem:[%s208 + $0x18] sm:$0xf] %vm1581, %v1571
      %1589 = vst.msk [vmem:[%s208 + $0x1c] sm:$0xf] %vm1581, %v1572
      %v1590 = vsel %vm532, %v1541, 0.0
      %v1591 = vsel %vm532, %v1542, 0.0
      %v1592 = vadd.f32 %v1590, %v1591
      %v1593 = vsel %vm532, %v1543, 0.0
      %v1594 = vadd.f32 %v1592, %v1593
      %v1595 = vsel %vm532, %v1544, 0.0
      %v1596 = vadd.f32 %v1594, %v1595
      %v1597 = vsel %vm532, %v1545, 0.0
      %v1598 = vadd.f32 %v1596, %v1597
      %v1599 = vsel %vm532, %v1546, 0.0
      %v1600 = vadd.f32 %v1598, %v1599
      %v1601 = vsel %vm532, %v1547, 0.0
      %v1602 = vadd.f32 %v1600, %v1601
      %v1603 = vsel %vm532, %v1548, 0.0
      %v1604 = vadd.f32 %v1602, %v1603
      %v1605 = vrot.slane %v1604, 4
      %v1606 = vadd.f32 %v1604, %v1605
      %v1607 = vrot.slane %v1606, 2
      %v1608 = vadd.f32 %v1606, %v1607
      %v1609 = vrot.slane %v1608, 1
      %v1610 = vadd.f32 %v1608, %v1609
      %vm1611 = vcmask 57344
      %1612 = vst.msk [vmem:[%s211] sm:$0x1] %vm1611, %v1610
      %v1613 = vmul.f32 %v1541, %v1541
      %v1614 = vmul.f32 %v1542, %v1542
      %v1615 = vmul.f32 %v1543, %v1543
      %v1616 = vmul.f32 %v1544, %v1544
      %v1617 = vmul.f32 %v1545, %v1545
      %v1618 = vmul.f32 %v1546, %v1546
      %v1619 = vmul.f32 %v1547, %v1547
      %v1620 = vmul.f32 %v1548, %v1548
      %v1621 = vsel %vm532, %v1613, 0.0
      %v1622 = vsel %vm532, %v1614, 0.0
      %v1623 = vadd.f32 %v1621, %v1622
      %v1624 = vsel %vm532, %v1615, 0.0
      %v1625 = vadd.f32 %v1623, %v1624
      %v1626 = vsel %vm532, %v1616, 0.0
      %v1627 = vadd.f32 %v1625, %v1626
      %v1628 = vsel %vm532, %v1617, 0.0
      %v1629 = vadd.f32 %v1627, %v1628
      %v1630 = vsel %vm532, %v1618, 0.0
      %v1631 = vadd.f32 %v1629, %v1630
      %v1632 = vsel %vm532, %v1619, 0.0
      %v1633 = vadd.f32 %v1631, %v1632
      %v1634 = vsel %vm532, %v1620, 0.0
      %v1635 = vadd.f32 %v1633, %v1634
      %v1636 = vrot.slane %v1635, 4
      %v1637 = vadd.f32 %v1635, %v1636
      %v1638 = vrot.slane %v1637, 2
      %v1639 = vadd.f32 %v1637, %v1638
      %v1640 = vrot.slane %v1639, 1
      %v1641 = vadd.f32 %v1639, %v1640
      %1642 = vst.msk [vmem:[%s214] sm:$0x1] %vm1611, %v1641
      %p1643 = scmp.lt.s32.totalorder %s16, 1
      %s1644 = scalar_select %p1643, %s16, 1
      %s1645 = smul.addr %s1644, 8
      %s1646 = smul.addr %s1645, 4
      %s1647 = scalar_lea.vmem %s2, %s1646
      %p1648 = scmp.lt.s32.totalorder %s16, 1
      %s1649 = scalar_select %p1648, %s16, 1
      %s1650 = scalar_lea.vmem %s3, %s1649
      %p1651 = scmp.lt.s32.totalorder %s16, 1
      %s1652 = scalar_select %p1651, %s16, 1
      %s1653 = scalar_lea.vmem %s4, %s1652
      // Predicated region
      $region29: #{down_forward.3} parent=27 // pred_check
        %p1654 = pneg %p81
      $region30: #{down_forward.3} parent=27 // pred_check_branch
        %1656 = sbr.rel (%p1654) target = $region32
      $region31: #{down_forward.3} parent=27 // pred_region
        _
      $region32: #{down_forward.3} parent=27 // pred_fallthru
        _
      // Predicated region
      $region33: #{down_forward.3} parent=27 // pred_check
        %p1657 = pneg %p107
      $region34: #{down_forward.3} parent=27 // pred_check_branch
        %1659 = sbr.rel (%p1657) target = $region36
      $region35: #{down_forward.3} parent=27 // pred_region
        _
      $region36: #{down_forward.3} parent=27 // pred_fallthru
        _
      // Predicated region
      $region37: #{down_forward.3} parent=27 // pred_check
        %p1660 = pneg %p133
      $region38: #{down_forward.3} parent=27 // pred_check_branch
        %1662 = sbr.rel (%p1660) target = $region40
      $region39: #{down_forward.3} parent=27 // pred_region
        _
      $region40: #{down_forward.3} parent=27 // pred_fallthru
        _
    $region28: #{down_forward.3} parent=5 // pred_fallthru
      _
    %p1663 = scmp.le.s32.totalorder 2, %s11
    // Predicated region
    $region41: #{down_forward.3} parent=5 // pred_check
      %p1664 = pneg %p1663
    $region42: #{down_forward.3} parent=5 // pred_check_branch
      %1666 = sbr.rel (%p1664) target = $region44
    $region43: #{down_forward.3} parent=5 // pred_region
      %s1667 = ssub.s32 %s11, 2
      // Predicated region
      $region45: #{down_forward.3} parent=43 // pred_check
        %p1668 = pneg %p87
      $region46: #{down_forward.3} parent=43 // pred_check_branch
        %1670 = sbr.rel (%p1668) target = $region48
      $region47: #{down_forward.3} parent=43 // pred_region
        %p1671 = scmp.lt.s32.totalorder %s17, 1
        %s1672 = scalar_select %p1671, %s17, 1
        %s1673 = smul.addr %s1672, 8
        %s1674 = smul.addr %s1673, 4
        %s1675 = scalar_lea.vmem %s2, %s1674
      $region48: #{down_forward.3} parent=43 // pred_fallthru
        _
      // Predicated region
      $region49: #{down_forward.3} parent=43 // pred_check
        %p1676 = pneg %p113
      $region50: #{down_forward.3} parent=43 // pred_check_branch
        %1678 = sbr.rel (%p1676) target = $region52
      $region51: #{down_forward.3} parent=43 // pred_region
        %p1679 = scmp.lt.s32.totalorder %s17, 1
        %s1680 = scalar_select %p1679, %s17, 1
        %s1681 = scalar_lea.vmem %s3, %s1680
      $region52: #{down_forward.3} parent=43 // pred_fallthru
        _
      // Predicated region
      $region53: #{down_forward.3} parent=43 // pred_check
        %p1682 = pneg %p139
      $region54: #{down_forward.3} parent=43 // pred_check_branch
        %1684 = sbr.rel (%p1682) target = $region56
      $region55: #{down_forward.3} parent=43 // pred_region
        %p1685 = scmp.lt.s32.totalorder %s17, 1
        %s1686 = scalar_select %p1685, %s17, 1
        %s1687 = scalar_lea.vmem %s4, %s1686
      $region56: #{down_forward.3} parent=43 // pred_fallthru
        _
    $region44: #{down_forward.3} parent=5 // pred_fallthru
      _
  $region6: #{down_forward.3} parent=0 // loop_footer
    %s15 = sadd.s32 1, %s11
  $region7: #{down_forward.3} parent=0 // loop_footer_branch
    %10 = sbr.rel target = $region3
  $region8: #{down_forward.3} parent=0 // loop_exit
    _

// kernel: down_forward.4
$region0: #{down_forward.4}
  #allocation0 [shape = 'u32[]', space=smem, size = 0x4, offset = 0x4, fixed_abs, tag = 'smem constant byte address 0x4 - core index']
  #allocation1 [shape = 'u32[144,128]{1,0:T(1,128)}', space=vmem, size = 0x12000, scoped, tag = 'internal scratch']
  #allocation2 [shape = 'f32[96,8]{1,0:T(8,128)}', space=vmem, size = 0xc000, scoped, tag = 'scratch operand']
  #allocation3 [shape = 'f32[64,8]{1,0:T(8,128)}', space=vmem, size = 0x8000, scoped, tag = 'scratch operand']
  %s0 = inlined_call_operand.vmem [shape: bf16[2,64,8], index: 0, kind: input, shape index: {}]
  %s1 = inlined_call_operand.vmem [shape: f32[1,8], index: 1, kind: input, shape index: {}]
  %s2 = inlined_call_operand.vmem [shape: f32[1,8], index: 2, kind: input, shape index: {}]
  %s3 = inlined_call_operand.vmem [shape: bf16[9,8,8], index: 3, kind: input, shape index: {}]
  %s4 = inlined_call_operand.vmem [shape: bf16[2,64,8], index: 4, kind: output, shape index: {0}]
  %s5 = inlined_call_operand.vmem [shape: f32[2,1,8], index: 5, kind: output, shape index: {1}]
  %s6 = inlined_call_operand.vmem [shape: f32[2,1,8], index: 6, kind: output, shape index: {2}]
  %7 = xla_tuple %s4, %s5, %s6
  %s8 = sld [smem:[#allocation0]]
  $region65: #{down_forward.4} parent=0
    _
  %s10 = ssub.s32 1, %s8
  %s11 = scalar_select 0, %s10, %s8
  loop: start=0, step=1, limit=4
  $region2: #{down_forward.4} parent=0 // loop_pre_header
    _
  $region3: #{down_forward.4} parent=0 // loop_header
    %s13 = sphi 0, %s17
    %p14 = scmp.ge.s32.totalorder %s13, 4
    %s23 = sphi 0, %s25
    %s26 = sphi 0, %s23
    %s27 = sphi 0, %s26
    %s43 = sphi 0, %s27
    %s47 = sphi 0, %s47
    %s49 = sphi 0, %s47
    %s50 = sphi 0, %s49
    %s64 = sphi 0, %s50
    %s68 = sphi 0, %s68
    %s70 = sphi 0, %s68
    %s71 = sphi 0, %s70
    %s85 = sphi 0, %s71
    %s89 = sphi 0, %s89
    %s91 = sphi 0, %s89
    %s92 = sphi 0, %s91
    %s106 = sphi 0, %s92
    %s112 = sphi 0, %s114
    %s115 = sphi 0, %s112
    %s116 = sphi 0, %s115
    %s132 = sphi 0, %s116
    %s138 = sphi 0, %s140
    %s141 = sphi 0, %s138
    %s142 = sphi 0, %s141
    %s158 = sphi 0, %s142
    %s164 = sphi 0, %s166
    %s167 = sphi 0, %s164
    %s168 = sphi 0, %s167
    %s184 = sphi 0, %s168
  $region4: #{down_forward.4} parent=0 // loop_header_branch
    %16 = sbr.rel (%p14) target = $region8
  $region5: #{down_forward.4} parent=0 // loop_body
    %s18 = ssub.s32 %s13, 1
    %s19 = ssub.s32 %s13, 2
    %s20 = sadd.s32 %s13, 1
    %s21 = ssub.s32 %s13, %s20
    %p22 = scmp.eq.s32.totalorder %s21, 0
    %s24 = sadd.s32 %s23, 1
    %s25 = scalar_select %p22, %s23, %s24
    %p28 = pneg %p22
    %p29 = scmp.eq.s32.totalorder %s13, 1
    %p30 = por %p28, %p29
    %p31 = scmp.ne.s32.totalorder %s23, %s26
    %p32 = scmp.eq.s32.totalorder %s13, 0
    %p33 = por %p31, %p32
    %p34 = scmp.ne.s32.totalorder %s23, %s26
    %p35 = scmp.eq.s32.totalorder %s18, 1
    %p36 = por %p34, %p35
    %p37 = scmp.ne.s32.totalorder %s26, %s27
    %p38 = scmp.eq.s32.totalorder %s18, 0
    %p39 = por %p37, %p38
    %p40 = scmp.ne.s32.totalorder %s26, %s27
    %p41 = scmp.eq.s32.totalorder %s19, 1
    %p42 = por %p40, %p41
    %p44 = scmp.ne.s32.totalorder %s27, %s43
    %p45 = scmp.eq.s32.totalorder %s19, 0
    %p46 = por %p44, %p45
    %s48 = sadd.s32 %s47, 1
    %p51 = scmp.eq.s32.totalorder %s13, 1
    %p52 = scmp.ne.s32.totalorder %s47, %s49
    %p53 = scmp.eq.s32.totalorder %s13, 0
    %p54 = por %p52, %p53
    %p55 = scmp.ne.s32.totalorder %s47, %s49
    %p56 = scmp.eq.s32.totalorder %s18, 1
    %p57 = por %p55, %p56
    %p58 = scmp.ne.s32.totalorder %s49, %s50
    %p59 = scmp.eq.s32.totalorder %s18, 0
    %p60 = por %p58, %p59
    %p61 = scmp.ne.s32.totalorder %s49, %s50
    %p62 = scmp.eq.s32.totalorder %s19, 1
    %p63 = por %p61, %p62
    %p65 = scmp.ne.s32.totalorder %s50, %s64
    %p66 = scmp.eq.s32.totalorder %s19, 0
    %p67 = por %p65, %p66
    %s69 = sadd.s32 %s68, 1
    %p72 = scmp.eq.s32.totalorder %s13, 1
    %p73 = scmp.ne.s32.totalorder %s68, %s70
    %p74 = scmp.eq.s32.totalorder %s13, 0
    %p75 = por %p73, %p74
    %p76 = scmp.ne.s32.totalorder %s68, %s70
    %p77 = scmp.eq.s32.totalorder %s18, 1
    %p78 = por %p76, %p77
    %p79 = scmp.ne.s32.totalorder %s70, %s71
    %p80 = scmp.eq.s32.totalorder %s18, 0
    %p81 = por %p79, %p80
    %p82 = scmp.ne.s32.totalorder %s70, %s71
    %p83 = scmp.eq.s32.totalorder %s19, 1
    %p84 = por %p82, %p83
    %p86 = scmp.ne.s32.totalorder %s71, %s85
    %p87 = scmp.eq.s32.totalorder %s19, 0
    %p88 = por %p86, %p87
    %s90 = sadd.s32 %s89, 1
    %p93 = scmp.eq.s32.totalorder %s13, 1
    %p94 = scmp.ne.s32.totalorder %s89, %s91
    %p95 = scmp.eq.s32.totalorder %s13, 0
    %p96 = por %p94, %p95
    %p97 = scmp.ne.s32.totalorder %s89, %s91
    %p98 = scmp.eq.s32.totalorder %s18, 1
    %p99 = por %p97, %p98
    %p100 = scmp.ne.s32.totalorder %s91, %s92
    %p101 = scmp.eq.s32.totalorder %s18, 0
    %p102 = por %p100, %p101
    %p103 = scmp.ne.s32.totalorder %s91, %s92
    %p104 = scmp.eq.s32.totalorder %s19, 1
    %p105 = por %p103, %p104
    %p107 = scmp.ne.s32.totalorder %s92, %s106
    %p108 = scmp.eq.s32.totalorder %s19, 0
    %p109 = por %p107, %p108
    %s110 = ssub.s32 %s13, %s20
    %p111 = scmp.eq.s32.totalorder %s110, 0
    %s113 = sadd.s32 %s112, 1
    %s114 = scalar_select %p111, %s112, %s113
    %p117 = pneg %p111
    %p118 = scmp.eq.s32.totalorder %s13, 1
    %p119 = por %p117, %p118
    %p120 = scmp.ne.s32.totalorder %s112, %s115
    %p121 = scmp.eq.s32.totalorder %s13, 0
    %p122 = por %p120, %p121
    %p123 = scmp.ne.s32.totalorder %s112, %s115
    %p124 = scmp.eq.s32.totalorder %s18, 1
    %p125 = por %p123, %p124
    %p126 = scmp.ne.s32.totalorder %s115, %s116
    %p127 = scmp.eq.s32.totalorder %s18, 0
    %p128 = por %p126, %p127
    %p129 = scmp.ne.s32.totalorder %s115, %s116
    %p130 = scmp.eq.s32.totalorder %s19, 1
    %p131 = por %p129, %p130
    %p133 = scmp.ne.s32.totalorder %s116, %s132
    %p134 = scmp.eq.s32.totalorder %s19, 0
    %p135 = por %p133, %p134
    %s136 = ssub.s32 %s13, %s20
    %p137 = scmp.eq.s32.totalorder %s136, 0
    %s139 = sadd.s32 %s138, 1
    %s140 = scalar_select %p137, %s138, %s139
    %p143 = pneg %p137
    %p144 = scmp.eq.s32.totalorder %s13, 1
    %p145 = por %p143, %p144
    %p146 = scmp.ne.s32.totalorder %s138, %s141
    %p147 = scmp.eq.s32.totalorder %s13, 0
    %p148 = por %p146, %p147
    %p149 = scmp.ne.s32.totalorder %s138, %s141
    %p150 = scmp.eq.s32.totalorder %s18, 1
    %p151 = por %p149, %p150
    %p152 = scmp.ne.s32.totalorder %s141, %s142
    %p153 = scmp.eq.s32.totalorder %s18, 0
    %p154 = por %p152, %p153
    %p155 = scmp.ne.s32.totalorder %s141, %s142
    %p156 = scmp.eq.s32.totalorder %s19, 1
    %p157 = por %p155, %p156
    %p159 = scmp.ne.s32.totalorder %s142, %s158
    %p160 = scmp.eq.s32.totalorder %s19, 0
    %p161 = por %p159, %p160
    %s162 = ssub.s32 %s13, %s20
    %p163 = scmp.eq.s32.totalorder %s162, 0
    %s165 = sadd.s32 %s164, 1
    %s166 = scalar_select %p163, %s164, %s165
    %p169 = pneg %p163
    %p170 = scmp.eq.s32.totalorder %s13, 1
    %p171 = por %p169, %p170
    %p172 = scmp.ne.s32.totalorder %s164, %s167
    %p173 = scmp.eq.s32.totalorder %s13, 0
    %p174 = por %p172, %p173
    %p175 = scmp.ne.s32.totalorder %s164, %s167
    %p176 = scmp.eq.s32.totalorder %s18, 1
    %p177 = por %p175, %p176
    %p178 = scmp.ne.s32.totalorder %s167, %s168
    %p179 = scmp.eq.s32.totalorder %s18, 0
    %p180 = por %p178, %p179
    %p181 = scmp.ne.s32.totalorder %s167, %s168
    %p182 = scmp.eq.s32.totalorder %s19, 1
    %p183 = por %p181, %p182
    %p185 = scmp.ne.s32.totalorder %s168, %s184
    %p186 = scmp.eq.s32.totalorder %s19, 0
    %p187 = por %p185, %p186
    %p188 = scmp.le.s32.totalorder 1, %s13
    %p189 = scmp.lt.s32.totalorder %s13, 3
    %p190 = pnand %p188, %p189
    %p191 = pneg %p190
    // Predicated region
    $region9: #{down_forward.4} parent=5 // pred_check
      _
    $region10: #{down_forward.4} parent=5 // pred_check_branch
      %193 = sbr.rel (%p190) target = $region12
    $region11: #{down_forward.4} parent=5 // pred_region
      %s194 = ssub.s32 %s13, 1
      // Predicated region
      $region13: #{down_forward.4} parent=11 // pred_check
        %p195 = pneg %p60
      $region14: #{down_forward.4} parent=11 // pred_check_branch
        %197 = sbr.rel (%p195) target = $region16
      $region15: #{down_forward.4} parent=11 // pred_region
        _
      $region16: #{down_forward.4} parent=11 // pred_fallthru
        _
      // Predicated region
      $region17: #{down_forward.4} parent=11 // pred_check
        %p198 = pneg %p81
      $region18: #{down_forward.4} parent=11 // pred_check_branch
        %200 = sbr.rel (%p198) target = $region20
      $region19: #{down_forward.4} parent=11 // pred_region
        _
      $region20: #{down_forward.4} parent=11 // pred_fallthru
        _
      // Predicated region
      $region21: #{down_forward.4} parent=11 // pred_check
        %p201 = pneg %p102
      $region22: #{down_forward.4} parent=11 // pred_check_branch
        %203 = sbr.rel (%p201) target = $region24
      $region23: #{down_forward.4} parent=11 // pred_region
        _
      $region24: #{down_forward.4} parent=11 // pred_fallthru
        _
    $region12: #{down_forward.4} parent=5 // pred_fallthru
      _
    %p204 = scmp.lt.s32.totalorder %s13, 2
    // Predicated region
    $region25: #{down_forward.4} parent=5 // pred_check
      %p205 = pneg %p204
    $region26: #{down_forward.4} parent=5 // pred_check_branch
      %207 = sbr.rel (%p205) target = $region28
    $region27: #{down_forward.4} parent=5 // pred_region
      // Predicated region
      $region29: #{down_forward.4} parent=27 // pred_check
        %p208 = pneg %p33
      $region30: #{down_forward.4} parent=27 // pred_check_branch
        %210 = sbr.rel (%p208) target = $region32
      $region31: #{down_forward.4} parent=27 // pred_region
        %p211 = scmp.lt.s32.totalorder %s13, 1
        %s212 = scalar_select %p211, %s13, 1
        %s213 = smul.addr %s212, 8
        %s214 = smul.addr %s213, 4
        %s215 = scalar_lea.vmem %s0, %s214
      $region32: #{down_forward.4} parent=27 // pred_fallthru
        _
    $region28: #{down_forward.4} parent=5 // pred_fallthru
      _
    %p216 = scmp.le.s32.totalorder 1, %s13
    %p217 = scmp.lt.s32.totalorder %s13, 3
    %p218 = pnand %p216, %p217
    %p219 = pneg %p218
    // Predicated region
    $region33: #{down_forward.4} parent=5 // pred_check
      _
    $region34: #{down_forward.4} parent=5 // pred_check_branch
      %221 = sbr.rel (%p218) target = $region36
    $region35: #{down_forward.4} parent=5 // pred_region
      %s222 = ssub.s32 %s13, 1
      %p223 = scmp.lt.s32.totalorder %s18, 1
      %s224 = scalar_select %p223, %s18, 1
      %s225 = smul.addr %s224, 8
      %s226 = smul.addr %s225, 4
      %s227 = scalar_lea.vmem %s0, %s226
      %p228 = pneg %p39
      %p229 = pneg %p36
      %p230 = pneg %p60
      %p231 = pneg %p57
      %p232 = pneg %p81
      %p233 = pneg %p78
      %p234 = pneg %p102
      %p235 = pneg %p99
      %p236 = pneg %p128
      %p237 = pneg %p125
      %p238 = scmp.lt.s32.totalorder %s18, 1
      %s239 = scalar_select %p238, %s18, 1
      %s240 = smul.addr %s239, 8
      %s241 = smul.addr %s240, 4
      %s242 = scalar_lea.vmem %s4, %s241
      %p243 = pneg %p154
      %p244 = pneg %p151
      %p245 = scmp.lt.s32.totalorder %s18, 1
      %s246 = scalar_select %p245, %s18, 1
      %s247 = scalar_lea.vmem %s5, %s246
      %p248 = pneg %p180
      %p249 = pneg %p177
      %p250 = scmp.lt.s32.totalorder %s18, 1
      %s251 = scalar_select %p250, %s18, 1
      %s252 = scalar_lea.vmem %s6, %s251
      %p253 = scmp.lt.s32.totalorder %s18, 1
      %s254 = scalar_select %p253, %s18, 1
      %s255 = smul.addr %s254, 8
      %s256 = smul.addr %s255, 4
      %s257 = scalar_lea.vmem %s0, %s256
      %p258 = scmp.lt.s32.totalorder %s18, 1
      %s259 = scalar_select %p258, %s18, 1
      %s260 = smul.addr %s259, 8
      %s261 = smul.addr %s260, 4
      %s262 = scalar_lea.vmem %s4, %s261
      %p263 = scmp.lt.s32.totalorder %s18, 1
      %s264 = scalar_select %p263, %s18, 1
      %s265 = scalar_lea.vmem %s5, %s264
      %p266 = scmp.lt.s32.totalorder %s18, 1
      %s267 = scalar_select %p266, %s18, 1
      %s268 = scalar_lea.vmem %s6, %s267
      %vm270 = vcmask 64512
      %271 = vst.msk [vmem:[#allocation2] sm:$0xff] %vm270, 0.0
      %272 = vst.msk [vmem:[#allocation2 + $0x8] sm:$0xff] %vm270, 0.0
      %273 = vst.msk [vmem:[#allocation2 + $0x50] sm:$0xff] %vm270, 0.0
      %274 = vst.msk [vmem:[#allocation2 + $0x58] sm:$0xff] %vm270, 0.0
      %v275 = vld [vmem:[%s257] sm:$0xf]
      %v276 = vld [vmem:[%s257 + $0x4] sm:$0xf]
      %v277 = vld [vmem:[%s257 + $0x8] sm:$0xf]
      %v278 = vld [vmem:[%s257 + $0xc] sm:$0xf]
      %v279 = vld [vmem:[%s257 + $0x10] sm:$0xf]
      %v280 = vld [vmem:[%s257 + $0x14] sm:$0xf]
      %v281 = vld [vmem:[%s257 + $0x18] sm:$0xf]
      %v282 = vld [vmem:[%s257 + $0x1c] sm:$0xf]
      %v283 = vunpack.c.l.bf16 %v275
      %v284 = vunpack.c.l.bf16 %v276
      %v285 = vunpack.c.l.bf16 %v277
      %v286 = vunpack.c.l.bf16 %v278
      %v287 = vunpack.c.l.bf16 %v279
      %v288 = vunpack.c.l.bf16 %v280
      %v289 = vunpack.c.l.bf16 %v281
      %v290 = vunpack.c.l.bf16 %v282
      %v291 = vld [vmem:[%s1] sm:$0x1]
      %v293 = vlaneseq
      %v294 = vshrl.u32 %v293, 7
      %v295 = vsub.s32 0, %v294
      %v296 = vrot.slane %v291, %v295
      %v298 = vmul.f32 %v283, %v296
      %v299 = vmul.f32 %v284, %v296
      %v300 = vmul.f32 %v285, %v296
      %v301 = vmul.f32 %v286, %v296
      %v302 = vmul.f32 %v287, %v296
      %v303 = vmul.f32 %v288, %v296
      %v304 = vmul.f32 %v289, %v296
      %v305 = vmul.f32 %v290, %v296
      %v306 = vld [vmem:[%s2] sm:$0x1]
      %v308 = vlaneseq
      %v309 = vshrl.u32 %v308, 7
      %v310 = vsub.s32 0, %v309
      %v311 = vrot.slane %v306, %v310
      %v313 = vadd.f32 %v298, %v311
      %v314 = vadd.f32 %v299, %v311
      %v315 = vadd.f32 %v300, %v311
      %v316 = vadd.f32 %v301, %v311
      %v317 = vadd.f32 %v302, %v311
      %v318 = vadd.f32 %v303, %v311
      %v319 = vadd.f32 %v304, %v311
      %v320 = vadd.f32 %v305, %v311
      %v321 = vmax.f32 %v313, 0.0
      %v322 = vmax.f32 %v314, 0.0
      %v323 = vmax.f32 %v315, 0.0
      %v324 = vmax.f32 %v316, 0.0
      %v325 = vmax.f32 %v317, 0.0
      %v326 = vmax.f32 %v318, 0.0
      %v327 = vmax.f32 %v319, 0.0
      %v328 = vmax.f32 %v320, 0.0
      %329 = vst.msk [vmem:[#allocation2 + $0x10] sm:$0xff] %vm270, %v321
      %330 = vst.msk [vmem:[#allocation2 + $0x18] sm:$0xff] %vm270, %v322
      %331 = vst.msk [vmem:[#allocation2 + $0x20] sm:$0xff] %vm270, %v323
      %332 = vst.msk [vmem:[#allocation2 + $0x28] sm:$0xff] %vm270, %v324
      %333 = vst.msk [vmem:[#allocation2 + $0x30] sm:$0xff] %vm270, %v325
      %334 = vst.msk [vmem:[#allocation2 + $0x38] sm:$0xff] %vm270, %v326
      %335 = vst.msk [vmem:[#allocation2 + $0x40] sm:$0xff] %vm270, %v327
      %336 = vst.msk [vmem:[#allocation2 + $0x48] sm:$0xff] %vm270, %v328
      %v337 = vlaneseq
      %v338 = vshrl.u32 %v337, 7
      %v339 = vadd.s32 %v338, 8
      %v340 = vadd.s32 %v338, 16
      %v341 = vadd.s32 %v338, 24
      %v342 = vadd.s32 %v338, 32
      %v343 = vadd.s32 %v338, 40
      %v344 = vadd.s32 %v338, 48
      %v345 = vadd.s32 %v338, 56
      %vm346 = vcmp.lt.s32.totalorder %v338, 0
      %v347 = vsub.s32 0, %v338
      %v348 = vsel %vm346, %v347, %v338
      %v349 = vshrl.u32 %v348, 3
      %v350 = vand.u32 %v348, 7
      %v351 = vsub.s32 0, %v350
      %v352 = vsel %vm346, %v351, %v350
      %vm353 = vcmp.lt.s32.totalorder %v339, 0
      %v354 = vsub.s32 0, %v339
      %v355 = vsel %vm353, %v354, %v339
      %v356 = vshrl.u32 %v355, 3
      %v357 = vand.u32 %v355, 7
      %v358 = vsub.s32 0, %v357
      %v359 = vsel %vm353, %v358, %v357
      %vm360 = vcmp.lt.s32.totalorder %v340, 0
      %v361 = vsub.s32 0, %v340
      %v362 = vsel %vm360, %v361, %v340
      %v363 = vshrl.u32 %v362, 3
      %v364 = vand.u32 %v362, 7
      %v365 = vsub.s32 0, %v364
      %v366 = vsel %vm360, %v365, %v364
      %vm367 = vcmp.lt.s32.totalorder %v341, 0
      %v368 = vsub.s32 0, %v341
      %v369 = vsel %vm367, %v368, %v341
      %v370 = vshrl.u32 %v369, 3
      %v371 = vand.u32 %v369, 7
      %v372 = vsub.s32 0, %v371
      %v373 = vsel %vm367, %v372, %v371
      %vm374 = vcmp.lt.s32.totalorder %v342, 0
      %v375 = vsub.s32 0, %v342
      %v376 = vsel %vm374, %v375, %v342
      %v377 = vshrl.u32 %v376, 3
      %v378 = vand.u32 %v376, 7
      %v379 = vsub.s32 0, %v378
      %v380 = vsel %vm374, %v379, %v378
      %vm381 = vcmp.lt.s32.totalorder %v343, 0
      %v382 = vsub.s32 0, %v343
      %v383 = vsel %vm381, %v382, %v343
      %v384 = vshrl.u32 %v383, 3
      %v385 = vand.u32 %v383, 7
      %v386 = vsub.s32 0, %v385
      %v387 = vsel %vm381, %v386, %v385
      %vm388 = vcmp.lt.s32.totalorder %v344, 0
      %v389 = vsub.s32 0, %v344
      %v390 = vsel %vm388, %v389, %v344
      %v391 = vshrl.u32 %v390, 3
      %v392 = vand.u32 %v390, 7
      %v393 = vsub.s32 0, %v392
      %v394 = vsel %vm388, %v393, %v392
      %vm395 = vcmp.lt.s32.totalorder %v345, 0
      %v396 = vsub.s32 0, %v345
      %v397 = vsel %vm395, %v396, %v345
      %v398 = vshrl.u32 %v397, 3
      %v399 = vand.u32 %v397, 7
      %v400 = vsub.s32 0, %v399
      %v401 = vsel %vm395, %v400, %v399
      %vm402 = vcmp.ne.s32.totalorder %v352, 0
      %vm403 = vcmp.ne.s32.totalorder %v359, 0
      %vm404 = vcmp.ne.s32.totalorder %v366, 0
      %vm405 = vcmp.ne.s32.totalorder %v373, 0
      %vm406 = vcmp.ne.s32.totalorder %v380, 0
      %vm407 = vcmp.ne.s32.totalorder %v387, 0
      %vm408 = vcmp.ne.s32.totalorder %v394, 0
      %vm409 = vcmp.ne.s32.totalorder %v401, 0
      %vm410 = vcmp.lt.s32.totalorder %v352, 0
      %vm411 = vcmp.lt.s32.totalorder %v359, 0
      %vm412 = vcmp.lt.s32.totalorder %v366, 0
      %vm413 = vcmp.lt.s32.totalorder %v373, 0
      %vm414 = vcmp.lt.s32.totalorder %v380, 0
      %vm415 = vcmp.lt.s32.totalorder %v387, 0
      %vm416 = vcmp.lt.s32.totalorder %v394, 0
      %vm417 = vcmp.lt.s32.totalorder %v401, 0
      %vm418 = vmand %vm410, %vm402
      %vm419 = vmand %vm411, %vm403
      %vm420 = vmand %vm412, %vm404
      %vm421 = vmand %vm413, %vm405
      %vm422 = vmand %vm414, %vm406
      %vm423 = vmand %vm415, %vm407
      %vm424 = vmand %vm416, %vm408
      %vm425 = vmand %vm417, %vm409
      %v426 = vadd.s32 %v352, 8
      %v427 = vadd.s32 %v359, 8
      %v428 = vadd.s32 %v366, 8
      %v429 = vadd.s32 %v373, 8
      %v430 = vadd.s32 %v380, 8
      %v431 = vadd.s32 %v387, 8
      %v432 = vadd.s32 %v394, 8
      %v433 = vadd.s32 %v401, 8
      %v434 = vsel %vm418, %v426, %v352
      %v435 = vsel %vm419, %v427, %v359
      %v436 = vsel %vm420, %v428, %v366
      %v437 = vsel %vm421, %v429, %v373
      %v438 = vsel %vm422, %v430, %v380
      %v439 = vsel %vm423, %v431, %v387
      %v440 = vsel %vm424, %v432, %v394
      %v441 = vsel %vm425, %v433, %v401
      %vm442 = vcmp.gt.s32.totalorder %v434, 0
      %vm443 = vcmp.gt.s32.totalorder %v435, 0
      %vm444 = vcmp.gt.s32.totalorder %v436, 0
      %vm445 = vcmp.gt.s32.totalorder %v437, 0
      %vm446 = vcmp.gt.s32.totalorder %v438, 0
      %vm447 = vcmp.gt.s32.totalorder %v439, 0
      %vm448 = vcmp.gt.s32.totalorder %v440, 0
      %vm449 = vcmp.gt.s32.totalorder %v441, 0
      %vm450 = vcmp.lt.s32.totalorder %v434, 7
      %vm451 = vcmp.lt.s32.totalorder %v435, 7
      %vm452 = vcmp.lt.s32.totalorder %v436, 7
      %vm453 = vcmp.lt.s32.totalorder %v437, 7
      %vm454 = vcmp.lt.s32.totalorder %v438, 7
      %vm455 = vcmp.lt.s32.totalorder %v439, 7
      %vm456 = vcmp.lt.s32.totalorder %v440, 7
      %vm457 = vcmp.lt.s32.totalorder %v441, 7
      %v458 = vld [vmem:[#allocation2 + $0x7] sm:$0xff]
      %v459 = vld [vmem:[#allocation2 + $0xf] sm:$0xff]
      %v460 = vld [vmem:[#allocation2 + $0x17] sm:$0xff]
      %v461 = vld [vmem:[#allocation2 + $0x1f] sm:$0xff]
      %v462 = vld [vmem:[#allocation2 + $0x27] sm:$0xff]
      %v463 = vld [vmem:[#allocation2 + $0x2f] sm:$0xff]
      %v464 = vld [vmem:[#allocation2 + $0x37] sm:$0xff]
      %v465 = vld [vmem:[#allocation2 + $0x3f] sm:$0xff]
      %v466 = vsel %vm442, 1, 0
      %v467 = vsel %vm443, 1, 0
      %v468 = vsel %vm444, 1, 0
      %v469 = vsel %vm445, 1, 0
      %v470 = vsel %vm446, 1, 0
      %v471 = vsel %vm447, 1, 0
      %v472 = vsel %vm448, 1, 0
      %v473 = vsel %vm449, 1, 0
      %vm474 = vcmp.eq.s32.totalorder %v466, 1
      %vm475 = vcmp.eq.s32.totalorder %v467, 1
      %vm476 = vcmp.eq.s32.totalorder %v468, 1
      %vm477 = vcmp.eq.s32.totalorder %v469, 1
      %vm478 = vcmp.eq.s32.totalorder %v470, 1
      %vm479 = vcmp.eq.s32.totalorder %v471, 1
      %vm480 = vcmp.eq.s32.totalorder %v472, 1
      %vm481 = vcmp.eq.s32.totalorder %v473, 1
      %v482 = vsel %vm474, %v458, 0.0
      %v483 = vsel %vm475, %v459, 0.0
      %v484 = vsel %vm476, %v460, 0.0
      %v485 = vsel %vm477, %v461, 0.0
      %v486 = vsel %vm478, %v462, 0.0
      %v487 = vsel %vm479, %v463, 0.0
      %v488 = vsel %vm480, %v464, 0.0
      %v489 = vsel %vm481, %v465, 0.0
      %v490 = vpack.c.bf16 %v483, %v482
      %v491 = vpack.c.bf16 %v485, %v484
      %v492 = vpack.c.bf16 %v487, %v486
      %v493 = vpack.c.bf16 %v489, %v488
      %v494 = vld [vmem:[%s3] sm:$0xf]
      %v496 = vsel %vm270, %v490, 0
      %v499 = vsel %vm270, %v491, 0
      %v502 = vsel %vm270, %v492, 0
      %v505 = vsel %vm270, %v493, 0
      %vm507 = vcmask 1043456
      %v509 = vsel %vm507, %v494, 0
      %511 = vmatprep.subr.bf16.mxu0 0
      %512 = vmatpush1.bf16.msra.mxu0 %v509
      %513 = vmatprep.subr.bf16.mxu0 0
      %514 = vmatpush1.bf16.msra.mxu0 0
      %515 = vmatprep.subr.bf16.mxu0 0
      %516 = vmatpush1.bf16.msra.mxu0 0
      %517 = vmatprep.subr.bf16.mxu0 0
      %518 = vmatpush1.bf16.msra.mxu0 0
      %519 = vmatprep.subr.bf16.mxu0 0
      %520 = vmatpush1.bf16.msra.mxu0 0
      %521 = vmatprep.subr.bf16.mxu0 0
      %522 = vmatpush1.bf16.msra.mxu0 0
      %523 = vmatprep.subr.bf16.mxu0 0
      %524 = vmatpush1.bf16.msra.mxu0 0
      %525 = vmatprep.subr.bf16.mxu0 0
      %526 = vmatpush1.bf16.msra.mxu0 0
      %527 = vmatprep.subr.bf16.mxu0 0
      %528 = vmatpush1.bf16.msra.mxu0 0
      %529 = vmatprep.subr.bf16.mxu0 0
      %530 = vmatpush1.bf16.msra.mxu0 0
      %531 = vmatprep.subr.bf16.mxu0 0
      %532 = vmatpush1.bf16.msra.mxu0 0
      %533 = vmatprep.subr.bf16.mxu0 0
      %534 = vmatpush1.bf16.msra.mxu0 0
      %535 = vmatprep.subr.bf16.mxu0 0
      %536 = vmatpush1.bf16.msra.mxu0 0
      %537 = vmatprep.subr.bf16.mxu0 0
      %538 = vmatpush1.bf16.msra.mxu0 0
      %539 = vmatprep.subr.bf16.mxu0 0
      %540 = vmatpush1.bf16.msra.mxu0 0
      %541 = vmatprep.subr.bf16.mxu0 0
      %542 = vmatpush1.bf16.msra.mxu0 0
      %543 = vmatprep.mubr.bf16.mxu0 0
      %544 = vmatmul.mubr.bf16.gmra.mrb[0].mxu0 %v496
      %v545 = vpop.f32.mrb[0].mxu0
      %v546 = vadd.f32 0.0, %v545
      %v547 = vpop.f32.mrb[0].mxu0
      %v548 = vpop.f32.mrb[0].mxu0
      %v549 = vadd.f32 0.0, %v548
      %v550 = vpop.f32.mrb[0].mxu0
      %551 = vmatprep.mubr.bf16.mxu0 0
      %552 = vmatmul.mubr.bf16.gmra.mrb[0].mxu0 %v499
      %v553 = vpop.f32.mrb[0].mxu0
      %v554 = vadd.f32 0.0, %v553
      %v555 = vpop.f32.mrb[0].mxu0
      %v556 = vpop.f32.mrb[0].mxu0
      %v557 = vadd.f32 0.0, %v556
      %v558 = vpop.f32.mrb[0].mxu0
      %559 = vmatprep.mubr.bf16.mxu0 0
      %560 = vmatmul.mubr.bf16.gmra.mrb[0].mxu0 %v502
      %v561 = vpop.f32.mrb[0].mxu0
      %v562 = vadd.f32 0.0, %v561
      %v563 = vpop.f32.mrb[0].mxu0
      %v564 = vpop.f32.mrb[0].mxu0
      %v565 = vadd.f32 0.0, %v564
      %v566 = vpop.f32.mrb[0].mxu0
      %567 = vmatprep.mubr.bf16.mxu0 0
      %568 = vmatmul.mubr.bf16.gmra.mrb[0].mxu0 %v505
      %v569 = vpop.f32.mrb[0].mxu0
      %v570 = vadd.f32 0.0, %v569
      %v571 = vpop.f32.mrb[0].mxu0
      %v572 = vpop.f32.mrb[0].mxu0
      %v573 = vadd.f32 0.0, %v572
      %v574 = vpop.f32.mrb[0].mxu0
      %575 = vdwg.mxu0
      %576 = vst.msk [vmem:[#allocation3] sm:$0xff] %vm270, %v546
      %577 = vst.msk [vmem:[#allocation3 + $0x8] sm:$0xff] %vm270, %v549
      %578 = vst.msk [vmem:[#allocation3 + $0x10] sm:$0xff] %vm270, %v554
      %579 = vst.msk [vmem:[#allocation3 + $0x18] sm:$0xff] %vm270, %v557
      %580 = vst.msk [vmem:[#allocation3 + $0x20] sm:$0xff] %vm270, %v562
      %581 = vst.msk [vmem:[#allocation3 + $0x28] sm:$0xff] %vm270, %v565
      %582 = vst.msk [vmem:[#allocation3 + $0x30] sm:$0xff] %vm270, %v570
      %583 = vst.msk [vmem:[#allocation3 + $0x38] sm:$0xff] %vm270, %v573
      %v584 = vld [vmem:[#allocation2 + $0x8] sm:$0xff]
      %v585 = vld [vmem:[#allocation2 + $0x10] sm:$0xff]
      %v586 = vld [vmem:[#allocation2 + $0x18] sm:$0xff]
      %v587 = vld [vmem:[#allocation2 + $0x20] sm:$0xff]
      %v588 = vld [vmem:[#allocation2 + $0x28] sm:$0xff]
      %v589 = vld [vmem:[#allocation2 + $0x30] sm:$0xff]
      %v590 = vld [vmem:[#allocation2 + $0x38] sm:$0xff]
      %v591 = vld [vmem:[#allocation2 + $0x40] sm:$0xff]
      %v592 = vpack.c.bf16 %v585, %v584
      %v593 = vpack.c.bf16 %v587, %v586
      %v594 = vpack.c.bf16 %v589, %v588
      %v595 = vpack.c.bf16 %v591, %v590
      %s596 = scalar_lea.vmem %s3, 4
      %v597 = vld [vmem:[%s596] sm:$0xf]
      %v599 = vsel %vm270, %v592, 0
      %v602 = vsel %vm270, %v593, 0
      %v605 = vsel %vm270, %v594, 0
      %v608 = vsel %vm270, %v595, 0
      %v611 = vsel %vm507, %v597, 0
      %613 = vmatprep.subr.bf16.mxu0 0
      %614 = vmatpush1.bf16.msra.mxu0 %v611
      %615 = vmatprep.subr.bf16.mxu0 0
      %616 = vmatpush1.bf16.msra.mxu0 0
      %617 = vmatprep.subr.bf16.mxu0 0
      %618 = vmatpush1.bf16.msra.mxu0 0
      %619 = vmatprep.subr.bf16.mxu0 0
      %620 = vmatpush1.bf16.msra.mxu0 0
      %621 = vmatprep.subr.bf16.mxu0 0
      %622 = vmatpush1.bf16.msra.mxu0 0
      %623 = vmatprep.subr.bf16.mxu0 0
      %624 = vmatpush1.bf16.msra.mxu0 0
      %625 = vmatprep.subr.bf16.mxu0 0
      %626 = vmatpush1.bf16.msra.mxu0 0
      %627 = vmatprep.subr.bf16.mxu0 0
      %628 = vmatpush1.bf16.msra.mxu0 0
      %629 = vmatprep.subr.bf16.mxu0 0
      %630 = vmatpush1.bf16.msra.mxu0 0
      %631 = vmatprep.subr.bf16.mxu0 0
      %632 = vmatpush1.bf16.msra.mxu0 0
      %633 = vmatprep.subr.bf16.mxu0 0
      %634 = vmatpush1.bf16.msra.mxu0 0
      %635 = vmatprep.subr.bf16.mxu0 0
      %636 = vmatpush1.bf16.msra.mxu0 0
      %637 = vmatprep.subr.bf16.mxu0 0
      %638 = vmatpush1.bf16.msra.mxu0 0
      %639 = vmatprep.subr.bf16.mxu0 0
      %640 = vmatpush1.bf16.msra.mxu0 0
      %641 = vmatprep.subr.bf16.mxu0 0
      %642 = vmatpush1.bf16.msra.mxu0 0
      %643 = vmatprep.subr.bf16.mxu0 0
      %644 = vmatpush1.bf16.msra.mxu0 0
      %645 = vmatprep.mubr.bf16.mxu0 0
      %646 = vmatmul.mubr.bf16.gmra.mrb[0].mxu0 %v599
      %v647 = vpop.f32.mrb[0].mxu0
      %v648 = vadd.f32 0.0, %v647
      %v649 = vpop.f32.mrb[0].mxu0
      %v650 = vpop.f32.mrb[0].mxu0
      %v651 = vadd.f32 0.0, %v650
      %v652 = vpop.f32.mrb[0].mxu0
      %653 = vmatprep.mubr.bf16.mxu0 0
      %654 = vmatmul.mubr.bf16.gmra.mrb[0].mxu0 %v602
      %v655 = vpop.f32.mrb[0].mxu0
      %v656 = vadd.f32 0.0, %v655
      %v657 = vpop.f32.mrb[0].mxu0
      %v658 = vpop.f32.mrb[0].mxu0
      %v659 = vadd.f32 0.0, %v658
      %v660 = vpop.f32.mrb[0].mxu0
      %661 = vmatprep.mubr.bf16.mxu0 0
      %662 = vmatmul.mubr.bf16.gmra.mrb[0].mxu0 %v605
      %v663 = vpop.f32.mrb[0].mxu0
      %v664 = vadd.f32 0.0, %v663
      %v665 = vpop.f32.mrb[0].mxu0
      %v666 = vpop.f32.mrb[0].mxu0
      %v667 = vadd.f32 0.0, %v666
      %v668 = vpop.f32.mrb[0].mxu0
      %669 = vmatprep.mubr.bf16.mxu0 0
      %670 = vmatmul.mubr.bf16.gmra.mrb[0].mxu0 %v608
      %v671 = vpop.f32.mrb[0].mxu0
      %v672 = vadd.f32 0.0, %v671
      %v673 = vpop.f32.mrb[0].mxu0
      %v674 = vpop.f32.mrb[0].mxu0
      %v675 = vadd.f32 0.0, %v674
      %v676 = vpop.f32.mrb[0].mxu0
      %677 = vdwg.mxu0
      %v678 = vld [vmem:[#allocation3] sm:$0xff]
      %v679 = vld [vmem:[#allocation3 + $0x8] sm:$0xff]
      %v680 = vld [vmem:[#allocation3 + $0x10] sm:$0xff]
      %v681 = vld [vmem:[#allocation3 + $0x18] sm:$0xff]
      %v682 = vld [vmem:[#allocation3 + $0x20] sm:$0xff]
      %v683 = vld [vmem:[#allocation3 + $0x28] sm:$0xff]
      %v684 = vld [vmem:[#allocation3 + $0x30] sm:$0xff]
      %v685 = vld [vmem:[#allocation3 + $0x38] sm:$0xff]
      %v686 = vadd.f32 %v678, %v648
      %v687 = vadd.f32 %v679, %v651
      %v688 = vadd.f32 %v680, %v656
      %v689 = vadd.f32 %v681, %v659
      %v690 = vadd.f32 %v682, %v664
      %v691 = vadd.f32 %v683, %v667
      %v692 = vadd.f32 %v684, %v672
      %v693 = vadd.f32 %v685, %v675
      %694 = vst.msk [vmem:[#allocation3] sm:$0xff] %vm270, %v686
      %695 = vst.msk [vmem:[#allocation3 + $0x8] sm:$0xff] %vm270, %v687
      %696 = vst.msk [vmem:[#allocation3 + $0x10] sm:$0xff] %vm270, %v688
      %697 = vst.msk [vmem:[#allocation3 + $0x18] sm:$0xff] %vm270, %v689
      %698 = vst.msk [vmem:[#allocation3 + $0x20] sm:$0xff] %vm270, %v690
      %699 = vst.msk [vmem:[#allocation3 + $0x28] sm:$0xff] %vm270, %v691
      %700 = vst.msk [vmem:[#allocation3 + $0x30] sm:$0xff] %vm270, %v692
      %701 = vst.msk [vmem:[#allocation3 + $0x38] sm:$0xff] %vm270, %v693
      %v702 = vld [vmem:[#allocation2 + $0x9] sm:$0xff]
      %v703 = vld [vmem:[#allocation2 + $0x11] sm:$0xff]
      %v704 = vld [vmem:[#allocation2 + $0x19] sm:$0xff]
      %v705 = vld [vmem:[#allocation2 + $0x21] sm:$0xff]
      %v706 = vld [vmem:[#allocation2 + $0x29] sm:$0xff]
      %v707 = vld [vmem:[#allocation2 + $0x31] sm:$0xff]
      %v708 = vld [vmem:[#allocation2 + $0x39] sm:$0xff]
      %v709 = vld [vmem:[#allocation2 + $0x41] sm:$0xff]
      %v710 = vsel %vm450, 1, 0
      %v711 = vsel %vm451, 1, 0
      %v712 = vsel %vm452, 1, 0
      %v713 = vsel %vm453, 1, 0
      %v714 = vsel %vm454, 1, 0
      %v715 = vsel %vm455, 1, 0
      %v716 = vsel %vm456, 1, 0
      %v717 = vsel %vm457, 1, 0
      %vm718 = vcmp.eq.s32.totalorder %v710, 1
      %vm719 = vcmp.eq.s32.totalorder %v711, 1
      %vm720 = vcmp.eq.s32.totalorder %v712, 1
      %vm721 = vcmp.eq.s32.totalorder %v713, 1
      %vm722 = vcmp.eq.s32.totalorder %v714, 1
      %vm723 = vcmp.eq.s32.totalorder %v715, 1
      %vm724 = vcmp.eq.s32.totalorder %v716, 1
      %vm725 = vcmp.eq.s32.totalorder %v717, 1
      %v726 = vsel %vm718, %v702, 0.0
      %v727 = vsel %vm719, %v703, 0.0
      %v728 = vsel %vm720, %v704, 0.0
      %v729 = vsel %vm721, %v705, 0.0
      %v730 = vsel %vm722, %v706, 0.0
      %v731 = vsel %vm723, %v707, 0.0
      %v732 = vsel %vm724, %v708, 0.0
      %v733 = vsel %vm725, %v709, 0.0
      %v734 = vpack.c.bf16 %v727, %v726
      %v735 = vpack.c.bf16 %v729, %v728
      %v736 = vpack.c.bf16 %v731, %v730
      %v737 = vpack.c.bf16 %v733, %v732
      %s738 = scalar_lea.vmem %s3, 8
      %v739 = vld [vmem:[%s738] sm:$0xf]
      %v741 = vsel %vm270, %v734, 0
      %v744 = vsel %vm270, %v735, 0
      %v747 = vsel %vm270, %v736, 0
      %v750 = vsel %vm270, %v737, 0
      %v753 = vsel %vm507, %v739, 0
      %755 = vmatprep.subr.bf16.mxu0 0
      %756 = vmatpush1.bf16.msra.mxu0 %v753
      %757 = vmatprep.subr.bf16.mxu0 0
      %758 = vmatpush1.bf16.msra.mxu0 0
      %759 = vmatprep.subr.bf16.mxu0 0
      %760 = vmatpush1.bf16.msra.mxu0 0
      %761 = vmatprep.subr.bf16.mxu0 0
      %762 = vmatpush1.bf16.msra.mxu0 0
      %763 = vmatprep.subr.bf16.mxu0 0
      %764 = vmatpush1.bf16.msra.mxu0 0
      %765 = vmatprep.subr.bf16.mxu0 0
      %766 = vmatpush1.bf16.msra.mxu0 0
      %767 = vmatprep.subr.bf16.mxu0 0
      %768 = vmatpush1.bf16.msra.mxu0 0
      %769 = vmatprep.subr.bf16.mxu0 0
      %770 = vmatpush1.bf16.msra.mxu0 0
      %771 = vmatprep.subr.bf16.mxu0 0
      %772 = vmatpush1.bf16.msra.mxu0 0
      %773 = vmatprep.subr.bf16.mxu0 0
      %774 = vmatpush1.bf16.msra.mxu0 0
      %775 = vmatprep.subr.bf16.mxu0 0
      %776 = vmatpush1.bf16.msra.mxu0 0
      %777 = vmatprep.subr.bf16.mxu0 0
      %778 = vmatpush1.bf16.msra.mxu0 0
      %779 = vmatprep.subr.bf16.mxu0 0
      %780 = vmatpush1.bf16.msra.mxu0 0
      %781 = vmatprep.subr.bf16.mxu0 0
      %782 = vmatpush1.bf16.msra.mxu0 0
      %783 = vmatprep.subr.bf16.mxu0 0
      %784 = vmatpush1.bf16.msra.mxu0 0
      %785 = vmatprep.subr.bf16.mxu0 0
      %786 = vmatpush1.bf16.msra.mxu0 0
      %787 = vmatprep.mubr.bf16.mxu0 0
      %788 = vmatmul.mubr.bf16.gmra.mrb[0].mxu0 %v741
      %v789 = vpop.f32.mrb[0].mxu0
      %v790 = vadd.f32 0.0, %v789
      %v791 = vpop.f32.mrb[0].mxu0
      %v792 = vpop.f32.mrb[0].mxu0
      %v793 = vadd.f32 0.0, %v792
      %v794 = vpop.f32.mrb[0].mxu0
      %795 = vmatprep.mubr.bf16.mxu0 0
      %796 = vmatmul.mubr.bf16.gmra.mrb[0].mxu0 %v744
      %v797 = vpop.f32.mrb[0].mxu0
      %v798 = vadd.f32 0.0, %v797
      %v799 = vpop.f32.mrb[0].mxu0
      %v800 = vpop.f32.mrb[0].mxu0
      %v801 = vadd.f32 0.0, %v800
      %v802 = vpop.f32.mrb[0].mxu0
      %803 = vmatprep.mubr.bf16.mxu0 0
      %804 = vmatmul.mubr.bf16.gmra.mrb[0].mxu0 %v747
      %v805 = vpop.f32.mrb[0].mxu0
      %v806 = vadd.f32 0.0, %v805
      %v807 = vpop.f32.mrb[0].mxu0
      %v808 = vpop.f32.mrb[0].mxu0
      %v809 = vadd.f32 0.0, %v808
      %v810 = vpop.f32.mrb[0].mxu0
      %811 = vmatprep.mubr.bf16.mxu0 0
      %812 = vmatmul.mubr.bf16.gmra.mrb[0].mxu0 %v750
      %v813 = vpop.f32.mrb[0].mxu0
      %v814 = vadd.f32 0.0, %v813
      %v815 = vpop.f32.mrb[0].mxu0
      %v816 = vpop.f32.mrb[0].mxu0
      %v817 = vadd.f32 0.0, %v816
      %v818 = vpop.f32.mrb[0].mxu0
      %819 = vdwg.mxu0
      %v820 = vld [vmem:[#allocation3] sm:$0xff]
      %v821 = vld [vmem:[#allocation3 + $0x8] sm:$0xff]
      %v822 = vld [vmem:[#allocation3 + $0x10] sm:$0xff]
      %v823 = vld [vmem:[#allocation3 + $0x18] sm:$0xff]
      %v824 = vld [vmem:[#allocation3 + $0x20] sm:$0xff]
      %v825 = vld [vmem:[#allocation3 + $0x28] sm:$0xff]
      %v826 = vld [vmem:[#allocation3 + $0x30] sm:$0xff]
      %v827 = vld [vmem:[#allocation3 + $0x38] sm:$0xff]
      %v828 = vadd.f32 %v820, %v790
      %v829 = vadd.f32 %v821, %v793
      %v830 = vadd.f32 %v822, %v798
      %v831 = vadd.f32 %v823, %v801
      %v832 = vadd.f32 %v824, %v806
      %v833 = vadd.f32 %v825, %v809
      %v834 = vadd.f32 %v826, %v814
      %v835 = vadd.f32 %v827, %v817
      %836 = vst.msk [vmem:[#allocation3] sm:$0xff] %vm270, %v828
      %837 = vst.msk [vmem:[#allocation3 + $0x8] sm:$0xff] %vm270, %v829
      %838 = vst.msk [vmem:[#allocation3 + $0x10] sm:$0xff] %vm270, %v830
      %839 = vst.msk [vmem:[#allocation3 + $0x18] sm:$0xff] %vm270, %v831
      %840 = vst.msk [vmem:[#allocation3 + $0x20] sm:$0xff] %vm270, %v832
      %841 = vst.msk [vmem:[#allocation3 + $0x28] sm:$0xff] %vm270, %v833
      %842 = vst.msk [vmem:[#allocation3 + $0x30] sm:$0xff] %vm270, %v834
      %843 = vst.msk [vmem:[#allocation3 + $0x38] sm:$0xff] %vm270, %v835
      %v844 = vld [vmem:[#allocation2 + $0xf] sm:$0xff]
      %v845 = vld [vmem:[#allocation2 + $0x17] sm:$0xff]
      %v846 = vld [vmem:[#allocation2 + $0x1f] sm:$0xff]
      %v847 = vld [vmem:[#allocation2 + $0x27] sm:$0xff]
      %v848 = vld [vmem:[#allocation2 + $0x2f] sm:$0xff]
      %v849 = vld [vmem:[#allocation2 + $0x37] sm:$0xff]
      %v850 = vld [vmem:[#allocation2 + $0x3f] sm:$0xff]
      %v851 = vld [vmem:[#allocation2 + $0x47] sm:$0xff]
      %v852 = vsel %vm474, %v844, 0.0
      %v853 = vsel %vm475, %v845, 0.0
      %v854 = vsel %vm476, %v846, 0.0
      %v855 = vsel %vm477, %v847, 0.0
      %v856 = vsel %vm478, %v848, 0.0
      %v857 = vsel %vm479, %v849, 0.0
      %v858 = vsel %vm480, %v850, 0.0
      %v859 = vsel %vm481, %v851, 0.0
      %v860 = vpack.c.bf16 %v853, %v852
      %v861 = vpack.c.bf16 %v855, %v854
      %v862 = vpack.c.bf16 %v857, %v856
      %v863 = vpack.c.bf16 %v859, %v858
      %s864 = scalar_lea.vmem %s3, 12
      %v865 = vld [vmem:[%s864] sm:$0xf]
      %v867 = vsel %vm270, %v860, 0
      %v870 = vsel %vm270, %v861, 0
      %v873 = vsel %vm270, %v862, 0
      %v876 = vsel %vm270, %v863, 0
      %v879 = vsel %vm507, %v865, 0
      %881 = vmatprep.subr.bf16.mxu0 0
      %882 = vmatpush1.bf16.msra.mxu0 %v879
      %883 = vmatprep.subr.bf16.mxu0 0
      %884 = vmatpush1.bf16.msra.mxu0 0
      %885 = vmatprep.subr.bf16.mxu0 0
      %886 = vmatpush1.bf16.msra.mxu0 0
      %887 = vmatprep.subr.bf16.mxu0 0
      %888 = vmatpush1.bf16.msra.mxu0 0
      %889 = vmatprep.subr.bf16.mxu0 0
      %890 = vmatpush1.bf16.msra.mxu0 0
      %891 = vmatprep.subr.bf16.mxu0 0
      %892 = vmatpush1.bf16.msra.mxu0 0
      %893 = vmatprep.subr.bf16.mxu0 0
      %894 = vmatpush1.bf16.msra.mxu0 0
      %895 = vmatprep.subr.bf16.mxu0 0
      %896 = vmatpush1.bf16.msra.mxu0 0
      %897 = vmatprep.subr.bf16.mxu0 0
      %898 = vmatpush1.bf16.msra.mxu0 0
      %899 = vmatprep.subr.bf16.mxu0 0
      %900 = vmatpush1.bf16.msra.mxu0 0
      %901 = vmatprep.subr.bf16.mxu0 0
      %902 = vmatpush1.bf16.msra.mxu0 0
      %903 = vmatprep.subr.bf16.mxu0 0
      %904 = vmatpush1.bf16.msra.mxu0 0
      %905 = vmatprep.subr.bf16.mxu0 0
      %906 = vmatpush1.bf16.msra.mxu0 0
      %907 = vmatprep.subr.bf16.mxu0 0
      %908 = vmatpush1.bf16.msra.mxu0 0
      %909 = vmatprep.subr.bf16.mxu0 0
      %910 = vmatpush1.bf16.msra.mxu0 0
      %911 = vmatprep.subr.bf16.mxu0 0
      %912 = vmatpush1.bf16.msra.mxu0 0
      %913 = vmatprep.mubr.bf16.mxu0 0
      %914 = vmatmul.mubr.bf16.gmra.mrb[0].mxu0 %v867
      %v915 = vpop.f32.mrb[0].mxu0
      %v916 = vadd.f32 0.0, %v915
      %v917 = vpop.f32.mrb[0].mxu0
      %v918 = vpop.f32.mrb[0].mxu0
      %v919 = vadd.f32 0.0, %v918
      %v920 = vpop.f32.mrb[0].mxu0
      %921 = vmatprep.mubr.bf16.mxu0 0
      %922 = vmatmul.mubr.bf16.gmra.mrb[0].mxu0 %v870
      %v923 = vpop.f32.mrb[0].mxu0
      %v924 = vadd.f32 0.0, %v923
      %v925 = vpop.f32.mrb[0].mxu0
      %v926 = vpop.f32.mrb[0].mxu0
      %v927 = vadd.f32 0.0, %v926
      %v928 = vpop.f32.mrb[0].mxu0
      %929 = vmatprep.mubr.bf16.mxu0 0
      %930 = vmatmul.mubr.bf16.gmra.mrb[0].mxu0 %v873
      %v931 = vpop.f32.mrb[0].mxu0
      %v932 = vadd.f32 0.0, %v931
      %v933 = vpop.f32.mrb[0].mxu0
      %v934 = vpop.f32.mrb[0].mxu0
      %v935 = vadd.f32 0.0, %v934
      %v936 = vpop.f32.mrb[0].mxu0
      %937 = vmatprep.mubr.bf16.mxu0 0
      %938 = vmatmul.mubr.bf16.gmra.mrb[0].mxu0 %v876
      %v939 = vpop.f32.mrb[0].mxu0
      %v940 = vadd.f32 0.0, %v939
      %v941 = vpop.f32.mrb[0].mxu0
      %v942 = vpop.f32.mrb[0].mxu0
      %v943 = vadd.f32 0.0, %v942
      %v944 = vpop.f32.mrb[0].mxu0
      %945 = vdwg.mxu0
      %v946 = vld [vmem:[#allocation3] sm:$0xff]
      %v947 = vld [vmem:[#allocation3 + $0x8] sm:$0xff]
      %v948 = vld [vmem:[#allocation3 + $0x10] sm:$0xff]
      %v949 = vld [vmem:[#allocation3 + $0x18] sm:$0xff]
      %v950 = vld [vmem:[#allocation3 + $0x20] sm:$0xff]
      %v951 = vld [vmem:[#allocation3 + $0x28] sm:$0xff]
      %v952 = vld [vmem:[#allocation3 + $0x30] sm:$0xff]
      %v953 = vld [vmem:[#allocation3 + $0x38] sm:$0xff]
      %v954 = vadd.f32 %v946, %v916
      %v955 = vadd.f32 %v947, %v919
      %v956 = vadd.f32 %v948, %v924
      %v957 = vadd.f32 %v949, %v927
      %v958 = vadd.f32 %v950, %v932
      %v959 = vadd.f32 %v951, %v935
      %v960 = vadd.f32 %v952, %v940
      %v961 = vadd.f32 %v953, %v943
      %962 = vst.msk [vmem:[#allocation3] sm:$0xff] %vm270, %v954
      %963 = vst.msk [vmem:[#allocation3 + $0x8] sm:$0xff] %vm270, %v955
      %964 = vst.msk [vmem:[#allocation3 + $0x10] sm:$0xff] %vm270, %v956
      %965 = vst.msk [vmem:[#allocation3 + $0x18] sm:$0xff] %vm270, %v957
      %966 = vst.msk [vmem:[#allocation3 + $0x20] sm:$0xff] %vm270, %v958
      %967 = vst.msk [vmem:[#allocation3 + $0x28] sm:$0xff] %vm270, %v959
      %968 = vst.msk [vmem:[#allocation3 + $0x30] sm:$0xff] %vm270, %v960
      %969 = vst.msk [vmem:[#allocation3 + $0x38] sm:$0xff] %vm270, %v961
      %v970 = vld [vmem:[#allocation2 + $0x10] sm:$0xff]
      %v971 = vld [vmem:[#allocation2 + $0x18] sm:$0xff]
      %v972 = vld [vmem:[#allocation2 + $0x20] sm:$0xff]
      %v973 = vld [vmem:[#allocation2 + $0x28] sm:$0xff]
      %v974 = vld [vmem:[#allocation2 + $0x30] sm:$0xff]
      %v975 = vld [vmem:[#allocation2 + $0x38] sm:$0xff]
      %v976 = vld [vmem:[#allocation2 + $0x40] sm:$0xff]
      %v977 = vld [vmem:[#allocation2 + $0x48] sm:$0xff]
      %v978 = vpack.c.bf16 %v971, %v970
      %v979 = vpack.c.bf16 %v973, %v972
      %v980 = vpack.c.bf16 %v975, %v974
      %v981 = vpack.c.bf16 %v977, %v976
      %s982 = scalar_lea.vmem %s3, 16
      %v983 = vld [vmem:[%s982] sm:$0xf]
      %v985 = vsel %vm270, %v978, 0
      %v988 = vsel %vm270, %v979, 0
      %v991 = vsel %vm270, %v980, 0
      %v994 = vsel %vm270, %v981, 0
      %v997 = vsel %vm507, %v983, 0
      %999 = vmatprep.subr.bf16.mxu0 0
      %1000 = vmatpush1.bf16.msra.mxu0 %v997
      %1001 = vmatprep.subr.bf16.mxu0 0
      %1002 = vmatpush1.bf16.msra.mxu0 0
      %1003 = vmatprep.subr.bf16.mxu0 0
      %1004 = vmatpush1.bf16.msra.mxu0 0
      %1005 = vmatprep.subr.bf16.mxu0 0
      %1006 = vmatpush1.bf16.msra.mxu0 0
      %1007 = vmatprep.subr.bf16.mxu0 0
      %1008 = vmatpush1.bf16.msra.mxu0 0
      %1009 = vmatprep.subr.bf16.mxu0 0
      %1010 = vmatpush1.bf16.msra.mxu0 0
      %1011 = vmatprep.subr.bf16.mxu0 0
      %1012 = vmatpush1.bf16.msra.mxu0 0
      %1013 = vmatprep.subr.bf16.mxu0 0
      %1014 = vmatpush1.bf16.msra.mxu0 0
      %1015 = vmatprep.subr.bf16.mxu0 0
      %1016 = vmatpush1.bf16.msra.mxu0 0
      %1017 = vmatprep.subr.bf16.mxu0 0
      %1018 = vmatpush1.bf16.msra.mxu0 0
      %1019 = vmatprep.subr.bf16.mxu0 0
      %1020 = vmatpush1.bf16.msra.mxu0 0
      %1021 = vmatprep.subr.bf16.mxu0 0
      %1022 = vmatpush1.bf16.msra.mxu0 0
      %1023 = vmatprep.subr.bf16.mxu0 0
      %1024 = vmatpush1.bf16.msra.mxu0 0
      %1025 = vmatprep.subr.bf16.mxu0 0
      %1026 = vmatpush1.bf16.msra.mxu0 0
      %1027 = vmatprep.subr.bf16.mxu0 0
      %1028 = vmatpush1.bf16.msra.mxu0 0
      %1029 = vmatprep.subr.bf16.mxu0 0
      %1030 = vmatpush1.bf16.msra.mxu0 0
      %1031 = vmatprep.mubr.bf16.mxu0 0
      %1032 = vmatmul.mubr.bf16.gmra.mrb[0].mxu0 %v985
      %v1033 = vpop.f32.mrb[0].mxu0
      %v1034 = vadd.f32 0.0, %v1033
      %v1035 = vpop.f32.mrb[0].mxu0
      %v1036 = vpop.f32.mrb[0].mxu0
      %v1037 = vadd.f32 0.0, %v1036
      %v1038 = vpop.f32.mrb[0].mxu0
      %1039 = vmatprep.mubr.bf16.mxu0 0
      %1040 = vmatmul.mubr.bf16.gmra.mrb[0].mxu0 %v988
      %v1041 = vpop.f32.mrb[0].mxu0
      %v1042 = vadd.f32 0.0, %v1041
      %v1043 = vpop.f32.mrb[0].mxu0
      %v1044 = vpop.f32.mrb[0].mxu0
      %v1045 = vadd.f32 0.0, %v1044
      %v1046 = vpop.f32.mrb[0].mxu0
      %1047 = vmatprep.mubr.bf16.mxu0 0
      %1048 = vmatmul.mubr.bf16.gmra.mrb[0].mxu0 %v991
      %v1049 = vpop.f32.mrb[0].mxu0
      %v1050 = vadd.f32 0.0, %v1049
      %v1051 = vpop.f32.mrb[0].mxu0
      %v1052 = vpop.f32.mrb[0].mxu0
      %v1053 = vadd.f32 0.0, %v1052
      %v1054 = vpop.f32.mrb[0].mxu0
      %1055 = vmatprep.mubr.bf16.mxu0 0
      %1056 = vmatmul.mubr.bf16.gmra.mrb[0].mxu0 %v994
      %v1057 = vpop.f32.mrb[0].mxu0
      %v1058 = vadd.f32 0.0, %v1057
      %v1059 = vpop.f32.mrb[0].mxu0
      %v1060 = vpop.f32.mrb[0].mxu0
      %v1061 = vadd.f32 0.0, %v1060
      %v1062 = vpop.f32.mrb[0].mxu0
      %1063 = vdwg.mxu0
      %v1064 = vld [vmem:[#allocation3] sm:$0xff]
      %v1065 = vld [vmem:[#allocation3 + $0x8] sm:$0xff]
      %v1066 = vld [vmem:[#allocation3 + $0x10] sm:$0xff]
      %v1067 = vld [vmem:[#allocation3 + $0x18] sm:$0xff]
      %v1068 = vld [vmem:[#allocation3 + $0x20] sm:$0xff]
      %v1069 = vld [vmem:[#allocation3 + $0x28] sm:$0xff]
      %v1070 = vld [vmem:[#allocation3 + $0x30] sm:$0xff]
      %v1071 = vld [vmem:[#allocation3 + $0x38] sm:$0xff]
      %v1072 = vadd.f32 %v1064, %v1034
      %v1073 = vadd.f32 %v1065, %v1037
      %v1074 = vadd.f32 %v1066, %v1042
      %v1075 = vadd.f32 %v1067, %v1045
      %v1076 = vadd.f32 %v1068, %v1050
      %v1077 = vadd.f32 %v1069, %v1053
      %v1078 = vadd.f32 %v1070, %v1058
      %v1079 = vadd.f32 %v1071, %v1061
      %1080 = vst.msk [vmem:[#allocation3] sm:$0xff] %vm270, %v1072
      %1081 = vst.msk [vmem:[#allocation3 + $0x8] sm:$0xff] %vm270, %v1073
      %1082 = vst.msk [vmem:[#allocation3 + $0x10] sm:$0xff] %vm270, %v1074
      %1083 = vst.msk [vmem:[#allocation3 + $0x18] sm:$0xff] %vm270, %v1075
      %1084 = vst.msk [vmem:[#allocation3 + $0x20] sm:$0xff] %vm270, %v1076
      %1085 = vst.msk [vmem:[#allocation3 + $0x28] sm:$0xff] %vm270, %v1077
      %1086 = vst.msk [vmem:[#allocation3 + $0x30] sm:$0xff] %vm270, %v1078
      %1087 = vst.msk [vmem:[#allocation3 + $0x38] sm:$0xff] %vm270, %v1079
      %v1088 = vld [vmem:[#allocation2 + $0x11] sm:$0xff]
      %v1089 = vld [vmem:[#allocation2 + $0x19] sm:$0xff]
      %v1090 = vld [vmem:[#allocation2 + $0x21] sm:$0xff]
      %v1091 = vld [vmem:[#allocation2 + $0x29] sm:$0xff]
      %v1092 = vld [vmem:[#allocation2 + $0x31] sm:$0xff]
      %v1093 = vld [vmem:[#allocation2 + $0x39] sm:$0xff]
      %v1094 = vld [vmem:[#allocation2 + $0x41] sm:$0xff]
      %v1095 = vld [vmem:[#allocation2 + $0x49] sm:$0xff]
      %v1096 = vsel %vm718, %v1088, 0.0
      %v1097 = vsel %vm719, %v1089, 0.0
      %v1098 = vsel %vm720, %v1090, 0.0
      %v1099 = vsel %vm721, %v1091, 0.0
      %v1100 = vsel %vm722, %v1092, 0.0
      %v1101 = vsel %vm723, %v1093, 0.0
      %v1102 = vsel %vm724, %v1094, 0.0
      %v1103 = vsel %vm725, %v1095, 0.0
      %v1104 = vpack.c.bf16 %v1097, %v1096
      %v1105 = vpack.c.bf16 %v1099, %v1098
      %v1106 = vpack.c.bf16 %v1101, %v1100
      %v1107 = vpack.c.bf16 %v1103, %v1102
      %s1108 = scalar_lea.vmem %s3, 20
      %v1109 = vld [vmem:[%s1108] sm:$0xf]
      %v1111 = vsel %vm270, %v1104, 0
      %v1114 = vsel %vm270, %v1105, 0
      %v1117 = vsel %vm270, %v1106, 0
      %v1120 = vsel %vm270, %v1107, 0
      %v1123 = vsel %vm507, %v1109, 0
      %1125 = vmatprep.subr.bf16.mxu0 0
      %1126 = vmatpush1.bf16.msra.mxu0 %v1123
      %1127 = vmatprep.subr.bf16.mxu0 0
      %1128 = vmatpush1.bf16.msra.mxu0 0
      %1129 = vmatprep.subr.bf16.mxu0 0
      %1130 = vmatpush1.bf16.msra.mxu0 0
      %1131 = vmatprep.subr.bf16.mxu0 0
      %1132 = vmatpush1.bf16.msra.mxu0 0
      %1133 = vmatprep.subr.bf16.mxu0 0
      %1134 = vmatpush1.bf16.msra.mxu0 0
      %1135 = vmatprep.subr.bf16.mxu0 0
      %1136 = vmatpush1.bf16.msra.mxu0 0
      %1137 = vmatprep.subr.bf16.mxu0 0
      %1138 = vmatpush1.bf16.msra.mxu0 0
      %1139 = vmatprep.subr.bf16.mxu0 0
      %1140 = vmatpush1.bf16.msra.mxu0 0
      %1141 = vmatprep.subr.bf16.mxu0 0
      %1142 = vmatpush1.bf16.msra.mxu0 0
      %1143 = vmatprep.subr.bf16.mxu0 0
      %1144 = vmatpush1.bf16.msra.mxu0 0
      %1145 = vmatprep.subr.bf16.mxu0 0
      %1146 = vmatpush1.bf16.msra.mxu0 0
      %1147 = vmatprep.subr.bf16.mxu0 0
      %1148 = vmatpush1.bf16.msra.mxu0 0
      %1149 = vmatprep.subr.bf16.mxu0 0
      %1150 = vmatpush1.bf16.msra.mxu0 0
      %1151 = vmatprep.subr.bf16.mxu0 0
      %1152 = vmatpush1.bf16.msra.mxu0 0
      %1153 = vmatprep.subr.bf16.mxu0 0
      %1154 = vmatpush1.bf16.msra.mxu0 0
      %1155 = vmatprep.subr.bf16.mxu0 0
      %1156 = vmatpush1.bf16.msra.mxu0 0
      %1157 = vmatprep.mubr.bf16.mxu0 0
      %1158 = vmatmul.mubr.bf16.gmra.mrb[0].mxu0 %v1111
      %v1159 = vpop.f32.mrb[0].mxu0
      %v1160 = vadd.f32 0.0, %v1159
      %v1161 = vpop.f32.mrb[0].mxu0
      %v1162 = vpop.f32.mrb[0].mxu0
      %v1163 = vadd.f32 0.0, %v1162
      %v1164 = vpop.f32.mrb[0].mxu0
      %1165 = vmatprep.mubr.bf16.mxu0 0
      %1166 = vmatmul.mubr.bf16.gmra.mrb[0].mxu0 %v1114
      %v1167 = vpop.f32.mrb[0].mxu0
      %v1168 = vadd.f32 0.0, %v1167
      %v1169 = vpop.f32.mrb[0].mxu0
      %v1170 = vpop.f32.mrb[0].mxu0
      %v1171 = vadd.f32 0.0, %v1170
      %v1172 = vpop.f32.mrb[0].mxu0
      %1173 = vmatprep.mubr.bf16.mxu0 0
      %1174 = vmatmul.mubr.bf16.gmra.mrb[0].mxu0 %v1117
      %v1175 = vpop.f32.mrb[0].mxu0
      %v1176 = vadd.f32 0.0, %v1175
      %v1177 = vpop.f32.mrb[0].mxu0
      %v1178 = vpop.f32.mrb[0].mxu0
      %v1179 = vadd.f32 0.0, %v1178
      %v1180 = vpop.f32.mrb[0].mxu0
      %1181 = vmatprep.mubr.bf16.mxu0 0
      %1182 = vmatmul.mubr.bf16.gmra.mrb[0].mxu0 %v1120
      %v1183 = vpop.f32.mrb[0].mxu0
      %v1184 = vadd.f32 0.0, %v1183
      %v1185 = vpop.f32.mrb[0].mxu0
      %v1186 = vpop.f32.mrb[0].mxu0
      %v1187 = vadd.f32 0.0, %v1186
      %v1188 = vpop.f32.mrb[0].mxu0
      %1189 = vdwg.mxu0
      %v1190 = vld [vmem:[#allocation3] sm:$0xff]
      %v1191 = vld [vmem:[#allocation3 + $0x8] sm:$0xff]
      %v1192 = vld [vmem:[#allocation3 + $0x10] sm:$0xff]
      %v1193 = vld [vmem:[#allocation3 + $0x18] sm:$0xff]
      %v1194 = vld [vmem:[#allocation3 + $0x20] sm:$0xff]
      %v1195 = vld [vmem:[#allocation3 + $0x28] sm:$0xff]
      %v1196 = vld [vmem:[#allocation3 + $0x30] sm:$0xff]
      %v1197 = vld [vmem:[#allocation3 + $0x38] sm:$0xff]
      %v1198 = vadd.f32 %v1190, %v1160
      %v1199 = vadd.f32 %v1191, %v1163
      %v1200 = vadd.f32 %v1192, %v1168
      %v1201 = vadd.f32 %v1193, %v1171
      %v1202 = vadd.f32 %v1194, %v1176
      %v1203 = vadd.f32 %v1195, %v1179
      %v1204 = vadd.f32 %v1196, %v1184
      %v1205 = vadd.f32 %v1197, %v1187
      %1206 = vst.msk [vmem:[#allocation3] sm:$0xff] %vm270, %v1198
      %1207 = vst.msk [vmem:[#allocation3 + $0x8] sm:$0xff] %vm270, %v1199
      %1208 = vst.msk [vmem:[#allocation3 + $0x10] sm:$0xff] %vm270, %v1200
      %1209 = vst.msk [vmem:[#allocation3 + $0x18] sm:$0xff] %vm270, %v1201
      %1210 = vst.msk [vmem:[#allocation3 + $0x20] sm:$0xff] %vm270, %v1202
      %1211 = vst.msk [vmem:[#allocation3 + $0x28] sm:$0xff] %vm270, %v1203
      %1212 = vst.msk [vmem:[#allocation3 + $0x30] sm:$0xff] %vm270, %v1204
      %1213 = vst.msk [vmem:[#allocation3 + $0x38] sm:$0xff] %vm270, %v1205
      %v1214 = vld [vmem:[#allocation2 + $0x17] sm:$0xff]
      %v1215 = vld [vmem:[#allocation2 + $0x1f] sm:$0xff]
      %v1216 = vld [vmem:[#allocation2 + $0x27] sm:$0xff]
      %v1217 = vld [vmem:[#allocation2 + $0x2f] sm:$0xff]
      %v1218 = vld [vmem:[#allocation2 + $0x37] sm:$0xff]
      %v1219 = vld [vmem:[#allocation2 + $0x3f] sm:$0xff]
      %v1220 = vld [vmem:[#allocation2 + $0x47] sm:$0xff]
      %v1221 = vld [vmem:[#allocation2 + $0x4f] sm:$0xff]
      %v1222 = vsel %vm474, %v1214, 0.0
      %v1223 = vsel %vm475, %v1215, 0.0
      %v1224 = vsel %vm476, %v1216, 0.0
      %v1225 = vsel %vm477, %v1217, 0.0
      %v1226 = vsel %vm478, %v1218, 0.0
      %v1227 = vsel %vm479, %v1219, 0.0
      %v1228 = vsel %vm480, %v1220, 0.0
      %v1229 = vsel %vm481, %v1221, 0.0
      %v1230 = vpack.c.bf16 %v1223, %v1222
      %v1231 = vpack.c.bf16 %v1225, %v1224
      %v1232 = vpack.c.bf16 %v1227, %v1226
      %v1233 = vpack.c.bf16 %v1229, %v1228
      %s1234 = scalar_lea.vmem %s3, 24
      %v1235 = vld [vmem:[%s1234] sm:$0xf]
      %v1237 = vsel %vm270, %v1230, 0
      %v1240 = vsel %vm270, %v1231, 0
      %v1243 = vsel %vm270, %v1232, 0
      %v1246 = vsel %vm270, %v1233, 0
      %v1249 = vsel %vm507, %v1235, 0
      %1251 = vmatprep.subr.bf16.mxu0 0
      %1252 = vmatpush1.bf16.msra.mxu0 %v1249
      %1253 = vmatprep.subr.bf16.mxu0 0
      %1254 = vmatpush1.bf16.msra.mxu0 0
      %1255 = vmatprep.subr.bf16.mxu0 0
      %1256 = vmatpush1.bf16.msra.mxu0 0
      %1257 = vmatprep.subr.bf16.mxu0 0
      %1258 = vmatpush1.bf16.msra.mxu0 0
      %1259 = vmatprep.subr.bf16.mxu0 0
      %1260 = vmatpush1.bf16.msra.mxu0 0
      %1261 = vmatprep.subr.bf16.mxu0 0
      %1262 = vmatpush1.bf16.msra.mxu0 0
      %1263 = vmatprep.subr.bf16.mxu0 0
      %1264 = vmatpush1.bf16.msra.mxu0 0
      %1265 = vmatprep.subr.bf16.mxu0 0
      %1266 = vmatpush1.bf16.msra.mxu0 0
      %1267 = vmatprep.subr.bf16.mxu0 0
      %1268 = vmatpush1.bf16.msra.mxu0 0
      %1269 = vmatprep.subr.bf16.mxu0 0
      %1270 = vmatpush1.bf16.msra.mxu0 0
      %1271 = vmatprep.subr.bf16.mxu0 0
      %1272 = vmatpush1.bf16.msra.mxu0 0
      %1273 = vmatprep.subr.bf16.mxu0 0
      %1274 = vmatpush1.bf16.msra.mxu0 0
      %1275 = vmatprep.subr.bf16.mxu0 0
      %1276 = vmatpush1.bf16.msra.mxu0 0
      %1277 = vmatprep.subr.bf16.mxu0 0
      %1278 = vmatpush1.bf16.msra.mxu0 0
      %1279 = vmatprep.subr.bf16.mxu0 0
      %1280 = vmatpush1.bf16.msra.mxu0 0
      %1281 = vmatprep.subr.bf16.mxu0 0
      %1282 = vmatpush1.bf16.msra.mxu0 0
      %1283 = vmatprep.mubr.bf16.mxu0 0
      %1284 = vmatmul.mubr.bf16.gmra.mrb[0].mxu0 %v1237
      %v1285 = vpop.f32.mrb[0].mxu0
      %v1286 = vadd.f32 0.0, %v1285
      %v1287 = vpop.f32.mrb[0].mxu0
      %v1288 = vpop.f32.mrb[0].mxu0
      %v1289 = vadd.f32 0.0, %v1288
      %v1290 = vpop.f32.mrb[0].mxu0
      %1291 = vmatprep.mubr.bf16.mxu0 0
      %1292 = vmatmul.mubr.bf16.gmra.mrb[0].mxu0 %v1240
      %v1293 = vpop.f32.mrb[0].mxu0
      %v1294 = vadd.f32 0.0, %v1293
      %v1295 = vpop.f32.mrb[0].mxu0
      %v1296 = vpop.f32.mrb[0].mxu0
      %v1297 = vadd.f32 0.0, %v1296
      %v1298 = vpop.f32.mrb[0].mxu0
      %1299 = vmatprep.mubr.bf16.mxu0 0
      %1300 = vmatmul.mubr.bf16.gmra.mrb[0].mxu0 %v1243
      %v1301 = vpop.f32.mrb[0].mxu0
      %v1302 = vadd.f32 0.0, %v1301
      %v1303 = vpop.f32.mrb[0].mxu0
      %v1304 = vpop.f32.mrb[0].mxu0
      %v1305 = vadd.f32 0.0, %v1304
      %v1306 = vpop.f32.mrb[0].mxu0
      %1307 = vmatprep.mubr.bf16.mxu0 0
      %1308 = vmatmul.mubr.bf16.gmra.mrb[0].mxu0 %v1246
      %v1309 = vpop.f32.mrb[0].mxu0
      %v1310 = vadd.f32 0.0, %v1309
      %v1311 = vpop.f32.mrb[0].mxu0
      %v1312 = vpop.f32.mrb[0].mxu0
      %v1313 = vadd.f32 0.0, %v1312
      %v1314 = vpop.f32.mrb[0].mxu0
      %1315 = vdwg.mxu0
      %v1316 = vld [vmem:[#allocation3] sm:$0xff]
      %v1317 = vld [vmem:[#allocation3 + $0x8] sm:$0xff]
      %v1318 = vld [vmem:[#allocation3 + $0x10] sm:$0xff]
      %v1319 = vld [vmem:[#allocation3 + $0x18] sm:$0xff]
      %v1320 = vld [vmem:[#allocation3 + $0x20] sm:$0xff]
      %v1321 = vld [vmem:[#allocation3 + $0x28] sm:$0xff]
      %v1322 = vld [vmem:[#allocation3 + $0x30] sm:$0xff]
      %v1323 = vld [vmem:[#allocation3 + $0x38] sm:$0xff]
      %v1324 = vadd.f32 %v1316, %v1286
      %v1325 = vadd.f32 %v1317, %v1289
      %v1326 = vadd.f32 %v1318, %v1294
      %v1327 = vadd.f32 %v1319, %v1297
      %v1328 = vadd.f32 %v1320, %v1302
      %v1329 = vadd.f32 %v1321, %v1305
      %v1330 = vadd.f32 %v1322, %v1310
      %v1331 = vadd.f32 %v1323, %v1313
      %1332 = vst.msk [vmem:[#allocation3] sm:$0xff] %vm270, %v1324
      %1333 = vst.msk [vmem:[#allocation3 + $0x8] sm:$0xff] %vm270, %v1325
      %1334 = vst.msk [vmem:[#allocation3 + $0x10] sm:$0xff] %vm270, %v1326
      %1335 = vst.msk [vmem:[#allocation3 + $0x18] sm:$0xff] %vm270, %v1327
      %1336 = vst.msk [vmem:[#allocation3 + $0x20] sm:$0xff] %vm270, %v1328
      %1337 = vst.msk [vmem:[#allocation3 + $0x28] sm:$0xff] %vm270, %v1329
      %1338 = vst.msk [vmem:[#allocation3 + $0x30] sm:$0xff] %vm270, %v1330
      %1339 = vst.msk [vmem:[#allocation3 + $0x38] sm:$0xff] %vm270, %v1331
      %v1340 = vld [vmem:[#allocation2 + $0x18] sm:$0xff]
      %v1341 = vld [vmem:[#allocation2 + $0x20] sm:$0xff]
      %v1342 = vld [vmem:[#allocation2 + $0x28] sm:$0xff]
      %v1343 = vld [vmem:[#allocation2 + $0x30] sm:$0xff]
      %v1344 = vld [vmem:[#allocation2 + $0x38] sm:$0xff]
      %v1345 = vld [vmem:[#allocation2 + $0x40] sm:$0xff]
      %v1346 = vld [vmem:[#allocation2 + $0x48] sm:$0xff]
      %v1347 = vld [vmem:[#allocation2 + $0x50] sm:$0xff]
      %v1348 = vpack.c.bf16 %v1341, %v1340
      %v1349 = vpack.c.bf16 %v1343, %v1342
      %v1350 = vpack.c.bf16 %v1345, %v1344
      %v1351 = vpack.c.bf16 %v1347, %v1346
      %s1352 = scalar_lea.vmem %s3, 28
      %v1353 = vld [vmem:[%s1352] sm:$0xf]
      %v1355 = vsel %vm270, %v1348, 0
      %v1358 = vsel %vm270, %v1349, 0
      %v1361 = vsel %vm270, %v1350, 0
      %v1364 = vsel %vm270, %v1351, 0
      %v1367 = vsel %vm507, %v1353, 0
      %1369 = vmatprep.subr.bf16.mxu0 0
      %1370 = vmatpush1.bf16.msra.mxu0 %v1367
      %1371 = vmatprep.subr.bf16.mxu0 0
      %1372 = vmatpush1.bf16.msra.mxu0 0
      %1373 = vmatprep.subr.bf16.mxu0 0
      %1374 = vmatpush1.bf16.msra.mxu0 0
      %1375 = vmatprep.subr.bf16.mxu0 0
      %1376 = vmatpush1.bf16.msra.mxu0 0
      %1377 = vmatprep.subr.bf16.mxu0 0
      %1378 = vmatpush1.bf16.msra.mxu0 0
      %1379 = vmatprep.subr.bf16.mxu0 0
      %1380 = vmatpush1.bf16.msra.mxu0 0
      %1381 = vmatprep.subr.bf16.mxu0 0
      %1382 = vmatpush1.bf16.msra.mxu0 0
      %1383 = vmatprep.subr.bf16.mxu0 0
      %1384 = vmatpush1.bf16.msra.mxu0 0
      %1385 = vmatprep.subr.bf16.mxu0 0
      %1386 = vmatpush1.bf16.msra.mxu0 0
      %1387 = vmatprep.subr.bf16.mxu0 0
      %1388 = vmatpush1.bf16.msra.mxu0 0
      %1389 = vmatprep.subr.bf16.mxu0 0
      %1390 = vmatpush1.bf16.msra.mxu0 0
      %1391 = vmatprep.subr.bf16.mxu0 0
      %1392 = vmatpush1.bf16.msra.mxu0 0
      %1393 = vmatprep.subr.bf16.mxu0 0
      %1394 = vmatpush1.bf16.msra.mxu0 0
      %1395 = vmatprep.subr.bf16.mxu0 0
      %1396 = vmatpush1.bf16.msra.mxu0 0
      %1397 = vmatprep.subr.bf16.mxu0 0
      %1398 = vmatpush1.bf16.msra.mxu0 0
      %1399 = vmatprep.subr.bf16.mxu0 0
      %1400 = vmatpush1.bf16.msra.mxu0 0
      %1401 = vmatprep.mubr.bf16.mxu0 0
      %1402 = vmatmul.mubr.bf16.gmra.mrb[0].mxu0 %v1355
      %v1403 = vpop.f32.mrb[0].mxu0
      %v1404 = vadd.f32 0.0, %v1403
      %v1405 = vpop.f32.mrb[0].mxu0
      %v1406 = vpop.f32.mrb[0].mxu0
      %v1407 = vadd.f32 0.0, %v1406
      %v1408 = vpop.f32.mrb[0].mxu0
      %1409 = vmatprep.mubr.bf16.mxu0 0
      %1410 = vmatmul.mubr.bf16.gmra.mrb[0].mxu0 %v1358
      %v1411 = vpop.f32.mrb[0].mxu0
      %v1412 = vadd.f32 0.0, %v1411
      %v1413 = vpop.f32.mrb[0].mxu0
      %v1414 = vpop.f32.mrb[0].mxu0
      %v1415 = vadd.f32 0.0, %v1414
      %v1416 = vpop.f32.mrb[0].mxu0
      %1417 = vmatprep.mubr.bf16.mxu0 0
      %1418 = vmatmul.mubr.bf16.gmra.mrb[0].mxu0 %v1361
      %v1419 = vpop.f32.mrb[0].mxu0
      %v1420 = vadd.f32 0.0, %v1419
      %v1421 = vpop.f32.mrb[0].mxu0
      %v1422 = vpop.f32.mrb[0].mxu0
      %v1423 = vadd.f32 0.0, %v1422
      %v1424 = vpop.f32.mrb[0].mxu0
      %1425 = vmatprep.mubr.bf16.mxu0 0
      %1426 = vmatmul.mubr.bf16.gmra.mrb[0].mxu0 %v1364
      %v1427 = vpop.f32.mrb[0].mxu0
      %v1428 = vadd.f32 0.0, %v1427
      %v1429 = vpop.f32.mrb[0].mxu0
      %v1430 = vpop.f32.mrb[0].mxu0
      %v1431 = vadd.f32 0.0, %v1430
      %v1432 = vpop.f32.mrb[0].mxu0
      %1433 = vdwg.mxu0
      %v1434 = vld [vmem:[#allocation3] sm:$0xff]
      %v1435 = vld [vmem:[#allocation3 + $0x8] sm:$0xff]
      %v1436 = vld [vmem:[#allocation3 + $0x10] sm:$0xff]
      %v1437 = vld [vmem:[#allocation3 + $0x18] sm:$0xff]
      %v1438 = vld [vmem:[#allocation3 + $0x20] sm:$0xff]
      %v1439 = vld [vmem:[#allocation3 + $0x28] sm:$0xff]
      %v1440 = vld [vmem:[#allocation3 + $0x30] sm:$0xff]
      %v1441 = vld [vmem:[#allocation3 + $0x38] sm:$0xff]
      %v1442 = vadd.f32 %v1434, %v1404
      %v1443 = vadd.f32 %v1435, %v1407
      %v1444 = vadd.f32 %v1436, %v1412
      %v1445 = vadd.f32 %v1437, %v1415
      %v1446 = vadd.f32 %v1438, %v1420
      %v1447 = vadd.f32 %v1439, %v1423
      %v1448 = vadd.f32 %v1440, %v1428
      %v1449 = vadd.f32 %v1441, %v1431
      %1450 = vst.msk [vmem:[#allocation3] sm:$0xff] %vm270, %v1442
      %1451 = vst.msk [vmem:[#allocation3 + $0x8] sm:$0xff] %vm270, %v1443
      %1452 = vst.msk [vmem:[#allocation3 + $0x10] sm:$0xff] %vm270, %v1444
      %1453 = vst.msk [vmem:[#allocation3 + $0x18] sm:$0xff] %vm270, %v1445
      %1454 = vst.msk [vmem:[#allocation3 + $0x20] sm:$0xff] %vm270, %v1446
      %1455 = vst.msk [vmem:[#allocation3 + $0x28] sm:$0xff] %vm270, %v1447
      %1456 = vst.msk [vmem:[#allocation3 + $0x30] sm:$0xff] %vm270, %v1448
      %1457 = vst.msk [vmem:[#allocation3 + $0x38] sm:$0xff] %vm270, %v1449
      %v1458 = vld [vmem:[#allocation2 + $0x19] sm:$0xff]
      %v1459 = vld [vmem:[#allocation2 + $0x21] sm:$0xff]
      %v1460 = vld [vmem:[#allocation2 + $0x29] sm:$0xff]
      %v1461 = vld [vmem:[#allocation2 + $0x31] sm:$0xff]
      %v1462 = vld [vmem:[#allocation2 + $0x39] sm:$0xff]
      %v1463 = vld [vmem:[#allocation2 + $0x41] sm:$0xff]
      %v1464 = vld [vmem:[#allocation2 + $0x49] sm:$0xff]
      %v1465 = vld [vmem:[#allocation2 + $0x51] sm:$0xff]
      %v1466 = vsel %vm718, %v1458, 0.0
      %v1467 = vsel %vm719, %v1459, 0.0
      %v1468 = vsel %vm720, %v1460, 0.0
      %v1469 = vsel %vm721, %v1461, 0.0
      %v1470 = vsel %vm722, %v1462, 0.0
      %v1471 = vsel %vm723, %v1463, 0.0
      %v1472 = vsel %vm724, %v1464, 0.0
      %v1473 = vsel %vm725, %v1465, 0.0
      %v1474 = vpack.c.bf16 %v1467, %v1466
      %v1475 = vpack.c.bf16 %v1469, %v1468
      %v1476 = vpack.c.bf16 %v1471, %v1470
      %v1477 = vpack.c.bf16 %v1473, %v1472
      %s1478 = scalar_lea.vmem %s3, 32
      %v1479 = vld [vmem:[%s1478] sm:$0xf]
      %v1481 = vsel %vm270, %v1474, 0
      %v1484 = vsel %vm270, %v1475, 0
      %v1487 = vsel %vm270, %v1476, 0
      %v1490 = vsel %vm270, %v1477, 0
      %v1493 = vsel %vm507, %v1479, 0
      %1495 = vmatprep.subr.bf16.mxu0 0
      %1496 = vmatpush1.bf16.msra.mxu0 %v1493
      %1497 = vmatprep.subr.bf16.mxu0 0
      %1498 = vmatpush1.bf16.msra.mxu0 0
      %1499 = vmatprep.subr.bf16.mxu0 0
      %1500 = vmatpush1.bf16.msra.mxu0 0
      %1501 = vmatprep.subr.bf16.mxu0 0
      %1502 = vmatpush1.bf16.msra.mxu0 0
      %1503 = vmatprep.subr.bf16.mxu0 0
      %1504 = vmatpush1.bf16.msra.mxu0 0
      %1505 = vmatprep.subr.bf16.mxu0 0
      %1506 = vmatpush1.bf16.msra.mxu0 0
      %1507 = vmatprep.subr.bf16.mxu0 0
      %1508 = vmatpush1.bf16.msra.mxu0 0
      %1509 = vmatprep.subr.bf16.mxu0 0
      %1510 = vmatpush1.bf16.msra.mxu0 0
      %1511 = vmatprep.subr.bf16.mxu0 0
      %1512 = vmatpush1.bf16.msra.mxu0 0
      %1513 = vmatprep.subr.bf16.mxu0 0
      %1514 = vmatpush1.bf16.msra.mxu0 0
      %1515 = vmatprep.subr.bf16.mxu0 0
      %1516 = vmatpush1.bf16.msra.mxu0 0
      %1517 = vmatprep.subr.bf16.mxu0 0
      %1518 = vmatpush1.bf16.msra.mxu0 0
      %1519 = vmatprep.subr.bf16.mxu0 0
      %1520 = vmatpush1.bf16.msra.mxu0 0
      %1521 = vmatprep.subr.bf16.mxu0 0
      %1522 = vmatpush1.bf16.msra.mxu0 0
      %1523 = vmatprep.subr.bf16.mxu0 0
      %1524 = vmatpush1.bf16.msra.mxu0 0
      %1525 = vmatprep.subr.bf16.mxu0 0
      %1526 = vmatpush1.bf16.msra.mxu0 0
      %1527 = vmatprep.mubr.bf16.mxu0 0
      %1528 = vmatmul.mubr.bf16.gmra.mrb[0].mxu0 %v1481
      %v1529 = vpop.f32.mrb[0].mxu0
      %v1530 = vadd.f32 0.0, %v1529
      %v1531 = vpop.f32.mrb[0].mxu0
      %v1532 = vpop.f32.mrb[0].mxu0
      %v1533 = vadd.f32 0.0, %v1532
      %v1534 = vpop.f32.mrb[0].mxu0
      %1535 = vmatprep.mubr.bf16.mxu0 0
      %1536 = vmatmul.mubr.bf16.gmra.mrb[0].mxu0 %v1484
      %v1537 = vpop.f32.mrb[0].mxu0
      %v1538 = vadd.f32 0.0, %v1537
      %v1539 = vpop.f32.mrb[0].mxu0
      %v1540 = vpop.f32.mrb[0].mxu0
      %v1541 = vadd.f32 0.0, %v1540
      %v1542 = vpop.f32.mrb[0].mxu0
      %1543 = vmatprep.mubr.bf16.mxu0 0
      %1544 = vmatmul.mubr.bf16.gmra.mrb[0].mxu0 %v1487
      %v1545 = vpop.f32.mrb[0].mxu0
      %v1546 = vadd.f32 0.0, %v1545
      %v1547 = vpop.f32.mrb[0].mxu0
      %v1548 = vpop.f32.mrb[0].mxu0
      %v1549 = vadd.f32 0.0, %v1548
      %v1550 = vpop.f32.mrb[0].mxu0
      %1551 = vmatprep.mubr.bf16.mxu0 0
      %1552 = vmatmul.mubr.bf16.gmra.mrb[0].mxu0 %v1490
      %v1553 = vpop.f32.mrb[0].mxu0
      %v1554 = vadd.f32 0.0, %v1553
      %v1555 = vpop.f32.mrb[0].mxu0
      %v1556 = vpop.f32.mrb[0].mxu0
      %v1557 = vadd.f32 0.0, %v1556
      %v1558 = vpop.f32.mrb[0].mxu0
      %1559 = vdwg.mxu0
      %v1560 = vld [vmem:[#allocation3] sm:$0xff]
      %v1561 = vld [vmem:[#allocation3 + $0x8] sm:$0xff]
      %v1562 = vld [vmem:[#allocation3 + $0x10] sm:$0xff]
      %v1563 = vld [vmem:[#allocation3 + $0x18] sm:$0xff]
      %v1564 = vld [vmem:[#allocation3 + $0x20] sm:$0xff]
      %v1565 = vld [vmem:[#allocation3 + $0x28] sm:$0xff]
      %v1566 = vld [vmem:[#allocation3 + $0x30] sm:$0xff]
      %v1567 = vld [vmem:[#allocation3 + $0x38] sm:$0xff]
      %v1568 = vadd.f32 %v1560, %v1530
      %v1569 = vadd.f32 %v1561, %v1533
      %v1570 = vadd.f32 %v1562, %v1538
      %v1571 = vadd.f32 %v1563, %v1541
      %v1572 = vadd.f32 %v1564, %v1546
      %v1573 = vadd.f32 %v1565, %v1549
      %v1574 = vadd.f32 %v1566, %v1554
      %v1575 = vadd.f32 %v1567, %v1557
      %1576 = vst.msk [vmem:[#allocation3] sm:$0xff] %vm270, %v1568
      %1577 = vst.msk [vmem:[#allocation3 + $0x8] sm:$0xff] %vm270, %v1569
      %1578 = vst.msk [vmem:[#allocation3 + $0x10] sm:$0xff] %vm270, %v1570
      %1579 = vst.msk [vmem:[#allocation3 + $0x18] sm:$0xff] %vm270, %v1571
      %1580 = vst.msk [vmem:[#allocation3 + $0x20] sm:$0xff] %vm270, %v1572
      %1581 = vst.msk [vmem:[#allocation3 + $0x28] sm:$0xff] %vm270, %v1573
      %1582 = vst.msk [vmem:[#allocation3 + $0x30] sm:$0xff] %vm270, %v1574
      %1583 = vst.msk [vmem:[#allocation3 + $0x38] sm:$0xff] %vm270, %v1575
      %v1584 = vld [vmem:[#allocation3] sm:$0xff]
      %v1585 = vld [vmem:[#allocation3 + $0x8] sm:$0xff]
      %v1586 = vld [vmem:[#allocation3 + $0x10] sm:$0xff]
      %v1587 = vld [vmem:[#allocation3 + $0x18] sm:$0xff]
      %v1588 = vld [vmem:[#allocation3 + $0x20] sm:$0xff]
      %v1589 = vld [vmem:[#allocation3 + $0x28] sm:$0xff]
      %v1590 = vld [vmem:[#allocation3 + $0x30] sm:$0xff]
      %v1591 = vld [vmem:[#allocation3 + $0x38] sm:$0xff]
      %v1592 = vpack.c.bf16 %v1585, %v1584
      %v1593 = vpack.c.bf16 %v1587, %v1586
      %v1594 = vpack.c.bf16 %v1589, %v1588
      %v1595 = vpack.c.bf16 %v1591, %v1590
      %v1600 = vunpack.c.l.b16 %v1592
      %v1601 = vunpack.c.h.b16 %v1592
      %v1602 = vunpack.c.l.b16 %v1593
      %v1603 = vunpack.c.h.b16 %v1593
      %v1604 = vunpack.c.l.b16 %v1594
      %v1605 = vunpack.c.h.b16 %v1594
      %v1606 = vunpack.c.l.b16 %v1595
      %v1607 = vunpack.c.h.b16 %v1595
      %v1608 = vpack.c.b16 %v1600, %v1600
      %v1609 = vpack.c.b16 %v1601, %v1601
      %v1610 = vpack.c.b16 %v1602, %v1602
      %v1611 = vpack.c.b16 %v1603, %v1603
      %v1612 = vpack.c.b16 %v1604, %v1604
      %v1613 = vpack.c.b16 %v1605, %v1605
      %v1614 = vpack.c.b16 %v1606, %v1606
      %v1615 = vpack.c.b16 %v1607, %v1607
      %vm1624 = vcmask 60416
      %1625 = vst.msk [vmem:[%s262] sm:$0xf] %vm1624, %v1608
      %1626 = vst.msk [vmem:[%s262 + $0x4] sm:$0xf] %vm1624, %v1609
      %1627 = vst.msk [vmem:[%s262 + $0x8] sm:$0xf] %vm1624, %v1610
      %1628 = vst.msk [vmem:[%s262 + $0xc] sm:$0xf] %vm1624, %v1611
      %1629 = vst.msk [vmem:[%s262 + $0x10] sm:$0xf] %vm1624, %v1612
      %1630 = vst.msk [vmem:[%s262 + $0x14] sm:$0xf] %vm1624, %v1613
      %1631 = vst.msk [vmem:[%s262 + $0x18] sm:$0xf] %vm1624, %v1614
      %1632 = vst.msk [vmem:[%s262 + $0x1c] sm:$0xf] %vm1624, %v1615
      %v1633 = vsel %vm270, %v1584, 0.0
      %v1634 = vsel %vm270, %v1585, 0.0
      %v1635 = vadd.f32 %v1633, %v1634
      %v1636 = vsel %vm270, %v1586, 0.0
      %v1637 = vadd.f32 %v1635, %v1636
      %v1638 = vsel %vm270, %v1587, 0.0
      %v1639 = vadd.f32 %v1637, %v1638
      %v1640 = vsel %vm270, %v1588, 0.0
      %v1641 = vadd.f32 %v1639, %v1640
      %v1642 = vsel %vm270, %v1589, 0.0
      %v1643 = vadd.f32 %v1641, %v1642
      %v1644 = vsel %vm270, %v1590, 0.0
      %v1645 = vadd.f32 %v1643, %v1644
      %v1646 = vsel %vm270, %v1591, 0.0
      %v1647 = vadd.f32 %v1645, %v1646
      %v1648 = vrot.slane %v1647, 4
      %v1649 = vadd.f32 %v1647, %v1648
      %v1650 = vrot.slane %v1649, 2
      %v1651 = vadd.f32 %v1649, %v1650
      %v1652 = vrot.slane %v1651, 1
      %v1653 = vadd.f32 %v1651, %v1652
      %vm1654 = vcmask 57344
      %1655 = vst.msk [vmem:[%s265] sm:$0x1] %vm1654, %v1653
      %v1656 = vmul.f32 %v1584, %v1584
      %v1657 = vmul.f32 %v1585, %v1585
      %v1658 = vmul.f32 %v1586, %v1586
      %v1659 = vmul.f32 %v1587, %v1587
      %v1660 = vmul.f32 %v1588, %v1588
      %v1661 = vmul.f32 %v1589, %v1589
      %v1662 = vmul.f32 %v1590, %v1590
      %v1663 = vmul.f32 %v1591, %v1591
      %v1664 = vsel %vm270, %v1656, 0.0
      %v1665 = vsel %vm270, %v1657, 0.0
      %v1666 = vadd.f32 %v1664, %v1665
      %v1667 = vsel %vm270, %v1658, 0.0
      %v1668 = vadd.f32 %v1666, %v1667
      %v1669 = vsel %vm270, %v1659, 0.0
      %v1670 = vadd.f32 %v1668, %v1669
      %v1671 = vsel %vm270, %v1660, 0.0
      %v1672 = vadd.f32 %v1670, %v1671
      %v1673 = vsel %vm270, %v1661, 0.0
      %v1674 = vadd.f32 %v1672, %v1673
      %v1675 = vsel %vm270, %v1662, 0.0
      %v1676 = vadd.f32 %v1674, %v1675
      %v1677 = vsel %vm270, %v1663, 0.0
      %v1678 = vadd.f32 %v1676, %v1677
      %v1679 = vrot.slane %v1678, 4
      %v1680 = vadd.f32 %v1678, %v1679
      %v1681 = vrot.slane %v1680, 2
      %v1682 = vadd.f32 %v1680, %v1681
      %v1683 = vrot.slane %v1682, 1
      %v1684 = vadd.f32 %v1682, %v1683
      %1685 = vst.msk [vmem:[%s268] sm:$0x1] %vm1654, %v1684
      %p1686 = scmp.lt.s32.totalorder %s18, 1
      %s1687 = scalar_select %p1686, %s18, 1
      %s1688 = smul.addr %s1687, 8
      %s1689 = smul.addr %s1688, 4
      %s1690 = scalar_lea.vmem %s4, %s1689
      %p1691 = scmp.lt.s32.totalorder %s18, 1
      %s1692 = scalar_select %p1691, %s18, 1
      %s1693 = scalar_lea.vmem %s5, %s1692
      %p1694 = scmp.lt.s32.totalorder %s18, 1
      %s1695 = scalar_select %p1694, %s18, 1
      %s1696 = scalar_lea.vmem %s6, %s1695
      // Predicated region
      $region37: #{down_forward.4} parent=35 // pred_check
        %p1697 = pneg %p125
      $region38: #{down_forward.4} parent=35 // pred_check_branch
        %1699 = sbr.rel (%p1697) target = $region40
      $region39: #{down_forward.4} parent=35 // pred_region
        _
      $region40: #{down_forward.4} parent=35 // pred_fallthru
        _
      // Predicated region
      $region41: #{down_forward.4} parent=35 // pred_check
        %p1700 = pneg %p151
      $region42: #{down_forward.4} parent=35 // pred_check_branch
        %1702 = sbr.rel (%p1700) target = $region44
      $region43: #{down_forward.4} parent=35 // pred_region
        _
      $region44: #{down_forward.4} parent=35 // pred_fallthru
        _
      // Predicated region
      $region45: #{down_forward.4} parent=35 // pred_check
        %p1703 = pneg %p177
      $region46: #{down_forward.4} parent=35 // pred_check_branch
        %1705 = sbr.rel (%p1703) target = $region48
      $region47: #{down_forward.4} parent=35 // pred_region
        _
      $region48: #{down_forward.4} parent=35 // pred_fallthru
        _
    $region36: #{down_forward.4} parent=5 // pred_fallthru
      _
    %p1706 = scmp.le.s32.totalorder 2, %s13
    // Predicated region
    $region49: #{down_forward.4} parent=5 // pred_check
      %p1707 = pneg %p1706
    $region50: #{down_forward.4} parent=5 // pred_check_branch
      %1709 = sbr.rel (%p1707) target = $region52
    $region51: #{down_forward.4} parent=5 // pred_region
      %s1710 = ssub.s32 %s13, 2
      // Predicated region
      $region53: #{down_forward.4} parent=51 // pred_check
        %p1711 = pneg %p131
      $region54: #{down_forward.4} parent=51 // pred_check_branch
        %1713 = sbr.rel (%p1711) target = $region56
      $region55: #{down_forward.4} parent=51 // pred_region
        %p1714 = scmp.lt.s32.totalorder %s19, 1
        %s1715 = scalar_select %p1714, %s19, 1
        %s1716 = smul.addr %s1715, 8
        %s1717 = smul.addr %s1716, 4
        %s1718 = scalar_lea.vmem %s4, %s1717
      $region56: #{down_forward.4} parent=51 // pred_fallthru
        _
      // Predicated region
      $region57: #{down_forward.4} parent=51 // pred_check
        %p1719 = pneg %p157
      $region58: #{down_forward.4} parent=51 // pred_check_branch
        %1721 = sbr.rel (%p1719) target = $region60
      $region59: #{down_forward.4} parent=51 // pred_region
        %p1722 = scmp.lt.s32.totalorder %s19, 1
        %s1723 = scalar_select %p1722, %s19, 1
        %s1724 = scalar_lea.vmem %s5, %s1723
      $region60: #{down_forward.4} parent=51 // pred_fallthru
        _
      // Predicated region
      $region61: #{down_forward.4} parent=51 // pred_check
        %p1725 = pneg %p183
      $region62: #{down_forward.4} parent=51 // pred_check_branch
        %1727 = sbr.rel (%p1725) target = $region64
      $region63: #{down_forward.4} parent=51 // pred_region
        %p1728 = scmp.lt.s32.totalorder %s19, 1
        %s1729 = scalar_select %p1728, %s19, 1
        %s1730 = scalar_lea.vmem %s6, %s1729
      $region64: #{down_forward.4} parent=51 // pred_fallthru
        _
    $region52: #{down_forward.4} parent=5 // pred_fallthru
      _
  $region6: #{down_forward.4} parent=0 // loop_footer
    %s17 = sadd.s32 1, %s13
  $region7: #{down_forward.4} parent=0 // loop_footer_branch
    %12 = sbr.rel target = $region3
  $region8: #{down_forward.4} parent=0 // loop_exit
    _

</llo_original>
